<compile_context>
chip_gen: v5e
topology: v5e:2x2
jax: 0.10.0
libtpu: 0.0.40
codegen_flags: <defaults>
</compile_context>

<pallas_src>
import functools

import numpy as np
import jax
import jax.numpy as jnp
from jax import lax
from jax.experimental import pallas as pl
from jax.experimental.pallas import tpu as pltpu

HEADS = 5
LANE = 128
NEG = float(np.finfo(np.float32).min)


# ----------------------------------------------------------------------------
# Fused Pallas kernel: 3 x GeneralConv(+ReLU) -> global_max_pool -> Linear
# ----------------------------------------------------------------------------
def fused_gcn_kernel(x_ref, s_ref, dt_ref, ea_ref, bmT_ref,
                     wm_ref, we_ref, bias_ref, ws_ref, bs_ref, att_ref,
                     psum_ref, pexp_ref, pmean_ref, wout_ref, bout_ref,
                     o_ref, *, num_layers, heads, num_graphs):
    f32 = jnp.float32
    inv_heads = 1.0 / heads

    S = s_ref[...].astype(f32)                       # (E, N) src one-hot
    DT = dt_ref[...].astype(f32)                     # (E, N) dst one-hot
    ea = ea_ref[...]                                 # (E, 1) edge attr
    h = x_ref[...]                                   # (N, LANE) node features
    e_dim = S.shape[0]
    col_ids = lax.broadcasted_iota(jnp.int32, (e_dim, LANE), 1)   # lane ids

    for l in range(num_layers):                      # static unroll (3 layers)
        wm, we, bias = wm_ref[l], we_ref[l], bias_ref[l]
        ws, bs, att = ws_ref[l], bs_ref[l], att_ref[l]
        psum, pexp, pmean = psum_ref[l], pexp_ref[l], pmean_ref[l]

        # message m_e = lin_msg(x_src) + lin_edge(edge_attr)        (E, LANE)
        x_src = jnp.dot(S, h, preferred_element_type=f32)
        m = jnp.dot(x_src, wm, preferred_element_type=f32) + ea * we + bias

        # per-head additive attention logits + leaky_relu(0.2)      (E, LANE)
        alpha = jnp.dot(m * att, psum, preferred_element_type=f32)
        alpha = jnp.where(alpha > 0, alpha, 0.2 * alpha)

        # true per-destination (segment) max, head by head (heads is a small
        # static constant); all ops stay 2-D / lane-dense.
        edge_max = jnp.zeros_like(alpha)
        for hh in range(heads):
            a_h = alpha[:, hh:hh + 1]                               # (E, 1)
            nmax_h = jnp.max(jnp.where(DT > 0.5, a_h, NEG),
                             axis=0, keepdims=True)                 # (1, N)
            emax_h = jnp.max(jnp.where(DT > 0.5, nmax_h, NEG),
                             axis=1, keepdims=True)                 # (E, 1)
            edge_max = jnp.where(col_ids == hh, emax_h, edge_max)

        # segment softmax over incoming edges of each destination node
        ex = jnp.exp(alpha - edge_max)                               # (E, LANE)
        denom_node = lax.dot_general(DT, ex, (((0,), (0,)), ((), ())),
                                     preferred_element_type=f32)     # (N, LANE)
        denom_edge = jnp.dot(DT, denom_node,
                             preferred_element_type=f32)             # (E, LANE)
        attn = ex / (denom_edge + 1e-16)

        # weight messages per head, scatter-add to destinations, head-mean
        w = jnp.dot(attn, pexp, preferred_element_type=f32)          # (E, LANE)
        agg = lax.dot_general(DT, m * w, (((0,), (0,)), ((), ())),
                              preferred_element_type=f32)            # (N, LANE)
        out_msg = jnp.dot(agg, pmean, preferred_element_type=f32) * inv_heads
        h = out_msg + jnp.dot(h, ws, preferred_element_type=f32) + bs
        h = jnp.maximum(h, 0.0)                                      # ReLU

    # global_max_pool over batch_index, then output Linear; one lane-dense
    # (B, LANE) slab store.
    bmT = bmT_ref[...]                                               # (N, B)
    row_ids = lax.broadcasted_iota(jnp.int32, (num_graphs, LANE), 0)
    pooled = jnp.zeros((num_graphs, LANE), f32)
    for g in range(num_graphs):
        mrow = jnp.max(jnp.where(bmT[:, g:g + 1] > 0.5, h, NEG),
                       axis=0, keepdims=True)                        # (1, LANE)
        pooled = jnp.where(row_ids == g, mrow, pooled)
    o_ref[...] = (jnp.dot(pooled, wout_ref[...], preferred_element_type=f32)
                  + bout_ref[...])


# ----------------------------------------------------------------------------
# Wrapper: host-side lane padding, layer stacking, single pallas_call
# ----------------------------------------------------------------------------
def _pad2(a, rows, cols):
    a = np.asarray(a, np.float32)
    out = np.zeros((rows, cols), np.float32)
    out[:a.shape[0], :a.shape[1]] = a
    return out


def run_custom_gcn(x, S, D_T, edge_attr, bmT, layer_params, W_out, b_out):
    n = x.shape[0]
    e = S.shape[0]
    b = bmT.shape[1]
    nl = len(layer_params)

    # pad every feature dim to LANE=128 and stack per-layer params
    x_pad = jnp.asarray(_pad2(x, n, LANE))
    stack = lambda key, r, c: jnp.asarray(
        np.stack([_pad2(p[key], r, c) for p in layer_params]))
    wm = stack("W_msg", LANE, LANE)
    we = stack("W_edge", 1, LANE)
    bias = jnp.asarray(np.stack(
        [_pad2(np.asarray(p["b_msg"]) + np.asarray(p["b_edge"]), 1, LANE)
         for p in layer_params]))
    ws = stack("W_self", LANE, LANE)
    bs = stack("b_self", 1, LANE)
    att = stack("att", 1, LANE)
    psum = stack("P_sum", LANE, LANE)
    pexp = stack("P_exp", LANE, LANE)
    pmean = stack("P_mean", LANE, LANE)
    wout = jnp.asarray(_pad2(W_out, LANE, LANE))
    bout = jnp.asarray(_pad2(b_out, 1, LANE))

    s_bf = S.astype(jnp.bfloat16)        # 0/1 exact in bf16; halves DMA bytes
    dt_bf = D_T.astype(jnp.bfloat16)

    args = (x_pad, s_bf, dt_bf, edge_attr, bmT,
            wm, we, bias, ws, bs, att, psum, pexp, pmean, wout, bout)

    vmem = pl.BlockSpec(memory_space=pltpu.MemorySpace.VMEM)
    bytes_in = int(sum(a.size * a.dtype.itemsize for a in args))
    flops = int(2 * nl * LANE * (4 * e * n + 3 * e * LANE + 2 * n * LANE)
                + 2 * b * LANE * LANE)
    kern = functools.partial(fused_gcn_kernel, num_layers=nl, heads=HEADS,
                             num_graphs=b)
    out = pl.pallas_call(
        kern,
        out_shape=jax.ShapeDtypeStruct((b, LANE), jnp.float32),
        in_specs=[vmem] * len(args),
        out_specs=vmem,
        compiler_params=pltpu.CompilerParams(
            vmem_limit_bytes=32 * 1024 * 1024),
        cost_estimate=pl.CostEstimate(flops=flops,
                                      transcendentals=int(nl * e * LANE),
                                      bytes_accessed=bytes_in + b * LANE * 4),
    )(*args)
    return out[:, :W_out.shape[1]]


# ----------------------------------------------------------------------------
# Deterministic parameter init (synthetic; shapes follow GeneralConv/Linear)
# ----------------------------------------------------------------------------
def init_general_conv_params(key, in_ch, out_ch, heads):
    ks = jax.random.split(key, 7)
    ho = heads * out_ch
    s = 0.2
    P_sum = np.kron(np.eye(heads), np.ones((out_ch, 1))).astype(np.float32)   # (HO, H)
    P_mean = np.kron(np.ones((heads, 1)), np.eye(out_ch)).astype(np.float32)  # (HO, out)
    return dict(
        W_msg=s * jax.random.normal(ks[0], (in_ch, ho), jnp.float32),
        b_msg=s * jax.random.normal(ks[1], (1, ho), jnp.float32),
        W_edge=s * jax.random.normal(ks[2], (1, ho), jnp.float32),
        b_edge=s * jax.random.normal(ks[3], (1, ho), jnp.float32),
        W_self=s * jax.random.normal(ks[4], (in_ch, out_ch), jnp.float32),
        b_self=s * jax.random.normal(ks[5], (1, out_ch), jnp.float32),
        att=s * jax.random.normal(ks[6], (1, ho), jnp.float32),
        P_sum=jnp.asarray(P_sum),
        P_exp=jnp.asarray(P_sum.T),
        P_mean=jnp.asarray(P_mean),
    )


# ----------------------------------------------------------------------------
# Pure-JAX reference (sanity check of the Pallas lowering)
# ----------------------------------------------------------------------------
def general_conv_ref(x, src, dst, edge_attr, p, heads, apply_relu, num_nodes):
    out_ch = p["W_self"].shape[1]
    m = x[src] @ p["W_msg"] + p["b_msg"] + edge_attr @ p["W_edge"] + p["b_edge"]
    e = m.shape[0]
    m3 = m.reshape(e, heads, out_ch)
    alpha = (m3 * p["att"].reshape(1, heads, out_ch)).sum(-1)
    alpha = jnp.where(alpha > 0, alpha, 0.2 * alpha)
    amax = jax.ops.segment_max(alpha, dst, num_segments=num_nodes)
    ex = jnp.exp(alpha - amax[dst])
    denom = jax.ops.segment_sum(ex, dst, num_segments=num_nodes)
    attn = ex / (denom[dst] + 1e-16)
    weighted = (m3 * attn[:, :, None]).reshape(e, -1)
    agg = jax.ops.segment_sum(weighted, dst,
                              num_segments=num_nodes).reshape(num_nodes, heads, out_ch)
    out = agg.mean(axis=1) + x @ p["W_self"] + p["b_self"]
    return jnp.maximum(out, 0.0) if apply_relu else out


# ----------------------------------------------------------------------------
if __name__ == "__main__":
    N_PER_GRAPH = 8
    NUM_GRAPHS = 2
    N = N_PER_GRAPH * NUM_GRAPHS
    NUM_FEATURES = 3
    NUM_CLASSES = 2
    HIDDEN = 4

    key = jax.random.PRNGKey(0)
    k_x, k_ea, k_p1, k_p2, k_p3, k_lin = jax.random.split(key, 6)

    # node features
    x = jax.random.normal(k_x, (N, NUM_FEATURES), jnp.float32)

    # bidirectional ring edges inside each graph (deterministic)
    src_list, dst_list = [], []
    for g in range(NUM_GRAPHS):
        base = g * N_PER_GRAPH
        for i in range(N_PER_GRAPH):
            a = base + i
            bb = base + (i + 1) % N_PER_GRAPH
            src_list += [a, bb]
            dst_list += [bb, a]
    src = jnp.asarray(src_list, jnp.int32)
    dst = jnp.asarray(dst_list, jnp.int32)
    E = int(src.shape[0])
    edge_attr = jax.random.normal(k_ea, (E, 1), jnp.float32)
    batch_index = jnp.asarray(np.repeat(np.arange(NUM_GRAPHS), N_PER_GRAPH), jnp.int32)

    # dense one-hot gather / scatter operators (glue, plain JAX)
    S = jax.nn.one_hot(src, N, dtype=jnp.float32)                     # (E, N)
    D_T = jax.nn.one_hot(dst, N, dtype=jnp.float32)                   # (E, N)
    bmT = jax.nn.one_hot(batch_index, NUM_GRAPHS, dtype=jnp.float32)  # (N, B)

    p1 = init_general_conv_params(k_p1, NUM_FEATURES, HIDDEN, HEADS)
    p2 = init_general_conv_params(k_p2, HIDDEN, HIDDEN * 2, HEADS)
    p3 = init_general_conv_params(k_p3, HIDDEN * 2, HIDDEN * 4, HEADS)
    kW, kB = jax.random.split(k_lin)
    W_out = 0.2 * jax.random.normal(kW, (HIDDEN * 4, NUM_CLASSES), jnp.float32)
    b_out = 0.2 * jax.random.normal(kB, (1, NUM_CLASSES), jnp.float32)

    # ---- fused Pallas forward (one kernel launch) ----
    logits = run_custom_gcn(x, S, D_T, edge_attr, bmT, [p1, p2, p3], W_out, b_out)
    logits = jax.block_until_ready(logits)

    # ---- pure-JAX reference ----
    r1 = general_conv_ref(x, src, dst, edge_attr, p1, HEADS, True, N)
    r2 = general_conv_ref(r1, src, dst, edge_attr, p2, HEADS, True, N)
    r3 = general_conv_ref(r2, src, dst, edge_attr, p3, HEADS, True, N)
    pooled = jax.ops.segment_max(r3, batch_index, num_segments=NUM_GRAPHS)
    ref_logits = pooled @ W_out + b_out

    np.testing.assert_allclose(np.asarray(logits), np.asarray(ref_logits),
                               rtol=1e-4, atol=1e-4)
    print("KERNEL_OK")
</pallas_src>

<mosaic_0001>
module attributes {stable_mosaic.version = 11 : i64} {
  func.func @fused_gcn_kernel(%arg0: memref<16x128xf32, #tpu.memory_space<vmem>>, %arg1: memref<32x16xbf16, #tpu.memory_space<vmem>>, %arg2: memref<32x16xbf16, #tpu.memory_space<vmem>>, %arg3: memref<32x1xf32, #tpu.memory_space<vmem>>, %arg4: memref<16x2xf32, #tpu.memory_space<vmem>>, %arg5: memref<3x128x128xf32, #tpu.memory_space<vmem>>, %arg6: memref<3x1x128xf32, #tpu.memory_space<vmem>>, %arg7: memref<3x1x128xf32, #tpu.memory_space<vmem>>, %arg8: memref<3x128x128xf32, #tpu.memory_space<vmem>>, %arg9: memref<3x1x128xf32, #tpu.memory_space<vmem>>, %arg10: memref<3x1x128xf32, #tpu.memory_space<vmem>>, %arg11: memref<3x128x128xf32, #tpu.memory_space<vmem>>, %arg12: memref<3x128x128xf32, #tpu.memory_space<vmem>>, %arg13: memref<3x128x128xf32, #tpu.memory_space<vmem>>, %arg14: memref<128x128xf32, #tpu.memory_space<vmem>>, %arg15: memref<1x128xf32, #tpu.memory_space<vmem>>, %arg16: memref<2x128xf32, #tpu.memory_space<vmem>>) attributes {dimension_semantics = [], scalar_prefetch = 0 : i64, scratch_operands = 0 : i64, tpu.core_type = #tpu.core_type<tc>} {
    %c0 = arith.constant 0 : index
    %c0_0 = arith.constant 0 : index
    %0 = vector.load %arg1[%c0, %c0_0] : memref<32x16xbf16, #tpu.memory_space<vmem>>, vector<32x16xbf16>
    %1 = arith.extf %0 : vector<32x16xbf16> to vector<32x16xf32>
    %c0_1 = arith.constant 0 : index
    %c0_2 = arith.constant 0 : index
    %2 = vector.load %arg2[%c0_1, %c0_2] : memref<32x16xbf16, #tpu.memory_space<vmem>>, vector<32x16xbf16>
    %3 = arith.extf %2 : vector<32x16xbf16> to vector<32x16xf32>
    %c0_3 = arith.constant 0 : index
    %c0_4 = arith.constant 0 : index
    %4 = vector.load %arg3[%c0_3, %c0_4] : memref<32x1xf32, #tpu.memory_space<vmem>>, vector<32x1xf32>
    %c0_5 = arith.constant 0 : index
    %c0_6 = arith.constant 0 : index
    %5 = vector.load %arg0[%c0_5, %c0_6] : memref<16x128xf32, #tpu.memory_space<vmem>>, vector<16x128xf32>
    %6 = tpu.iota {dimensions = array<i32: 1>} : vector<32x128xi32>
    %c0_7 = arith.constant 0 : index
    %c0_8 = arith.constant 0 : index
    %c0_9 = arith.constant 0 : index
    %7 = vector.load %arg5[%c0_7, %c0_8, %c0_9] : memref<3x128x128xf32, #tpu.memory_space<vmem>>, vector<1x128x128xf32>
    %8 = vector.shape_cast %7 : vector<1x128x128xf32> to vector<128x128xf32>
    %c0_10 = arith.constant 0 : index
    %c0_11 = arith.constant 0 : index
    %c0_12 = arith.constant 0 : index
    %9 = vector.load %arg6[%c0_10, %c0_11, %c0_12] : memref<3x1x128xf32, #tpu.memory_space<vmem>>, vector<1x1x128xf32>
    %10 = vector.shape_cast %9 : vector<1x1x128xf32> to vector<1x128xf32>
    %c0_13 = arith.constant 0 : index
    %c0_14 = arith.constant 0 : index
    %c0_15 = arith.constant 0 : index
    %11 = vector.load %arg7[%c0_13, %c0_14, %c0_15] : memref<3x1x128xf32, #tpu.memory_space<vmem>>, vector<1x1x128xf32>
    %12 = vector.shape_cast %11 : vector<1x1x128xf32> to vector<1x128xf32>
    %c0_16 = arith.constant 0 : index
    %c0_17 = arith.constant 0 : index
    %c0_18 = arith.constant 0 : index
    %13 = vector.load %arg8[%c0_16, %c0_17, %c0_18] : memref<3x128x128xf32, #tpu.memory_space<vmem>>, vector<1x128x128xf32>
    %14 = vector.shape_cast %13 : vector<1x128x128xf32> to vector<128x128xf32>
    %c0_19 = arith.constant 0 : index
    %c0_20 = arith.constant 0 : index
    %c0_21 = arith.constant 0 : index
    %15 = vector.load %arg9[%c0_19, %c0_20, %c0_21] : memref<3x1x128xf32, #tpu.memory_space<vmem>>, vector<1x1x128xf32>
    %16 = vector.shape_cast %15 : vector<1x1x128xf32> to vector<1x128xf32>
    %c0_22 = arith.constant 0 : index
    %c0_23 = arith.constant 0 : index
    %c0_24 = arith.constant 0 : index
    %17 = vector.load %arg10[%c0_22, %c0_23, %c0_24] : memref<3x1x128xf32, #tpu.memory_space<vmem>>, vector<1x1x128xf32>
    %18 = vector.shape_cast %17 : vector<1x1x128xf32> to vector<1x128xf32>
    %c0_25 = arith.constant 0 : index
    %c0_26 = arith.constant 0 : index
    %c0_27 = arith.constant 0 : index
    %19 = vector.load %arg11[%c0_25, %c0_26, %c0_27] : memref<3x128x128xf32, #tpu.memory_space<vmem>>, vector<1x128x128xf32>
    %20 = vector.shape_cast %19 : vector<1x128x128xf32> to vector<128x128xf32>
    %c0_28 = arith.constant 0 : index
    %c0_29 = arith.constant 0 : index
    %c0_30 = arith.constant 0 : index
    %21 = vector.load %arg12[%c0_28, %c0_29, %c0_30] : memref<3x128x128xf32, #tpu.memory_space<vmem>>, vector<1x128x128xf32>
    %22 = vector.shape_cast %21 : vector<1x128x128xf32> to vector<128x128xf32>
    %c0_31 = arith.constant 0 : index
    %c0_32 = arith.constant 0 : index
    %c0_33 = arith.constant 0 : index
    %23 = vector.load %arg13[%c0_31, %c0_32, %c0_33] : memref<3x128x128xf32, #tpu.memory_space<vmem>>, vector<1x128x128xf32>
    %24 = vector.shape_cast %23 : vector<1x128x128xf32> to vector<128x128xf32>
    %cst = arith.constant dense<0.000000e+00> : vector<32x128xf32>
    %25 = tpu.matmul %1, %5, %cst {dimension_numbers = #tpu.dot_dimension_numbers<[1], [0], [0], [1], [0, 0, 1, 1], [], []>} : vector<32x16xf32>, vector<16x128xf32>, vector<32x128xf32> -> vector<32x128xf32>
    %cst_34 = arith.constant dense<0.000000e+00> : vector<32x128xf32>
    %26 = tpu.matmul %25, %8, %cst_34 {dimension_numbers = #tpu.dot_dimension_numbers<[1], [0], [0], [1], [0, 0, 1, 1], [], []>} : vector<32x128xf32>, vector<128x128xf32>, vector<32x128xf32> -> vector<32x128xf32>
    %27 = vector.broadcast %4 : vector<32x1xf32> to vector<32x128xf32>
    %28 = vector.broadcast %10 : vector<1x128xf32> to vector<32x128xf32>
    %29 = arith.mulf %27, %28 : vector<32x128xf32>
    %30 = arith.addf %26, %29 : vector<32x128xf32>
    %31 = vector.broadcast %12 : vector<1x128xf32> to vector<32x128xf32>
    %32 = arith.addf %30, %31 : vector<32x128xf32>
    %33 = vector.broadcast %18 : vector<1x128xf32> to vector<32x128xf32>
    %34 = arith.mulf %32, %33 : vector<32x128xf32>
    %cst_35 = arith.constant dense<0.000000e+00> : vector<32x128xf32>
    %35 = tpu.matmul %34, %20, %cst_35 {dimension_numbers = #tpu.dot_dimension_numbers<[1], [0], [0], [1], [0, 0, 1, 1], [], []>} : vector<32x128xf32>, vector<128x128xf32>, vector<32x128xf32> -> vector<32x128xf32>
    %cst_36 = arith.constant 0.000000e+00 : f32
    %36 = vector.broadcast %cst_36 : f32 to vector<32x128xf32>
    %37 = arith.cmpf ogt, %35, %36 : vector<32x128xf32>
    %cst_37 = arith.constant 2.000000e-01 : f32
    %38 = vector.broadcast %cst_37 : f32 to vector<32x128xf32>
    %39 = arith.mulf %38, %35 : vector<32x128xf32>
    %40 = arith.select %37, %35, %39 : vector<32x128xi1>, vector<32x128xf32>
    %cst_38 = arith.constant 0.000000e+00 : f32
    %41 = vector.broadcast %cst_38 : f32 to vector<32x128xf32>
    %42 = vector.extract_strided_slice %40 {offsets = [0, 0], sizes = [32, 1], strides = [1, 1]} : vector<32x128xf32> to vector<32x1xf32>
    %cst_39 = arith.constant 5.000000e-01 : f32
    %43 = vector.broadcast %cst_39 : f32 to vector<32x16xf32>
    %44 = arith.cmpf ogt, %3, %43 : vector<32x16xf32>
    %cst_40 = arith.constant -3.40282347E+38 : f32
    %45 = vector.shape_cast %42 : vector<32x1xf32> to vector<32x1xf32>
    %46 = vector.broadcast %45 : vector<32x1xf32> to vector<32x16xf32>
    %47 = vector.broadcast %cst_40 : f32 to vector<32x16xf32>
    %48 = arith.select %44, %46, %47 : vector<32x16xi1>, vector<32x16xf32>
    %cst_41 = arith.constant dense<0xFF800000> : vector<16xf32>
    %49 = vector.multi_reduction <maximumf>, %48, %cst_41 [0] : vector<32x16xf32> to vector<16xf32>
    %50 = vector.shape_cast %49 : vector<16xf32> to vector<1x16xf32>
    %cst_42 = arith.constant 5.000000e-01 : f32
    %51 = vector.broadcast %cst_42 : f32 to vector<32x16xf32>
    %52 = arith.cmpf ogt, %3, %51 : vector<32x16xf32>
    %cst_43 = arith.constant -3.40282347E+38 : f32
    %53 = vector.shape_cast %50 : vector<1x16xf32> to vector<1x16xf32>
    %54 = vector.broadcast %53 : vector<1x16xf32> to vector<32x16xf32>
    %55 = vector.broadcast %cst_43 : f32 to vector<32x16xf32>
    %56 = arith.select %52, %54, %55 : vector<32x16xi1>, vector<32x16xf32>
    %cst_44 = arith.constant dense<0xFF800000> : vector<32xf32>
    %57 = vector.multi_reduction <maximumf>, %56, %cst_44 [1] : vector<32x16xf32> to vector<32xf32>
    %58 = vector.shape_cast %57 : vector<32xf32> to vector<32x1xf32>
    %c0_i32 = arith.constant 0 : i32
    %59 = vector.broadcast %c0_i32 : i32 to vector<32x128xi32>
    %60 = arith.cmpi eq, %6, %59 : vector<32x128xi32>
    %61 = vector.shape_cast %58 : vector<32x1xf32> to vector<32x1xf32>
    %62 = vector.broadcast %61 : vector<32x1xf32> to vector<32x128xf32>
    %63 = arith.select %60, %62, %41 : vector<32x128xi1>, vector<32x128xf32>
    %64 = vector.extract_strided_slice %40 {offsets = [0, 1], sizes = [32, 1], strides = [1, 1]} : vector<32x128xf32> to vector<32x1xf32>
    %cst_45 = arith.constant 5.000000e-01 : f32
    %65 = vector.broadcast %cst_45 : f32 to vector<32x16xf32>
    %66 = arith.cmpf ogt, %3, %65 : vector<32x16xf32>
    %cst_46 = arith.constant -3.40282347E+38 : f32
    %67 = vector.shape_cast %64 : vector<32x1xf32> to vector<32x1xf32>
    %68 = vector.broadcast %67 : vector<32x1xf32> to vector<32x16xf32>
    %69 = vector.broadcast %cst_46 : f32 to vector<32x16xf32>
    %70 = arith.select %66, %68, %69 : vector<32x16xi1>, vector<32x16xf32>
    %cst_47 = arith.constant dense<0xFF800000> : vector<16xf32>
    %71 = vector.multi_reduction <maximumf>, %70, %cst_47 [0] : vector<32x16xf32> to vector<16xf32>
    %72 = vector.shape_cast %71 : vector<16xf32> to vector<1x16xf32>
    %cst_48 = arith.constant 5.000000e-01 : f32
    %73 = vector.broadcast %cst_48 : f32 to vector<32x16xf32>
    %74 = arith.cmpf ogt, %3, %73 : vector<32x16xf32>
    %cst_49 = arith.constant -3.40282347E+38 : f32
    %75 = vector.shape_cast %72 : vector<1x16xf32> to vector<1x16xf32>
    %76 = vector.broadcast %75 : vector<1x16xf32> to vector<32x16xf32>
    %77 = vector.broadcast %cst_49 : f32 to vector<32x16xf32>
    %78 = arith.select %74, %76, %77 : vector<32x16xi1>, vector<32x16xf32>
    %cst_50 = arith.constant dense<0xFF800000> : vector<32xf32>
    %79 = vector.multi_reduction <maximumf>, %78, %cst_50 [1] : vector<32x16xf32> to vector<32xf32>
    %80 = vector.shape_cast %79 : vector<32xf32> to vector<32x1xf32>
    %c1_i32 = arith.constant 1 : i32
    %81 = vector.broadcast %c1_i32 : i32 to vector<32x128xi32>
    %82 = arith.cmpi eq, %6, %81 : vector<32x128xi32>
    %83 = vector.shape_cast %80 : vector<32x1xf32> to vector<32x1xf32>
    %84 = vector.broadcast %83 : vector<32x1xf32> to vector<32x128xf32>
    %85 = arith.select %82, %84, %63 : vector<32x128xi1>, vector<32x128xf32>
    %86 = vector.extract_strided_slice %40 {offsets = [0, 2], sizes = [32, 1], strides = [1, 1]} : vector<32x128xf32> to vector<32x1xf32>
    %cst_51 = arith.constant 5.000000e-01 : f32
    %87 = vector.broadcast %cst_51 : f32 to vector<32x16xf32>
    %88 = arith.cmpf ogt, %3, %87 : vector<32x16xf32>
    %cst_52 = arith.constant -3.40282347E+38 : f32
    %89 = vector.shape_cast %86 : vector<32x1xf32> to vector<32x1xf32>
    %90 = vector.broadcast %89 : vector<32x1xf32> to vector<32x16xf32>
    %91 = vector.broadcast %cst_52 : f32 to vector<32x16xf32>
    %92 = arith.select %88, %90, %91 : vector<32x16xi1>, vector<32x16xf32>
    %cst_53 = arith.constant dense<0xFF800000> : vector<16xf32>
    %93 = vector.multi_reduction <maximumf>, %92, %cst_53 [0] : vector<32x16xf32> to vector<16xf32>
    %94 = vector.shape_cast %93 : vector<16xf32> to vector<1x16xf32>
    %cst_54 = arith.constant 5.000000e-01 : f32
    %95 = vector.broadcast %cst_54 : f32 to vector<32x16xf32>
    %96 = arith.cmpf ogt, %3, %95 : vector<32x16xf32>
    %cst_55 = arith.constant -3.40282347E+38 : f32
    %97 = vector.shape_cast %94 : vector<1x16xf32> to vector<1x16xf32>
    %98 = vector.broadcast %97 : vector<1x16xf32> to vector<32x16xf32>
    %99 = vector.broadcast %cst_55 : f32 to vector<32x16xf32>
    %100 = arith.select %96, %98, %99 : vector<32x16xi1>, vector<32x16xf32>
    %cst_56 = arith.constant dense<0xFF800000> : vector<32xf32>
    %101 = vector.multi_reduction <maximumf>, %100, %cst_56 [1] : vector<32x16xf32> to vector<32xf32>
    %102 = vector.shape_cast %101 : vector<32xf32> to vector<32x1xf32>
    %c2_i32 = arith.constant 2 : i32
    %103 = vector.broadcast %c2_i32 : i32 to vector<32x128xi32>
    %104 = arith.cmpi eq, %6, %103 : vector<32x128xi32>
    %105 = vector.shape_cast %102 : vector<32x1xf32> to vector<32x1xf32>
    %106 = vector.broadcast %105 : vector<32x1xf32> to vector<32x128xf32>
    %107 = arith.select %104, %106, %85 : vector<32x128xi1>, vector<32x128xf32>
    %108 = vector.extract_strided_slice %40 {offsets = [0, 3], sizes = [32, 1], strides = [1, 1]} : vector<32x128xf32> to vector<32x1xf32>
    %cst_57 = arith.constant 5.000000e-01 : f32
    %109 = vector.broadcast %cst_57 : f32 to vector<32x16xf32>
    %110 = arith.cmpf ogt, %3, %109 : vector<32x16xf32>
    %cst_58 = arith.constant -3.40282347E+38 : f32
    %111 = vector.shape_cast %108 : vector<32x1xf32> to vector<32x1xf32>
    %112 = vector.broadcast %111 : vector<32x1xf32> to vector<32x16xf32>
    %113 = vector.broadcast %cst_58 : f32 to vector<32x16xf32>
    %114 = arith.select %110, %112, %113 : vector<32x16xi1>, vector<32x16xf32>
    %cst_59 = arith.constant dense<0xFF800000> : vector<16xf32>
    %115 = vector.multi_reduction <maximumf>, %114, %cst_59 [0] : vector<32x16xf32> to vector<16xf32>
    %116 = vector.shape_cast %115 : vector<16xf32> to vector<1x16xf32>
    %cst_60 = arith.constant 5.000000e-01 : f32
    %117 = vector.broadcast %cst_60 : f32 to vector<32x16xf32>
    %118 = arith.cmpf ogt, %3, %117 : vector<32x16xf32>
    %cst_61 = arith.constant -3.40282347E+38 : f32
    %119 = vector.shape_cast %116 : vector<1x16xf32> to vector<1x16xf32>
    %120 = vector.broadcast %119 : vector<1x16xf32> to vector<32x16xf32>
    %121 = vector.broadcast %cst_61 : f32 to vector<32x16xf32>
    %122 = arith.select %118, %120, %121 : vector<32x16xi1>, vector<32x16xf32>
    %cst_62 = arith.constant dense<0xFF800000> : vector<32xf32>
    %123 = vector.multi_reduction <maximumf>, %122, %cst_62 [1] : vector<32x16xf32> to vector<32xf32>
    %124 = vector.shape_cast %123 : vector<32xf32> to vector<32x1xf32>
    %c3_i32 = arith.constant 3 : i32
    %125 = vector.broadcast %c3_i32 : i32 to vector<32x128xi32>
    %126 = arith.cmpi eq, %6, %125 : vector<32x128xi32>
    %127 = vector.shape_cast %124 : vector<32x1xf32> to vector<32x1xf32>
    %128 = vector.broadcast %127 : vector<32x1xf32> to vector<32x128xf32>
    %129 = arith.select %126, %128, %107 : vector<32x128xi1>, vector<32x128xf32>
    %130 = vector.extract_strided_slice %40 {offsets = [0, 4], sizes = [32, 1], strides = [1, 1]} : vector<32x128xf32> to vector<32x1xf32>
    %cst_63 = arith.constant 5.000000e-01 : f32
    %131 = vector.broadcast %cst_63 : f32 to vector<32x16xf32>
    %132 = arith.cmpf ogt, %3, %131 : vector<32x16xf32>
    %cst_64 = arith.constant -3.40282347E+38 : f32
    %133 = vector.shape_cast %130 : vector<32x1xf32> to vector<32x1xf32>
    %134 = vector.broadcast %133 : vector<32x1xf32> to vector<32x16xf32>
    %135 = vector.broadcast %cst_64 : f32 to vector<32x16xf32>
    %136 = arith.select %132, %134, %135 : vector<32x16xi1>, vector<32x16xf32>
    %cst_65 = arith.constant dense<0xFF800000> : vector<16xf32>
    %137 = vector.multi_reduction <maximumf>, %136, %cst_65 [0] : vector<32x16xf32> to vector<16xf32>
    %138 = vector.shape_cast %137 : vector<16xf32> to vector<1x16xf32>
    %cst_66 = arith.constant 5.000000e-01 : f32
    %139 = vector.broadcast %cst_66 : f32 to vector<32x16xf32>
    %140 = arith.cmpf ogt, %3, %139 : vector<32x16xf32>
    %cst_67 = arith.constant -3.40282347E+38 : f32
    %141 = vector.shape_cast %138 : vector<1x16xf32> to vector<1x16xf32>
    %142 = vector.broadcast %141 : vector<1x16xf32> to vector<32x16xf32>
    %143 = vector.broadcast %cst_67 : f32 to vector<32x16xf32>
    %144 = arith.select %140, %142, %143 : vector<32x16xi1>, vector<32x16xf32>
    %cst_68 = arith.constant dense<0xFF800000> : vector<32xf32>
    %145 = vector.multi_reduction <maximumf>, %144, %cst_68 [1] : vector<32x16xf32> to vector<32xf32>
    %146 = vector.shape_cast %145 : vector<32xf32> to vector<32x1xf32>
    %c4_i32 = arith.constant 4 : i32
    %147 = vector.broadcast %c4_i32 : i32 to vector<32x128xi32>
    %148 = arith.cmpi eq, %6, %147 : vector<32x128xi32>
    %149 = vector.shape_cast %146 : vector<32x1xf32> to vector<32x1xf32>
    %150 = vector.broadcast %149 : vector<32x1xf32> to vector<32x128xf32>
    %151 = arith.select %148, %150, %129 : vector<32x128xi1>, vector<32x128xf32>
    %152 = arith.subf %40, %151 : vector<32x128xf32>
    %153 = math.exp %152 : vector<32x128xf32>
    %cst_69 = arith.constant dense<0.000000e+00> : vector<16x128xf32>
    %154 = tpu.matmul %3, %153, %cst_69 {dimension_numbers = #tpu.dot_dimension_numbers<[0], [0], [1], [1], [0, 1, 1, 1], [], []>} : vector<32x16xf32>, vector<32x128xf32>, vector<16x128xf32> -> vector<16x128xf32>
    %cst_70 = arith.constant dense<0.000000e+00> : vector<32x128xf32>
    %155 = tpu.matmul %3, %154, %cst_70 {dimension_numbers = #tpu.dot_dimension_numbers<[1], [0], [0], [1], [0, 0, 1, 1], [], []>} : vector<32x16xf32>, vector<16x128xf32>, vector<32x128xf32> -> vector<32x128xf32>
    %cst_71 = arith.constant 1.000000e-16 : f32
    %156 = vector.broadcast %cst_71 : f32 to vector<32x128xf32>
    %157 = arith.addf %155, %156 : vector<32x128xf32>
    %158 = arith.divf %153, %157 : vector<32x128xf32>
    %cst_72 = arith.constant dense<0.000000e+00> : vector<32x128xf32>
    %159 = tpu.matmul %158, %22, %cst_72 {dimension_numbers = #tpu.dot_dimension_numbers<[1], [0], [0], [1], [0, 0, 1, 1], [], []>} : vector<32x128xf32>, vector<128x128xf32>, vector<32x128xf32> -> vector<32x128xf32>
    %160 = arith.mulf %32, %159 : vector<32x128xf32>
    %cst_73 = arith.constant dense<0.000000e+00> : vector<16x128xf32>
    %161 = tpu.matmul %3, %160, %cst_73 {dimension_numbers = #tpu.dot_dimension_numbers<[0], [0], [1], [1], [0, 1, 1, 1], [], []>} : vector<32x16xf32>, vector<32x128xf32>, vector<16x128xf32> -> vector<16x128xf32>
    %cst_74 = arith.constant dense<0.000000e+00> : vector<16x128xf32>
    %162 = tpu.matmul %161, %24, %cst_74 {dimension_numbers = #tpu.dot_dimension_numbers<[1], [0], [0], [1], [0, 0, 1, 1], [], []>} : vector<16x128xf32>, vector<128x128xf32>, vector<16x128xf32> -> vector<16x128xf32>
    %cst_75 = arith.constant 2.000000e-01 : f32
    %163 = vector.broadcast %cst_75 : f32 to vector<16x128xf32>
    %164 = arith.mulf %162, %163 : vector<16x128xf32>
    %cst_76 = arith.constant dense<0.000000e+00> : vector<16x128xf32>
    %165 = tpu.matmul %5, %14, %cst_76 {dimension_numbers = #tpu.dot_dimension_numbers<[1], [0], [0], [1], [0, 0, 1, 1], [], []>} : vector<16x128xf32>, vector<128x128xf32>, vector<16x128xf32> -> vector<16x128xf32>
    %166 = arith.addf %164, %165 : vector<16x128xf32>
    %167 = vector.broadcast %16 : vector<1x128xf32> to vector<16x128xf32>
    %168 = arith.addf %166, %167 : vector<16x128xf32>
    %cst_77 = arith.constant 0.000000e+00 : f32
    %169 = vector.broadcast %cst_77 : f32 to vector<16x128xf32>
    %170 = arith.maximumf %168, %169 : vector<16x128xf32>
    %c1 = arith.constant 1 : index
    %c0_78 = arith.constant 0 : index
    %c0_79 = arith.constant 0 : index
    %171 = vector.load %arg5[%c1, %c0_78, %c0_79] : memref<3x128x128xf32, #tpu.memory_space<vmem>>, vector<1x128x128xf32>
    %172 = vector.shape_cast %171 : vector<1x128x128xf32> to vector<128x128xf32>
    %c1_80 = arith.constant 1 : index
    %c0_81 = arith.constant 0 : index
    %c0_82 = arith.constant 0 : index
    %173 = vector.load %arg6[%c1_80, %c0_81, %c0_82] : memref<3x1x128xf32, #tpu.memory_space<vmem>>, vector<1x1x128xf32>
    %174 = vector.shape_cast %173 : vector<1x1x128xf32> to vector<1x128xf32>
    %c1_83 = arith.constant 1 : index
    %c0_84 = arith.constant 0 : index
    %c0_85 = arith.constant 0 : index
    %175 = vector.load %arg7[%c1_83, %c0_84, %c0_85] : memref<3x1x128xf32, #tpu.memory_space<vmem>>, vector<1x1x128xf32>
    %176 = vector.shape_cast %175 : vector<1x1x128xf32> to vector<1x128xf32>
    %c1_86 = arith.constant 1 : index
    %c0_87 = arith.constant 0 : index
    %c0_88 = arith.constant 0 : index
    %177 = vector.load %arg8[%c1_86, %c0_87, %c0_88] : memref<3x128x128xf32, #tpu.memory_space<vmem>>, vector<1x128x128xf32>
    %178 = vector.shape_cast %177 : vector<1x128x128xf32> to vector<128x128xf32>
    %c1_89 = arith.constant 1 : index
    %c0_90 = arith.constant 0 : index
    %c0_91 = arith.constant 0 : index
    %179 = vector.load %arg9[%c1_89, %c0_90, %c0_91] : memref<3x1x128xf32, #tpu.memory_space<vmem>>, vector<1x1x128xf32>
    %180 = vector.shape_cast %179 : vector<1x1x128xf32> to vector<1x128xf32>
    %c1_92 = arith.constant 1 : index
    %c0_93 = arith.constant 0 : index
    %c0_94 = arith.constant 0 : index
    %181 = vector.load %arg10[%c1_92, %c0_93, %c0_94] : memref<3x1x128xf32, #tpu.memory_space<vmem>>, vector<1x1x128xf32>
    %182 = vector.shape_cast %181 : vector<1x1x128xf32> to vector<1x128xf32>
    %c1_95 = arith.constant 1 : index
    %c0_96 = arith.constant 0 : index
    %c0_97 = arith.constant 0 : index
    %183 = vector.load %arg11[%c1_95, %c0_96, %c0_97] : memref<3x128x128xf32, #tpu.memory_space<vmem>>, vector<1x128x128xf32>
    %184 = vector.shape_cast %183 : vector<1x128x128xf32> to vector<128x128xf32>
    %c1_98 = arith.constant 1 : index
    %c0_99 = arith.constant 0 : index
    %c0_100 = arith.constant 0 : index
    %185 = vector.load %arg12[%c1_98, %c0_99, %c0_100] : memref<3x128x128xf32, #tpu.memory_space<vmem>>, vector<1x128x128xf32>
    %186 = vector.shape_cast %185 : vector<1x128x128xf32> to vector<128x128xf32>
    %c1_101 = arith.constant 1 : index
    %c0_102 = arith.constant 0 : index
    %c0_103 = arith.constant 0 : index
    %187 = vector.load %arg13[%c1_101, %c0_102, %c0_103] : memref<3x128x128xf32, #tpu.memory_space<vmem>>, vector<1x128x128xf32>
    %188 = vector.shape_cast %187 : vector<1x128x128xf32> to vector<128x128xf32>
    %cst_104 = arith.constant dense<0.000000e+00> : vector<32x128xf32>
    %189 = tpu.matmul %1, %170, %cst_104 {dimension_numbers = #tpu.dot_dimension_numbers<[1], [0], [0], [1], [0, 0, 1, 1], [], []>} : vector<32x16xf32>, vector<16x128xf32>, vector<32x128xf32> -> vector<32x128xf32>
    %cst_105 = arith.constant dense<0.000000e+00> : vector<32x128xf32>
    %190 = tpu.matmul %189, %172, %cst_105 {dimension_numbers = #tpu.dot_dimension_numbers<[1], [0], [0], [1], [0, 0, 1, 1], [], []>} : vector<32x128xf32>, vector<128x128xf32>, vector<32x128xf32> -> vector<32x128xf32>
    %191 = vector.broadcast %4 : vector<32x1xf32> to vector<32x128xf32>
    %192 = vector.broadcast %174 : vector<1x128xf32> to vector<32x128xf32>
    %193 = arith.mulf %191, %192 : vector<32x128xf32>
    %194 = arith.addf %190, %193 : vector<32x128xf32>
    %195 = vector.broadcast %176 : vector<1x128xf32> to vector<32x128xf32>
    %196 = arith.addf %194, %195 : vector<32x128xf32>
    %197 = vector.broadcast %182 : vector<1x128xf32> to vector<32x128xf32>
    %198 = arith.mulf %196, %197 : vector<32x128xf32>
    %cst_106 = arith.constant dense<0.000000e+00> : vector<32x128xf32>
    %199 = tpu.matmul %198, %184, %cst_106 {dimension_numbers = #tpu.dot_dimension_numbers<[1], [0], [0], [1], [0, 0, 1, 1], [], []>} : vector<32x128xf32>, vector<128x128xf32>, vector<32x128xf32> -> vector<32x128xf32>
    %cst_107 = arith.constant 0.000000e+00 : f32
    %200 = vector.broadcast %cst_107 : f32 to vector<32x128xf32>
    %201 = arith.cmpf ogt, %199, %200 : vector<32x128xf32>
    %cst_108 = arith.constant 2.000000e-01 : f32
    %202 = vector.broadcast %cst_108 : f32 to vector<32x128xf32>
    %203 = arith.mulf %202, %199 : vector<32x128xf32>
    %204 = arith.select %201, %199, %203 : vector<32x128xi1>, vector<32x128xf32>
    %cst_109 = arith.constant 0.000000e+00 : f32
    %205 = vector.broadcast %cst_109 : f32 to vector<32x128xf32>
    %206 = vector.extract_strided_slice %204 {offsets = [0, 0], sizes = [32, 1], strides = [1, 1]} : vector<32x128xf32> to vector<32x1xf32>
    %cst_110 = arith.constant 5.000000e-01 : f32
    %207 = vector.broadcast %cst_110 : f32 to vector<32x16xf32>
    %208 = arith.cmpf ogt, %3, %207 : vector<32x16xf32>
    %cst_111 = arith.constant -3.40282347E+38 : f32
    %209 = vector.shape_cast %206 : vector<32x1xf32> to vector<32x1xf32>
    %210 = vector.broadcast %209 : vector<32x1xf32> to vector<32x16xf32>
    %211 = vector.broadcast %cst_111 : f32 to vector<32x16xf32>
    %212 = arith.select %208, %210, %211 : vector<32x16xi1>, vector<32x16xf32>
    %cst_112 = arith.constant dense<0xFF800000> : vector<16xf32>
    %213 = vector.multi_reduction <maximumf>, %212, %cst_112 [0] : vector<32x16xf32> to vector<16xf32>
    %214 = vector.shape_cast %213 : vector<16xf32> to vector<1x16xf32>
    %cst_113 = arith.constant 5.000000e-01 : f32
    %215 = vector.broadcast %cst_113 : f32 to vector<32x16xf32>
    %216 = arith.cmpf ogt, %3, %215 : vector<32x16xf32>
    %cst_114 = arith.constant -3.40282347E+38 : f32
    %217 = vector.shape_cast %214 : vector<1x16xf32> to vector<1x16xf32>
    %218 = vector.broadcast %217 : vector<1x16xf32> to vector<32x16xf32>
    %219 = vector.broadcast %cst_114 : f32 to vector<32x16xf32>
    %220 = arith.select %216, %218, %219 : vector<32x16xi1>, vector<32x16xf32>
    %cst_115 = arith.constant dense<0xFF800000> : vector<32xf32>
    %221 = vector.multi_reduction <maximumf>, %220, %cst_115 [1] : vector<32x16xf32> to vector<32xf32>
    %222 = vector.shape_cast %221 : vector<32xf32> to vector<32x1xf32>
    %c0_i32_116 = arith.constant 0 : i32
    %223 = vector.broadcast %c0_i32_116 : i32 to vector<32x128xi32>
    %224 = arith.cmpi eq, %6, %223 : vector<32x128xi32>
    %225 = vector.shape_cast %222 : vector<32x1xf32> to vector<32x1xf32>
    %226 = vector.broadcast %225 : vector<32x1xf32> to vector<32x128xf32>
    %227 = arith.select %224, %226, %205 : vector<32x128xi1>, vector<32x128xf32>
    %228 = vector.extract_strided_slice %204 {offsets = [0, 1], sizes = [32, 1], strides = [1, 1]} : vector<32x128xf32> to vector<32x1xf32>
    %cst_117 = arith.constant 5.000000e-01 : f32
    %229 = vector.broadcast %cst_117 : f32 to vector<32x16xf32>
    %230 = arith.cmpf ogt, %3, %229 : vector<32x16xf32>
    %cst_118 = arith.constant -3.40282347E+38 : f32
    %231 = vector.shape_cast %228 : vector<32x1xf32> to vector<32x1xf32>
    %232 = vector.broadcast %231 : vector<32x1xf32> to vector<32x16xf32>
    %233 = vector.broadcast %cst_118 : f32 to vector<32x16xf32>
    %234 = arith.select %230, %232, %233 : vector<32x16xi1>, vector<32x16xf32>
    %cst_119 = arith.constant dense<0xFF800000> : vector<16xf32>
    %235 = vector.multi_reduction <maximumf>, %234, %cst_119 [0] : vector<32x16xf32> to vector<16xf32>
    %236 = vector.shape_cast %235 : vector<16xf32> to vector<1x16xf32>
    %cst_120 = arith.constant 5.000000e-01 : f32
    %237 = vector.broadcast %cst_120 : f32 to vector<32x16xf32>
    %238 = arith.cmpf ogt, %3, %237 : vector<32x16xf32>
    %cst_121 = arith.constant -3.40282347E+38 : f32
    %239 = vector.shape_cast %236 : vector<1x16xf32> to vector<1x16xf32>
    %240 = vector.broadcast %239 : vector<1x16xf32> to vector<32x16xf32>
    %241 = vector.broadcast %cst_121 : f32 to vector<32x16xf32>
    %242 = arith.select %238, %240, %241 : vector<32x16xi1>, vector<32x16xf32>
    %cst_122 = arith.constant dense<0xFF800000> : vector<32xf32>
    %243 = vector.multi_reduction <maximumf>, %242, %cst_122 [1] : vector<32x16xf32> to vector<32xf32>
    %244 = vector.shape_cast %243 : vector<32xf32> to vector<32x1xf32>
    %c1_i32_123 = arith.constant 1 : i32
    %245 = vector.broadcast %c1_i32_123 : i32 to vector<32x128xi32>
    %246 = arith.cmpi eq, %6, %245 : vector<32x128xi32>
    %247 = vector.shape_cast %244 : vector<32x1xf32> to vector<32x1xf32>
    %248 = vector.broadcast %247 : vector<32x1xf32> to vector<32x128xf32>
    %249 = arith.select %246, %248, %227 : vector<32x128xi1>, vector<32x128xf32>
    %250 = vector.extract_strided_slice %204 {offsets = [0, 2], sizes = [32, 1], strides = [1, 1]} : vector<32x128xf32> to vector<32x1xf32>
    %cst_124 = arith.constant 5.000000e-01 : f32
    %251 = vector.broadcast %cst_124 : f32 to vector<32x16xf32>
    %252 = arith.cmpf ogt, %3, %251 : vector<32x16xf32>
    %cst_125 = arith.constant -3.40282347E+38 : f32
    %253 = vector.shape_cast %250 : vector<32x1xf32> to vector<32x1xf32>
    %254 = vector.broadcast %253 : vector<32x1xf32> to vector<32x16xf32>
    %255 = vector.broadcast %cst_125 : f32 to vector<32x16xf32>
    %256 = arith.select %252, %254, %255 : vector<32x16xi1>, vector<32x16xf32>
    %cst_126 = arith.constant dense<0xFF800000> : vector<16xf32>
    %257 = vector.multi_reduction <maximumf>, %256, %cst_126 [0] : vector<32x16xf32> to vector<16xf32>
    %258 = vector.shape_cast %257 : vector<16xf32> to vector<1x16xf32>
    %cst_127 = arith.constant 5.000000e-01 : f32
    %259 = vector.broadcast %cst_127 : f32 to vector<32x16xf32>
    %260 = arith.cmpf ogt, %3, %259 : vector<32x16xf32>
    %cst_128 = arith.constant -3.40282347E+38 : f32
    %261 = vector.shape_cast %258 : vector<1x16xf32> to vector<1x16xf32>
    %262 = vector.broadcast %261 : vector<1x16xf32> to vector<32x16xf32>
    %263 = vector.broadcast %cst_128 : f32 to vector<32x16xf32>
    %264 = arith.select %260, %262, %263 : vector<32x16xi1>, vector<32x16xf32>
    %cst_129 = arith.constant dense<0xFF800000> : vector<32xf32>
    %265 = vector.multi_reduction <maximumf>, %264, %cst_129 [1] : vector<32x16xf32> to vector<32xf32>
    %266 = vector.shape_cast %265 : vector<32xf32> to vector<32x1xf32>
    %c2_i32_130 = arith.constant 2 : i32
    %267 = vector.broadcast %c2_i32_130 : i32 to vector<32x128xi32>
    %268 = arith.cmpi eq, %6, %267 : vector<32x128xi32>
    %269 = vector.shape_cast %266 : vector<32x1xf32> to vector<32x1xf32>
    %270 = vector.broadcast %269 : vector<32x1xf32> to vector<32x128xf32>
    %271 = arith.select %268, %270, %249 : vector<32x128xi1>, vector<32x128xf32>
    %272 = vector.extract_strided_slice %204 {offsets = [0, 3], sizes = [32, 1], strides = [1, 1]} : vector<32x128xf32> to vector<32x1xf32>
    %cst_131 = arith.constant 5.000000e-01 : f32
    %273 = vector.broadcast %cst_131 : f32 to vector<32x16xf32>
    %274 = arith.cmpf ogt, %3, %273 : vector<32x16xf32>
    %cst_132 = arith.constant -3.40282347E+38 : f32
    %275 = vector.shape_cast %272 : vector<32x1xf32> to vector<32x1xf32>
    %276 = vector.broadcast %275 : vector<32x1xf32> to vector<32x16xf32>
    %277 = vector.broadcast %cst_132 : f32 to vector<32x16xf32>
    %278 = arith.select %274, %276, %277 : vector<32x16xi1>, vector<32x16xf32>
    %cst_133 = arith.constant dense<0xFF800000> : vector<16xf32>
    %279 = vector.multi_reduction <maximumf>, %278, %cst_133 [0] : vector<32x16xf32> to vector<16xf32>
    %280 = vector.shape_cast %279 : vector<16xf32> to vector<1x16xf32>
    %cst_134 = arith.constant 5.000000e-01 : f32
    %281 = vector.broadcast %cst_134 : f32 to vector<32x16xf32>
    %282 = arith.cmpf ogt, %3, %281 : vector<32x16xf32>
    %cst_135 = arith.constant -3.40282347E+38 : f32
    %283 = vector.shape_cast %280 : vector<1x16xf32> to vector<1x16xf32>
    %284 = vector.broadcast %283 : vector<1x16xf32> to vector<32x16xf32>
    %285 = vector.broadcast %cst_135 : f32 to vector<32x16xf32>
    %286 = arith.select %282, %284, %285 : vector<32x16xi1>, vector<32x16xf32>
    %cst_136 = arith.constant dense<0xFF800000> : vector<32xf32>
    %287 = vector.multi_reduction <maximumf>, %286, %cst_136 [1] : vector<32x16xf32> to vector<32xf32>
    %288 = vector.shape_cast %287 : vector<32xf32> to vector<32x1xf32>
    %c3_i32_137 = arith.constant 3 : i32
    %289 = vector.broadcast %c3_i32_137 : i32 to vector<32x128xi32>
    %290 = arith.cmpi eq, %6, %289 : vector<32x128xi32>
    %291 = vector.shape_cast %288 : vector<32x1xf32> to vector<32x1xf32>
    %292 = vector.broadcast %291 : vector<32x1xf32> to vector<32x128xf32>
    %293 = arith.select %290, %292, %271 : vector<32x128xi1>, vector<32x128xf32>
    %294 = vector.extract_strided_slice %204 {offsets = [0, 4], sizes = [32, 1], strides = [1, 1]} : vector<32x128xf32> to vector<32x1xf32>
    %cst_138 = arith.constant 5.000000e-01 : f32
    %295 = vector.broadcast %cst_138 : f32 to vector<32x16xf32>
    %296 = arith.cmpf ogt, %3, %295 : vector<32x16xf32>
    %cst_139 = arith.constant -3.40282347E+38 : f32
    %297 = vector.shape_cast %294 : vector<32x1xf32> to vector<32x1xf32>
    %298 = vector.broadcast %297 : vector<32x1xf32> to vector<32x16xf32>
    %299 = vector.broadcast %cst_139 : f32 to vector<32x16xf32>
    %300 = arith.select %296, %298, %299 : vector<32x16xi1>, vector<32x16xf32>
    %cst_140 = arith.constant dense<0xFF800000> : vector<16xf32>
    %301 = vector.multi_reduction <maximumf>, %300, %cst_140 [0] : vector<32x16xf32> to vector<16xf32>
    %302 = vector.shape_cast %301 : vector<16xf32> to vector<1x16xf32>
    %cst_141 = arith.constant 5.000000e-01 : f32
    %303 = vector.broadcast %cst_141 : f32 to vector<32x16xf32>
    %304 = arith.cmpf ogt, %3, %303 : vector<32x16xf32>
    %cst_142 = arith.constant -3.40282347E+38 : f32
    %305 = vector.shape_cast %302 : vector<1x16xf32> to vector<1x16xf32>
    %306 = vector.broadcast %305 : vector<1x16xf32> to vector<32x16xf32>
    %307 = vector.broadcast %cst_142 : f32 to vector<32x16xf32>
    %308 = arith.select %304, %306, %307 : vector<32x16xi1>, vector<32x16xf32>
    %cst_143 = arith.constant dense<0xFF800000> : vector<32xf32>
    %309 = vector.multi_reduction <maximumf>, %308, %cst_143 [1] : vector<32x16xf32> to vector<32xf32>
    %310 = vector.shape_cast %309 : vector<32xf32> to vector<32x1xf32>
    %c4_i32_144 = arith.constant 4 : i32
    %311 = vector.broadcast %c4_i32_144 : i32 to vector<32x128xi32>
    %312 = arith.cmpi eq, %6, %311 : vector<32x128xi32>
    %313 = vector.shape_cast %310 : vector<32x1xf32> to vector<32x1xf32>
    %314 = vector.broadcast %313 : vector<32x1xf32> to vector<32x128xf32>
    %315 = arith.select %312, %314, %293 : vector<32x128xi1>, vector<32x128xf32>
    %316 = arith.subf %204, %315 : vector<32x128xf32>
    %317 = math.exp %316 : vector<32x128xf32>
    %cst_145 = arith.constant dense<0.000000e+00> : vector<16x128xf32>
    %318 = tpu.matmul %3, %317, %cst_145 {dimension_numbers = #tpu.dot_dimension_numbers<[0], [0], [1], [1], [0, 1, 1, 1], [], []>} : vector<32x16xf32>, vector<32x128xf32>, vector<16x128xf32> -> vector<16x128xf32>
    %cst_146 = arith.constant dense<0.000000e+00> : vector<32x128xf32>
    %319 = tpu.matmul %3, %318, %cst_146 {dimension_numbers = #tpu.dot_dimension_numbers<[1], [0], [0], [1], [0, 0, 1, 1], [], []>} : vector<32x16xf32>, vector<16x128xf32>, vector<32x128xf32> -> vector<32x128xf32>
    %cst_147 = arith.constant 1.000000e-16 : f32
    %320 = vector.broadcast %cst_147 : f32 to vector<32x128xf32>
    %321 = arith.addf %319, %320 : vector<32x128xf32>
    %322 = arith.divf %317, %321 : vector<32x128xf32>
    %cst_148 = arith.constant dense<0.000000e+00> : vector<32x128xf32>
    %323 = tpu.matmul %322, %186, %cst_148 {dimension_numbers = #tpu.dot_dimension_numbers<[1], [0], [0], [1], [0, 0, 1, 1], [], []>} : vector<32x128xf32>, vector<128x128xf32>, vector<32x128xf32> -> vector<32x128xf32>
    %324 = arith.mulf %196, %323 : vector<32x128xf32>
    %cst_149 = arith.constant dense<0.000000e+00> : vector<16x128xf32>
    %325 = tpu.matmul %3, %324, %cst_149 {dimension_numbers = #tpu.dot_dimension_numbers<[0], [0], [1], [1], [0, 1, 1, 1], [], []>} : vector<32x16xf32>, vector<32x128xf32>, vector<16x128xf32> -> vector<16x128xf32>
    %cst_150 = arith.constant dense<0.000000e+00> : vector<16x128xf32>
    %326 = tpu.matmul %325, %188, %cst_150 {dimension_numbers = #tpu.dot_dimension_numbers<[1], [0], [0], [1], [0, 0, 1, 1], [], []>} : vector<16x128xf32>, vector<128x128xf32>, vector<16x128xf32> -> vector<16x128xf32>
    %cst_151 = arith.constant 2.000000e-01 : f32
    %327 = vector.broadcast %cst_151 : f32 to vector<16x128xf32>
    %328 = arith.mulf %326, %327 : vector<16x128xf32>
    %cst_152 = arith.constant dense<0.000000e+00> : vector<16x128xf32>
    %329 = tpu.matmul %170, %178, %cst_152 {dimension_numbers = #tpu.dot_dimension_numbers<[1], [0], [0], [1], [0, 0, 1, 1], [], []>} : vector<16x128xf32>, vector<128x128xf32>, vector<16x128xf32> -> vector<16x128xf32>
    %330 = arith.addf %328, %329 : vector<16x128xf32>
    %331 = vector.broadcast %180 : vector<1x128xf32> to vector<16x128xf32>
    %332 = arith.addf %330, %331 : vector<16x128xf32>
    %cst_153 = arith.constant 0.000000e+00 : f32
    %333 = vector.broadcast %cst_153 : f32 to vector<16x128xf32>
    %334 = arith.maximumf %332, %333 : vector<16x128xf32>
    %c2 = arith.constant 2 : index
    %c0_154 = arith.constant 0 : index
    %c0_155 = arith.constant 0 : index
    %335 = vector.load %arg5[%c2, %c0_154, %c0_155] : memref<3x128x128xf32, #tpu.memory_space<vmem>>, vector<1x128x128xf32>
    %336 = vector.shape_cast %335 : vector<1x128x128xf32> to vector<128x128xf32>
    %c2_156 = arith.constant 2 : index
    %c0_157 = arith.constant 0 : index
    %c0_158 = arith.constant 0 : index
    %337 = vector.load %arg6[%c2_156, %c0_157, %c0_158] : memref<3x1x128xf32, #tpu.memory_space<vmem>>, vector<1x1x128xf32>
    %338 = vector.shape_cast %337 : vector<1x1x128xf32> to vector<1x128xf32>
    %c2_159 = arith.constant 2 : index
    %c0_160 = arith.constant 0 : index
    %c0_161 = arith.constant 0 : index
    %339 = vector.load %arg7[%c2_159, %c0_160, %c0_161] : memref<3x1x128xf32, #tpu.memory_space<vmem>>, vector<1x1x128xf32>
    %340 = vector.shape_cast %339 : vector<1x1x128xf32> to vector<1x128xf32>
    %c2_162 = arith.constant 2 : index
    %c0_163 = arith.constant 0 : index
    %c0_164 = arith.constant 0 : index
    %341 = vector.load %arg8[%c2_162, %c0_163, %c0_164] : memref<3x128x128xf32, #tpu.memory_space<vmem>>, vector<1x128x128xf32>
    %342 = vector.shape_cast %341 : vector<1x128x128xf32> to vector<128x128xf32>
    %c2_165 = arith.constant 2 : index
    %c0_166 = arith.constant 0 : index
    %c0_167 = arith.constant 0 : index
    %343 = vector.load %arg9[%c2_165, %c0_166, %c0_167] : memref<3x1x128xf32, #tpu.memory_space<vmem>>, vector<1x1x128xf32>
    %344 = vector.shape_cast %343 : vector<1x1x128xf32> to vector<1x128xf32>
    %c2_168 = arith.constant 2 : index
    %c0_169 = arith.constant 0 : index
    %c0_170 = arith.constant 0 : index
    %345 = vector.load %arg10[%c2_168, %c0_169, %c0_170] : memref<3x1x128xf32, #tpu.memory_space<vmem>>, vector<1x1x128xf32>
    %346 = vector.shape_cast %345 : vector<1x1x128xf32> to vector<1x128xf32>
    %c2_171 = arith.constant 2 : index
    %c0_172 = arith.constant 0 : index
    %c0_173 = arith.constant 0 : index
    %347 = vector.load %arg11[%c2_171, %c0_172, %c0_173] : memref<3x128x128xf32, #tpu.memory_space<vmem>>, vector<1x128x128xf32>
    %348 = vector.shape_cast %347 : vector<1x128x128xf32> to vector<128x128xf32>
    %c2_174 = arith.constant 2 : index
    %c0_175 = arith.constant 0 : index
    %c0_176 = arith.constant 0 : index
    %349 = vector.load %arg12[%c2_174, %c0_175, %c0_176] : memref<3x128x128xf32, #tpu.memory_space<vmem>>, vector<1x128x128xf32>
    %350 = vector.shape_cast %349 : vector<1x128x128xf32> to vector<128x128xf32>
    %c2_177 = arith.constant 2 : index
    %c0_178 = arith.constant 0 : index
    %c0_179 = arith.constant 0 : index
    %351 = vector.load %arg13[%c2_177, %c0_178, %c0_179] : memref<3x128x128xf32, #tpu.memory_space<vmem>>, vector<1x128x128xf32>
    %352 = vector.shape_cast %351 : vector<1x128x128xf32> to vector<128x128xf32>
    %cst_180 = arith.constant dense<0.000000e+00> : vector<32x128xf32>
    %353 = tpu.matmul %1, %334, %cst_180 {dimension_numbers = #tpu.dot_dimension_numbers<[1], [0], [0], [1], [0, 0, 1, 1], [], []>} : vector<32x16xf32>, vector<16x128xf32>, vector<32x128xf32> -> vector<32x128xf32>
    %cst_181 = arith.constant dense<0.000000e+00> : vector<32x128xf32>
    %354 = tpu.matmul %353, %336, %cst_181 {dimension_numbers = #tpu.dot_dimension_numbers<[1], [0], [0], [1], [0, 0, 1, 1], [], []>} : vector<32x128xf32>, vector<128x128xf32>, vector<32x128xf32> -> vector<32x128xf32>
    %355 = vector.broadcast %4 : vector<32x1xf32> to vector<32x128xf32>
    %356 = vector.broadcast %338 : vector<1x128xf32> to vector<32x128xf32>
    %357 = arith.mulf %355, %356 : vector<32x128xf32>
    %358 = arith.addf %354, %357 : vector<32x128xf32>
    %359 = vector.broadcast %340 : vector<1x128xf32> to vector<32x128xf32>
    %360 = arith.addf %358, %359 : vector<32x128xf32>
    %361 = vector.broadcast %346 : vector<1x128xf32> to vector<32x128xf32>
    %362 = arith.mulf %360, %361 : vector<32x128xf32>
    %cst_182 = arith.constant dense<0.000000e+00> : vector<32x128xf32>
    %363 = tpu.matmul %362, %348, %cst_182 {dimension_numbers = #tpu.dot_dimension_numbers<[1], [0], [0], [1], [0, 0, 1, 1], [], []>} : vector<32x128xf32>, vector<128x128xf32>, vector<32x128xf32> -> vector<32x128xf32>
    %cst_183 = arith.constant 0.000000e+00 : f32
    %364 = vector.broadcast %cst_183 : f32 to vector<32x128xf32>
    %365 = arith.cmpf ogt, %363, %364 : vector<32x128xf32>
    %cst_184 = arith.constant 2.000000e-01 : f32
    %366 = vector.broadcast %cst_184 : f32 to vector<32x128xf32>
    %367 = arith.mulf %366, %363 : vector<32x128xf32>
    %368 = arith.select %365, %363, %367 : vector<32x128xi1>, vector<32x128xf32>
    %cst_185 = arith.constant 0.000000e+00 : f32
    %369 = vector.broadcast %cst_185 : f32 to vector<32x128xf32>
    %370 = vector.extract_strided_slice %368 {offsets = [0, 0], sizes = [32, 1], strides = [1, 1]} : vector<32x128xf32> to vector<32x1xf32>
    %cst_186 = arith.constant 5.000000e-01 : f32
    %371 = vector.broadcast %cst_186 : f32 to vector<32x16xf32>
    %372 = arith.cmpf ogt, %3, %371 : vector<32x16xf32>
    %cst_187 = arith.constant -3.40282347E+38 : f32
    %373 = vector.shape_cast %370 : vector<32x1xf32> to vector<32x1xf32>
    %374 = vector.broadcast %373 : vector<32x1xf32> to vector<32x16xf32>
    %375 = vector.broadcast %cst_187 : f32 to vector<32x16xf32>
    %376 = arith.select %372, %374, %375 : vector<32x16xi1>, vector<32x16xf32>
    %cst_188 = arith.constant dense<0xFF800000> : vector<16xf32>
    %377 = vector.multi_reduction <maximumf>, %376, %cst_188 [0] : vector<32x16xf32> to vector<16xf32>
    %378 = vector.shape_cast %377 : vector<16xf32> to vector<1x16xf32>
    %cst_189 = arith.constant 5.000000e-01 : f32
    %379 = vector.broadcast %cst_189 : f32 to vector<32x16xf32>
    %380 = arith.cmpf ogt, %3, %379 : vector<32x16xf32>
    %cst_190 = arith.constant -3.40282347E+38 : f32
    %381 = vector.shape_cast %378 : vector<1x16xf32> to vector<1x16xf32>
    %382 = vector.broadcast %381 : vector<1x16xf32> to vector<32x16xf32>
    %383 = vector.broadcast %cst_190 : f32 to vector<32x16xf32>
    %384 = arith.select %380, %382, %383 : vector<32x16xi1>, vector<32x16xf32>
    %cst_191 = arith.constant dense<0xFF800000> : vector<32xf32>
    %385 = vector.multi_reduction <maximumf>, %384, %cst_191 [1] : vector<32x16xf32> to vector<32xf32>
    %386 = vector.shape_cast %385 : vector<32xf32> to vector<32x1xf32>
    %c0_i32_192 = arith.constant 0 : i32
    %387 = vector.broadcast %c0_i32_192 : i32 to vector<32x128xi32>
    %388 = arith.cmpi eq, %6, %387 : vector<32x128xi32>
    %389 = vector.shape_cast %386 : vector<32x1xf32> to vector<32x1xf32>
    %390 = vector.broadcast %389 : vector<32x1xf32> to vector<32x128xf32>
    %391 = arith.select %388, %390, %369 : vector<32x128xi1>, vector<32x128xf32>
    %392 = vector.extract_strided_slice %368 {offsets = [0, 1], sizes = [32, 1], strides = [1, 1]} : vector<32x128xf32> to vector<32x1xf32>
    %cst_193 = arith.constant 5.000000e-01 : f32
    %393 = vector.broadcast %cst_193 : f32 to vector<32x16xf32>
    %394 = arith.cmpf ogt, %3, %393 : vector<32x16xf32>
    %cst_194 = arith.constant -3.40282347E+38 : f32
    %395 = vector.shape_cast %392 : vector<32x1xf32> to vector<32x1xf32>
    %396 = vector.broadcast %395 : vector<32x1xf32> to vector<32x16xf32>
    %397 = vector.broadcast %cst_194 : f32 to vector<32x16xf32>
    %398 = arith.select %394, %396, %397 : vector<32x16xi1>, vector<32x16xf32>
    %cst_195 = arith.constant dense<0xFF800000> : vector<16xf32>
    %399 = vector.multi_reduction <maximumf>, %398, %cst_195 [0] : vector<32x16xf32> to vector<16xf32>
    %400 = vector.shape_cast %399 : vector<16xf32> to vector<1x16xf32>
    %cst_196 = arith.constant 5.000000e-01 : f32
    %401 = vector.broadcast %cst_196 : f32 to vector<32x16xf32>
    %402 = arith.cmpf ogt, %3, %401 : vector<32x16xf32>
    %cst_197 = arith.constant -3.40282347E+38 : f32
    %403 = vector.shape_cast %400 : vector<1x16xf32> to vector<1x16xf32>
    %404 = vector.broadcast %403 : vector<1x16xf32> to vector<32x16xf32>
    %405 = vector.broadcast %cst_197 : f32 to vector<32x16xf32>
    %406 = arith.select %402, %404, %405 : vector<32x16xi1>, vector<32x16xf32>
    %cst_198 = arith.constant dense<0xFF800000> : vector<32xf32>
    %407 = vector.multi_reduction <maximumf>, %406, %cst_198 [1] : vector<32x16xf32> to vector<32xf32>
    %408 = vector.shape_cast %407 : vector<32xf32> to vector<32x1xf32>
    %c1_i32_199 = arith.constant 1 : i32
    %409 = vector.broadcast %c1_i32_199 : i32 to vector<32x128xi32>
    %410 = arith.cmpi eq, %6, %409 : vector<32x128xi32>
    %411 = vector.shape_cast %408 : vector<32x1xf32> to vector<32x1xf32>
    %412 = vector.broadcast %411 : vector<32x1xf32> to vector<32x128xf32>
    %413 = arith.select %410, %412, %391 : vector<32x128xi1>, vector<32x128xf32>
    %414 = vector.extract_strided_slice %368 {offsets = [0, 2], sizes = [32, 1], strides = [1, 1]} : vector<32x128xf32> to vector<32x1xf32>
    %cst_200 = arith.constant 5.000000e-01 : f32
    %415 = vector.broadcast %cst_200 : f32 to vector<32x16xf32>
    %416 = arith.cmpf ogt, %3, %415 : vector<32x16xf32>
    %cst_201 = arith.constant -3.40282347E+38 : f32
    %417 = vector.shape_cast %414 : vector<32x1xf32> to vector<32x1xf32>
    %418 = vector.broadcast %417 : vector<32x1xf32> to vector<32x16xf32>
    %419 = vector.broadcast %cst_201 : f32 to vector<32x16xf32>
    %420 = arith.select %416, %418, %419 : vector<32x16xi1>, vector<32x16xf32>
    %cst_202 = arith.constant dense<0xFF800000> : vector<16xf32>
    %421 = vector.multi_reduction <maximumf>, %420, %cst_202 [0] : vector<32x16xf32> to vector<16xf32>
    %422 = vector.shape_cast %421 : vector<16xf32> to vector<1x16xf32>
    %cst_203 = arith.constant 5.000000e-01 : f32
    %423 = vector.broadcast %cst_203 : f32 to vector<32x16xf32>
    %424 = arith.cmpf ogt, %3, %423 : vector<32x16xf32>
    %cst_204 = arith.constant -3.40282347E+38 : f32
    %425 = vector.shape_cast %422 : vector<1x16xf32> to vector<1x16xf32>
    %426 = vector.broadcast %425 : vector<1x16xf32> to vector<32x16xf32>
    %427 = vector.broadcast %cst_204 : f32 to vector<32x16xf32>
    %428 = arith.select %424, %426, %427 : vector<32x16xi1>, vector<32x16xf32>
    %cst_205 = arith.constant dense<0xFF800000> : vector<32xf32>
    %429 = vector.multi_reduction <maximumf>, %428, %cst_205 [1] : vector<32x16xf32> to vector<32xf32>
    %430 = vector.shape_cast %429 : vector<32xf32> to vector<32x1xf32>
    %c2_i32_206 = arith.constant 2 : i32
    %431 = vector.broadcast %c2_i32_206 : i32 to vector<32x128xi32>
    %432 = arith.cmpi eq, %6, %431 : vector<32x128xi32>
    %433 = vector.shape_cast %430 : vector<32x1xf32> to vector<32x1xf32>
    %434 = vector.broadcast %433 : vector<32x1xf32> to vector<32x128xf32>
    %435 = arith.select %432, %434, %413 : vector<32x128xi1>, vector<32x128xf32>
    %436 = vector.extract_strided_slice %368 {offsets = [0, 3], sizes = [32, 1], strides = [1, 1]} : vector<32x128xf32> to vector<32x1xf32>
    %cst_207 = arith.constant 5.000000e-01 : f32
    %437 = vector.broadcast %cst_207 : f32 to vector<32x16xf32>
    %438 = arith.cmpf ogt, %3, %437 : vector<32x16xf32>
    %cst_208 = arith.constant -3.40282347E+38 : f32
    %439 = vector.shape_cast %436 : vector<32x1xf32> to vector<32x1xf32>
    %440 = vector.broadcast %439 : vector<32x1xf32> to vector<32x16xf32>
    %441 = vector.broadcast %cst_208 : f32 to vector<32x16xf32>
    %442 = arith.select %438, %440, %441 : vector<32x16xi1>, vector<32x16xf32>
    %cst_209 = arith.constant dense<0xFF800000> : vector<16xf32>
    %443 = vector.multi_reduction <maximumf>, %442, %cst_209 [0] : vector<32x16xf32> to vector<16xf32>
    %444 = vector.shape_cast %443 : vector<16xf32> to vector<1x16xf32>
    %cst_210 = arith.constant 5.000000e-01 : f32
    %445 = vector.broadcast %cst_210 : f32 to vector<32x16xf32>
    %446 = arith.cmpf ogt, %3, %445 : vector<32x16xf32>
    %cst_211 = arith.constant -3.40282347E+38 : f32
    %447 = vector.shape_cast %444 : vector<1x16xf32> to vector<1x16xf32>
    %448 = vector.broadcast %447 : vector<1x16xf32> to vector<32x16xf32>
    %449 = vector.broadcast %cst_211 : f32 to vector<32x16xf32>
    %450 = arith.select %446, %448, %449 : vector<32x16xi1>, vector<32x16xf32>
    %cst_212 = arith.constant dense<0xFF800000> : vector<32xf32>
    %451 = vector.multi_reduction <maximumf>, %450, %cst_212 [1] : vector<32x16xf32> to vector<32xf32>
    %452 = vector.shape_cast %451 : vector<32xf32> to vector<32x1xf32>
    %c3_i32_213 = arith.constant 3 : i32
    %453 = vector.broadcast %c3_i32_213 : i32 to vector<32x128xi32>
    %454 = arith.cmpi eq, %6, %453 : vector<32x128xi32>
    %455 = vector.shape_cast %452 : vector<32x1xf32> to vector<32x1xf32>
    %456 = vector.broadcast %455 : vector<32x1xf32> to vector<32x128xf32>
    %457 = arith.select %454, %456, %435 : vector<32x128xi1>, vector<32x128xf32>
    %458 = vector.extract_strided_slice %368 {offsets = [0, 4], sizes = [32, 1], strides = [1, 1]} : vector<32x128xf32> to vector<32x1xf32>
    %cst_214 = arith.constant 5.000000e-01 : f32
    %459 = vector.broadcast %cst_214 : f32 to vector<32x16xf32>
    %460 = arith.cmpf ogt, %3, %459 : vector<32x16xf32>
    %cst_215 = arith.constant -3.40282347E+38 : f32
    %461 = vector.shape_cast %458 : vector<32x1xf32> to vector<32x1xf32>
    %462 = vector.broadcast %461 : vector<32x1xf32> to vector<32x16xf32>
    %463 = vector.broadcast %cst_215 : f32 to vector<32x16xf32>
    %464 = arith.select %460, %462, %463 : vector<32x16xi1>, vector<32x16xf32>
    %cst_216 = arith.constant dense<0xFF800000> : vector<16xf32>
    %465 = vector.multi_reduction <maximumf>, %464, %cst_216 [0] : vector<32x16xf32> to vector<16xf32>
    %466 = vector.shape_cast %465 : vector<16xf32> to vector<1x16xf32>
    %cst_217 = arith.constant 5.000000e-01 : f32
    %467 = vector.broadcast %cst_217 : f32 to vector<32x16xf32>
    %468 = arith.cmpf ogt, %3, %467 : vector<32x16xf32>
    %cst_218 = arith.constant -3.40282347E+38 : f32
    %469 = vector.shape_cast %466 : vector<1x16xf32> to vector<1x16xf32>
    %470 = vector.broadcast %469 : vector<1x16xf32> to vector<32x16xf32>
    %471 = vector.broadcast %cst_218 : f32 to vector<32x16xf32>
    %472 = arith.select %468, %470, %471 : vector<32x16xi1>, vector<32x16xf32>
    %cst_219 = arith.constant dense<0xFF800000> : vector<32xf32>
    %473 = vector.multi_reduction <maximumf>, %472, %cst_219 [1] : vector<32x16xf32> to vector<32xf32>
    %474 = vector.shape_cast %473 : vector<32xf32> to vector<32x1xf32>
    %c4_i32_220 = arith.constant 4 : i32
    %475 = vector.broadcast %c4_i32_220 : i32 to vector<32x128xi32>
    %476 = arith.cmpi eq, %6, %475 : vector<32x128xi32>
    %477 = vector.shape_cast %474 : vector<32x1xf32> to vector<32x1xf32>
    %478 = vector.broadcast %477 : vector<32x1xf32> to vector<32x128xf32>
    %479 = arith.select %476, %478, %457 : vector<32x128xi1>, vector<32x128xf32>
    %480 = arith.subf %368, %479 : vector<32x128xf32>
    %481 = math.exp %480 : vector<32x128xf32>
    %cst_221 = arith.constant dense<0.000000e+00> : vector<16x128xf32>
    %482 = tpu.matmul %3, %481, %cst_221 {dimension_numbers = #tpu.dot_dimension_numbers<[0], [0], [1], [1], [0, 1, 1, 1], [], []>} : vector<32x16xf32>, vector<32x128xf32>, vector<16x128xf32> -> vector<16x128xf32>
    %cst_222 = arith.constant dense<0.000000e+00> : vector<32x128xf32>
    %483 = tpu.matmul %3, %482, %cst_222 {dimension_numbers = #tpu.dot_dimension_numbers<[1], [0], [0], [1], [0, 0, 1, 1], [], []>} : vector<32x16xf32>, vector<16x128xf32>, vector<32x128xf32> -> vector<32x128xf32>
    %cst_223 = arith.constant 1.000000e-16 : f32
    %484 = vector.broadcast %cst_223 : f32 to vector<32x128xf32>
    %485 = arith.addf %483, %484 : vector<32x128xf32>
    %486 = arith.divf %481, %485 : vector<32x128xf32>
    %cst_224 = arith.constant dense<0.000000e+00> : vector<32x128xf32>
    %487 = tpu.matmul %486, %350, %cst_224 {dimension_numbers = #tpu.dot_dimension_numbers<[1], [0], [0], [1], [0, 0, 1, 1], [], []>} : vector<32x128xf32>, vector<128x128xf32>, vector<32x128xf32> -> vector<32x128xf32>
    %488 = arith.mulf %360, %487 : vector<32x128xf32>
    %cst_225 = arith.constant dense<0.000000e+00> : vector<16x128xf32>
    %489 = tpu.matmul %3, %488, %cst_225 {dimension_numbers = #tpu.dot_dimension_numbers<[0], [0], [1], [1], [0, 1, 1, 1], [], []>} : vector<32x16xf32>, vector<32x128xf32>, vector<16x128xf32> -> vector<16x128xf32>
    %cst_226 = arith.constant dense<0.000000e+00> : vector<16x128xf32>
    %490 = tpu.matmul %489, %352, %cst_226 {dimension_numbers = #tpu.dot_dimension_numbers<[1], [0], [0], [1], [0, 0, 1, 1], [], []>} : vector<16x128xf32>, vector<128x128xf32>, vector<16x128xf32> -> vector<16x128xf32>
    %cst_227 = arith.constant 2.000000e-01 : f32
    %491 = vector.broadcast %cst_227 : f32 to vector<16x128xf32>
    %492 = arith.mulf %490, %491 : vector<16x128xf32>
    %cst_228 = arith.constant dense<0.000000e+00> : vector<16x128xf32>
    %493 = tpu.matmul %334, %342, %cst_228 {dimension_numbers = #tpu.dot_dimension_numbers<[1], [0], [0], [1], [0, 0, 1, 1], [], []>} : vector<16x128xf32>, vector<128x128xf32>, vector<16x128xf32> -> vector<16x128xf32>
    %494 = arith.addf %492, %493 : vector<16x128xf32>
    %495 = vector.broadcast %344 : vector<1x128xf32> to vector<16x128xf32>
    %496 = arith.addf %494, %495 : vector<16x128xf32>
    %cst_229 = arith.constant 0.000000e+00 : f32
    %497 = vector.broadcast %cst_229 : f32 to vector<16x128xf32>
    %498 = arith.maximumf %496, %497 : vector<16x128xf32>
    %c0_230 = arith.constant 0 : index
    %c0_231 = arith.constant 0 : index
    %499 = vector.load %arg4[%c0_230, %c0_231] : memref<16x2xf32, #tpu.memory_space<vmem>>, vector<16x2xf32>
    %500 = tpu.iota {dimensions = array<i32: 0>} : vector<2x128xi32>
    %cst_232 = arith.constant 0.000000e+00 : f32
    %501 = vector.broadcast %cst_232 : f32 to vector<2x128xf32>
    %502 = vector.extract_strided_slice %499 {offsets = [0, 0], sizes = [16, 1], strides = [1, 1]} : vector<16x2xf32> to vector<16x1xf32>
    %cst_233 = arith.constant 5.000000e-01 : f32
    %503 = vector.broadcast %cst_233 : f32 to vector<16x1xf32>
    %504 = arith.cmpf ogt, %502, %503 : vector<16x1xf32>
    %cst_234 = arith.constant -3.40282347E+38 : f32
    %505 = vector.shape_cast %504 : vector<16x1xi1> to vector<16x1xi1>
    %506 = vector.broadcast %505 : vector<16x1xi1> to vector<16x128xi1>
    %507 = vector.broadcast %cst_234 : f32 to vector<16x128xf32>
    %508 = arith.select %506, %498, %507 : vector<16x128xi1>, vector<16x128xf32>
    %cst_235 = arith.constant dense<0xFF800000> : vector<128xf32>
    %509 = vector.multi_reduction <maximumf>, %508, %cst_235 [0] : vector<16x128xf32> to vector<128xf32>
    %510 = vector.shape_cast %509 : vector<128xf32> to vector<1x128xf32>
    %c0_i32_236 = arith.constant 0 : i32
    %511 = vector.broadcast %c0_i32_236 : i32 to vector<2x128xi32>
    %512 = arith.cmpi eq, %500, %511 : vector<2x128xi32>
    %513 = vector.shape_cast %510 : vector<1x128xf32> to vector<1x128xf32>
    %514 = vector.broadcast %513 : vector<1x128xf32> to vector<2x128xf32>
    %515 = arith.select %512, %514, %501 : vector<2x128xi1>, vector<2x128xf32>
    %516 = vector.extract_strided_slice %499 {offsets = [0, 1], sizes = [16, 1], strides = [1, 1]} : vector<16x2xf32> to vector<16x1xf32>
    %cst_237 = arith.constant 5.000000e-01 : f32
    %517 = vector.broadcast %cst_237 : f32 to vector<16x1xf32>
    %518 = arith.cmpf ogt, %516, %517 : vector<16x1xf32>
    %cst_238 = arith.constant -3.40282347E+38 : f32
    %519 = vector.shape_cast %518 : vector<16x1xi1> to vector<16x1xi1>
    %520 = vector.broadcast %519 : vector<16x1xi1> to vector<16x128xi1>
    %521 = vector.broadcast %cst_238 : f32 to vector<16x128xf32>
    %522 = arith.select %520, %498, %521 : vector<16x128xi1>, vector<16x128xf32>
    %cst_239 = arith.constant dense<0xFF800000> : vector<128xf32>
    %523 = vector.multi_reduction <maximumf>, %522, %cst_239 [0] : vector<16x128xf32> to vector<128xf32>
    %524 = vector.shape_cast %523 : vector<128xf32> to vector<1x128xf32>
    %c1_i32_240 = arith.constant 1 : i32
    %525 = vector.broadcast %c1_i32_240 : i32 to vector<2x128xi32>
    %526 = arith.cmpi eq, %500, %525 : vector<2x128xi32>
    %527 = vector.shape_cast %524 : vector<1x128xf32> to vector<1x128xf32>
    %528 = vector.broadcast %527 : vector<1x128xf32> to vector<2x128xf32>
    %529 = arith.select %526, %528, %515 : vector<2x128xi1>, vector<2x128xf32>
    %c0_241 = arith.constant 0 : index
    %c0_242 = arith.constant 0 : index
    %530 = vector.load %arg14[%c0_241, %c0_242] : memref<128x128xf32, #tpu.memory_space<vmem>>, vector<128x128xf32>
    %cst_243 = arith.constant dense<0.000000e+00> : vector<2x128xf32>
    %531 = tpu.matmul %529, %530, %cst_243 {dimension_numbers = #tpu.dot_dimension_numbers<[1], [0], [0], [1], [0, 0, 1, 1], [], []>} : vector<2x128xf32>, vector<128x128xf32>, vector<2x128xf32> -> vector<2x128xf32>
    %c0_244 = arith.constant 0 : index
    %c0_245 = arith.constant 0 : index
    %532 = vector.load %arg15[%c0_244, %c0_245] : memref<1x128xf32, #tpu.memory_space<vmem>>, vector<1x128xf32>
    %533 = vector.broadcast %532 : vector<1x128xf32> to vector<2x128xf32>
    %534 = arith.addf %531, %533 : vector<2x128xf32>
    %c0_246 = arith.constant 0 : index
    %c0_247 = arith.constant 0 : index
    %535 = vector.load %arg16[%c0_246, %c0_247] : memref<2x128xf32, #tpu.memory_space<vmem>>, vector<2x128xf32>
    tpu.vector_store %arg16[%c0_246, %c0_247], %534 {strides = array<i32>} : memref<2x128xf32, #tpu.memory_space<vmem>>, vector<2x128xf32>,
    return
  }
}

</mosaic_0001>

<llo_original>
// kernel: tpu_custom_call.1
$region0: #{tpu_custom_call.1}
  #allocation0 [shape = 'u32[]', space=smem, size = 0x4, offset = 0x4, fixed_abs, tag = 'smem constant byte address 0x4 - core index']
  #allocation1 [shape = 'u32[72,128]{1,0:T(1,128)}', space=vmem, size = 0x9000, scoped, tag = 'internal scratch']
  %s0 = inlined_call_operand.vmem [shape: f32[16,128], index: 0, kind: input, shape index: {}]
  %s1 = inlined_call_operand.vmem [shape: bf16[32,16], index: 1, kind: input, shape index: {}]
  %s2 = inlined_call_operand.vmem [shape: bf16[32,16], index: 2, kind: input, shape index: {}]
  %s3 = inlined_call_operand.vmem [shape: f32[32,1], index: 3, kind: input, shape index: {}]
  %s4 = inlined_call_operand.vmem [shape: f32[16,2], index: 4, kind: input, shape index: {}]
  %s5 = inlined_call_operand.hbm [shape: f32[3,128,128], index: 5, kind: input, shape index: {}]
  %s6 = inlined_call_operand.vmem [shape: f32[3,1,128], index: 6, kind: input, shape index: {}]
  %s7 = inlined_call_operand.vmem [shape: f32[3,1,128], index: 7, kind: input, shape index: {}]
  %s8 = inlined_call_operand.hbm [shape: f32[3,128,128], index: 8, kind: input, shape index: {}]
  %s9 = inlined_call_operand.vmem [shape: f32[3,1,128], index: 9, kind: input, shape index: {}]
  %s10 = inlined_call_operand.vmem [shape: f32[3,1,128], index: 10, kind: input, shape index: {}]
  %s11 = inlined_call_operand.hbm [shape: f32[3,128,128], index: 11, kind: input, shape index: {}]
  %s12 = inlined_call_operand.hbm [shape: f32[3,128,128], index: 12, kind: input, shape index: {}]
  %s13 = inlined_call_operand.hbm [shape: f32[3,128,128], index: 13, kind: input, shape index: {}]
  %s14 = inlined_call_operand.hbm [shape: f32[128,128], index: 14, kind: input, shape index: {}]
  %s15 = inlined_call_operand.vmem [shape: f32[1,128], index: 15, kind: input, shape index: {}]
  %s16 = inlined_call_operand.hbm [shape: f32[2,128], index: 16, kind: output, shape index: {}]
  %s17 = sld [smem:[#allocation0]]
  $region98: #{tpu_custom_call.1} parent=0
    _
  %s19 = ssub.s32 1, %s17
  %s20 = scalar_select 0, %s19, %s17
  $region1: #{tpu_custom_call.1} parent=0
    #allocation2 [shape = 'u8[196608]{0}', space=vmem, size = 0x30000, scoped, tag = 'input window, operand 5, single buffered']
    #allocation3 [shape = 's32[1]{0}', space=sflag, size = 0x4, scoped, tag = 'scoped memory for tpu_custom_call.1']
    #allocation4 [shape = 's32[1]{0}', space=sflag, size = 0x4, scoped, tag = 'scoped memory for tpu_custom_call.1']
    #allocation5 [shape = 'u8[196608]{0}', space=vmem, size = 0x30000, scoped, tag = 'input window, operand 8, single buffered']
    #allocation6 [shape = 's32[1]{0}', space=sflag, size = 0x4, scoped, tag = 'scoped memory for tpu_custom_call.1']
    #allocation7 [shape = 'u8[196608]{0}', space=vmem, size = 0x30000, scoped, tag = 'input window, operand 11, single buffered']
    #allocation8 [shape = 'u8[196608]{0}', space=vmem, size = 0x30000, scoped, tag = 'input window, operand 12, single buffered']
    #allocation9 [shape = 's32[1]{0}', space=sflag, size = 0x4, scoped, tag = 'scoped memory for tpu_custom_call.1']
    #allocation10 [shape = 'u8[196608]{0}', space=vmem, size = 0x30000, scoped, tag = 'input window, operand 13, single buffered']
    #allocation11 [shape = 'u8[65536]{0}', space=vmem, size = 0x10000, scoped, tag = 'input window, operand 14, single buffered']
    #allocation12 [shape = 's32[1]{0}', space=sflag, size = 0x4, scoped, tag = 'scoped memory for tpu_custom_call.1']
    #allocation13 [shape = 'u8[1024]{0}', space=vmem, size = 0x400, scoped, tag = 'output window, operand 0, single buffered']
    %21 = vsyncpa [#allocation3], 0
    %22 = vsyncpa [#allocation6], 0
    %23 = vsyncpa [#allocation9], 0
    %24 = vsyncpa [#allocation12], 0
    %25 = vsyncpa [#allocation4], 0
    // Predicated region
    $region2: #{tpu_custom_call.1} parent=1 // pred_check
      _
    $region3: #{tpu_custom_call.1} parent=1 // pred_check_branch
      %27 = sbr.rel (0) target = $region5
    $region4: #{tpu_custom_call.1} parent=1 // pred_region
      _
    $region5: #{tpu_custom_call.1} parent=1 // pred_fallthru
      _
    // Predicated region
    $region6: #{tpu_custom_call.1} parent=1 // pred_check
      _
    $region7: #{tpu_custom_call.1} parent=1 // pred_check_branch
      %29 = sbr.rel (0) target = $region9
    $region8: #{tpu_custom_call.1} parent=1 // pred_region
      _
    $region9: #{tpu_custom_call.1} parent=1 // pred_fallthru
      _
    // Predicated region
    $region10: #{tpu_custom_call.1} parent=1 // pred_check
      _
    $region11: #{tpu_custom_call.1} parent=1 // pred_check_branch
      %31 = sbr.rel (0) target = $region13
    $region12: #{tpu_custom_call.1} parent=1 // pred_region
      _
    $region13: #{tpu_custom_call.1} parent=1 // pred_fallthru
      _
    // Predicated region
    $region14: #{tpu_custom_call.1} parent=1 // pred_check
      _
    $region15: #{tpu_custom_call.1} parent=1 // pred_check_branch
      %33 = sbr.rel (0) target = $region17
    $region16: #{tpu_custom_call.1} parent=1 // pred_region
      _
    $region17: #{tpu_custom_call.1} parent=1 // pred_fallthru
      _
    // Predicated region
    $region18: #{tpu_custom_call.1} parent=1 // pred_check
      _
    $region19: #{tpu_custom_call.1} parent=1 // pred_check_branch
      %35 = sbr.rel (0) target = $region21
    $region20: #{tpu_custom_call.1} parent=1 // pred_region
      _
    $region21: #{tpu_custom_call.1} parent=1 // pred_fallthru
      _
    // Predicated region
    $region22: #{tpu_custom_call.1} parent=1 // pred_check
      _
    $region23: #{tpu_custom_call.1} parent=1 // pred_check_branch
      %37 = sbr.rel (0) target = $region25
    $region24: #{tpu_custom_call.1} parent=1 // pred_region
      %39 = vsyncadd [#allocation3], 0
      %s40 = sshll.u32 %s5, 4
      %s41 = int_to_ptr.hbm [resolvable:$true] %s40
      %s42 = sshll.u32 [#allocation2], 4
      %s43 = int_to_ptr.vmem [resolvable:$true] %s42
      %48 = dma.hbm_to_vmem [thread:$0]  %s41, 6144, %s43, [#allocation3], 128, 128, 8
    $region25: #{tpu_custom_call.1} parent=1 // pred_fallthru
      _
    // Predicated region
    $region26: #{tpu_custom_call.1} parent=1 // pred_check
      _
    $region27: #{tpu_custom_call.1} parent=1 // pred_check_branch
      %50 = sbr.rel (0) target = $region29
    $region28: #{tpu_custom_call.1} parent=1 // pred_region
      _
    $region29: #{tpu_custom_call.1} parent=1 // pred_fallthru
      _
    // Predicated region
    $region30: #{tpu_custom_call.1} parent=1 // pred_check
      _
    $region31: #{tpu_custom_call.1} parent=1 // pred_check_branch
      %52 = sbr.rel (0) target = $region33
    $region32: #{tpu_custom_call.1} parent=1 // pred_region
      _
    $region33: #{tpu_custom_call.1} parent=1 // pred_fallthru
      _
    // Predicated region
    $region34: #{tpu_custom_call.1} parent=1 // pred_check
      _
    $region35: #{tpu_custom_call.1} parent=1 // pred_check_branch
      %54 = sbr.rel (0) target = $region37
    $region36: #{tpu_custom_call.1} parent=1 // pred_region
      %56 = vsyncadd [#allocation6], 0
      %s57 = sshll.u32 %s8, 4
      %s58 = int_to_ptr.hbm [resolvable:$true] %s57
      %s59 = sshll.u32 [#allocation5], 4
      %s60 = int_to_ptr.vmem [resolvable:$true] %s59
      %65 = dma.hbm_to_vmem [thread:$0]  %s58, 6144, %s60, [#allocation6], 128, 128, 8
    $region37: #{tpu_custom_call.1} parent=1 // pred_fallthru
      _
    // Predicated region
    $region38: #{tpu_custom_call.1} parent=1 // pred_check
      _
    $region39: #{tpu_custom_call.1} parent=1 // pred_check_branch
      %67 = sbr.rel (0) target = $region41
    $region40: #{tpu_custom_call.1} parent=1 // pred_region
      _
    $region41: #{tpu_custom_call.1} parent=1 // pred_fallthru
      _
    // Predicated region
    $region42: #{tpu_custom_call.1} parent=1 // pred_check
      _
    $region43: #{tpu_custom_call.1} parent=1 // pred_check_branch
      %69 = sbr.rel (0) target = $region45
    $region44: #{tpu_custom_call.1} parent=1 // pred_region
      _
    $region45: #{tpu_custom_call.1} parent=1 // pred_fallthru
      _
    // Predicated region
    $region46: #{tpu_custom_call.1} parent=1 // pred_check
      _
    $region47: #{tpu_custom_call.1} parent=1 // pred_check_branch
      %71 = sbr.rel (0) target = $region49
    $region48: #{tpu_custom_call.1} parent=1 // pred_region
      %73 = vsyncadd [#allocation6], 0
      %s74 = sshll.u32 %s11, 4
      %s75 = int_to_ptr.hbm [resolvable:$true] %s74
      %s76 = sshll.u32 [#allocation7], 4
      %s77 = int_to_ptr.vmem [resolvable:$true] %s76
      %82 = dma.hbm_to_vmem [thread:$0]  %s75, 6144, %s77, [#allocation6], 128, 128, 8
    $region49: #{tpu_custom_call.1} parent=1 // pred_fallthru
      _
    // Predicated region
    $region50: #{tpu_custom_call.1} parent=1 // pred_check
      _
    $region51: #{tpu_custom_call.1} parent=1 // pred_check_branch
      %84 = sbr.rel (0) target = $region53
    $region52: #{tpu_custom_call.1} parent=1 // pred_region
      %86 = vsyncadd [#allocation9], 0
      %s87 = sshll.u32 %s12, 4
      %s88 = int_to_ptr.hbm [resolvable:$true] %s87
      %s89 = sshll.u32 [#allocation8], 4
      %s90 = int_to_ptr.vmem [resolvable:$true] %s89
      %95 = dma.hbm_to_vmem [thread:$0]  %s88, 6144, %s90, [#allocation9], 128, 128, 8
    $region53: #{tpu_custom_call.1} parent=1 // pred_fallthru
      _
    // Predicated region
    $region54: #{tpu_custom_call.1} parent=1 // pred_check
      _
    $region55: #{tpu_custom_call.1} parent=1 // pred_check_branch
      %97 = sbr.rel (0) target = $region57
    $region56: #{tpu_custom_call.1} parent=1 // pred_region
      %99 = vsyncadd [#allocation9], 0
      %s100 = sshll.u32 %s13, 4
      %s101 = int_to_ptr.hbm [resolvable:$true] %s100
      %s102 = sshll.u32 [#allocation10], 4
      %s103 = int_to_ptr.vmem [resolvable:$true] %s102
      %108 = dma.hbm_to_vmem [thread:$0]  %s101, 6144, %s103, [#allocation9], 128, 128, 8
    $region57: #{tpu_custom_call.1} parent=1 // pred_fallthru
      _
    // Predicated region
    $region58: #{tpu_custom_call.1} parent=1 // pred_check
      _
    $region59: #{tpu_custom_call.1} parent=1 // pred_check_branch
      %110 = sbr.rel (0) target = $region61
    $region60: #{tpu_custom_call.1} parent=1 // pred_region
      %112 = vsyncadd [#allocation12], 0
      %s113 = sshll.u32 %s14, 4
      %s114 = int_to_ptr.hbm [resolvable:$true] %s113
      %s115 = sshll.u32 [#allocation11], 4
      %s116 = int_to_ptr.vmem [resolvable:$true] %s115
      %121 = dma.hbm_to_vmem [thread:$0]  %s114, 2048, %s116, [#allocation12], 128, 128, 8
    $region61: #{tpu_custom_call.1} parent=1 // pred_fallthru
      _
    // Predicated region
    $region62: #{tpu_custom_call.1} parent=1 // pred_check
      _
    $region63: #{tpu_custom_call.1} parent=1 // pred_check_branch
      %123 = sbr.rel (0) target = $region65
    $region64: #{tpu_custom_call.1} parent=1 // pred_region
      _
    $region65: #{tpu_custom_call.1} parent=1 // pred_fallthru
      _
    // Predicated region
    $region66: #{tpu_custom_call.1} parent=1 // pred_check
      _
    $region67: #{tpu_custom_call.1} parent=1 // pred_check_branch
      %125 = sbr.rel (0) target = $region69
    $region68: #{tpu_custom_call.1} parent=1 // pred_region
      %127 = dma.done [#allocation3], 6144
    $region69: #{tpu_custom_call.1} parent=1 // pred_fallthru
      _
    // Predicated region
    $region70: #{tpu_custom_call.1} parent=1 // pred_check
      _
    $region71: #{tpu_custom_call.1} parent=1 // pred_check_branch
      %129 = sbr.rel (0) target = $region73
    $region72: #{tpu_custom_call.1} parent=1 // pred_region
      %131 = dma.done [#allocation6], 6144
    $region73: #{tpu_custom_call.1} parent=1 // pred_fallthru
      _
    // Predicated region
    $region74: #{tpu_custom_call.1} parent=1 // pred_check
      _
    $region75: #{tpu_custom_call.1} parent=1 // pred_check_branch
      %133 = sbr.rel (0) target = $region77
    $region76: #{tpu_custom_call.1} parent=1 // pred_region
      %135 = dma.done [#allocation6], 6144
    $region77: #{tpu_custom_call.1} parent=1 // pred_fallthru
      _
    // Predicated region
    $region78: #{tpu_custom_call.1} parent=1 // pred_check
      _
    $region79: #{tpu_custom_call.1} parent=1 // pred_check_branch
      %137 = sbr.rel (0) target = $region81
    $region80: #{tpu_custom_call.1} parent=1 // pred_region
      %139 = dma.done [#allocation9], 6144
    $region81: #{tpu_custom_call.1} parent=1 // pred_fallthru
      _
    // Predicated region
    $region82: #{tpu_custom_call.1} parent=1 // pred_check
      _
    $region83: #{tpu_custom_call.1} parent=1 // pred_check_branch
      %141 = sbr.rel (0) target = $region85
    $region84: #{tpu_custom_call.1} parent=1 // pred_region
      %143 = dma.done [#allocation9], 6144
    $region85: #{tpu_custom_call.1} parent=1 // pred_fallthru
      _
    // Predicated region
    $region86: #{tpu_custom_call.1} parent=1 // pred_check
      _
    $region87: #{tpu_custom_call.1} parent=1 // pred_check_branch
      %145 = sbr.rel (0) target = $region89
    $region88: #{tpu_custom_call.1} parent=1 // pred_region
      %147 = dma.done [#allocation12], 2048
    $region89: #{tpu_custom_call.1} parent=1 // pred_fallthru
      _
    %v148 = vld [vmem:[%s1] sm:$0xf]
    %v149 = vld [vmem:[%s1 + $0x4] sm:$0xf]
    %v150 = vld [vmem:[%s1 + $0x8] sm:$0xf]
    %v151 = vld [vmem:[%s1 + $0xc] sm:$0xf]
    %v152 = vunpack.c.l.bf16 %v148
    %v153 = vunpack.c.l.bf16 %v149
    %v154 = vunpack.c.l.bf16 %v150
    %v155 = vunpack.c.l.bf16 %v151
    %v156 = vld [vmem:[%s2] sm:$0xf]
    %v157 = vld [vmem:[%s2 + $0x4] sm:$0xf]
    %v158 = vld [vmem:[%s2 + $0x8] sm:$0xf]
    %v159 = vld [vmem:[%s2 + $0xc] sm:$0xf]
    %v160 = vunpack.c.l.bf16 %v156
    %v161 = vunpack.c.l.bf16 %v157
    %v162 = vunpack.c.l.bf16 %v158
    %v163 = vunpack.c.l.bf16 %v159
    %v164 = vld [vmem:[%s3] sm:$0xff]
    %v165 = vld [vmem:[%s3 + $0x8] sm:$0xff]
    %v166 = vld [vmem:[%s3 + $0x10] sm:$0xff]
    %v167 = vld [vmem:[%s3 + $0x18] sm:$0xff]
    %v168 = vld [vmem:[%s0] sm:$0xff]
    %v169 = vld [vmem:[%s0 + $0x8] sm:$0xff]
    %v170 = vlaneseq
    %v171 = vand.u32 %v170, 127
    %v172 = vld [vmem:[#allocation2] sm:$0xff]
    %v173 = vld [vmem:[#allocation2 + $0x8] sm:$0xff]
    %v174 = vld [vmem:[#allocation2 + $0x10] sm:$0xff]
    %v175 = vld [vmem:[#allocation2 + $0x18] sm:$0xff]
    %v176 = vld [vmem:[#allocation2 + $0x20] sm:$0xff]
    %v177 = vld [vmem:[#allocation2 + $0x28] sm:$0xff]
    %v178 = vld [vmem:[#allocation2 + $0x30] sm:$0xff]
    %v179 = vld [vmem:[#allocation2 + $0x38] sm:$0xff]
    %v180 = vld [vmem:[#allocation2 + $0x40] sm:$0xff]
    %v181 = vld [vmem:[#allocation2 + $0x48] sm:$0xff]
    %v182 = vld [vmem:[#allocation2 + $0x50] sm:$0xff]
    %v183 = vld [vmem:[#allocation2 + $0x58] sm:$0xff]
    %v184 = vld [vmem:[#allocation2 + $0x60] sm:$0xff]
    %v185 = vld [vmem:[#allocation2 + $0x68] sm:$0xff]
    %v186 = vld [vmem:[#allocation2 + $0x70] sm:$0xff]
    %v187 = vld [vmem:[#allocation2 + $0x78] sm:$0xff]
    %v188 = vld [vmem:[%s6] sm:$0x1]
    %v189 = vld [vmem:[%s7] sm:$0x1]
    %v190 = vld [vmem:[#allocation5] sm:$0xff]
    %v191 = vld [vmem:[#allocation5 + $0x8] sm:$0xff]
    %v192 = vld [vmem:[#allocation5 + $0x10] sm:$0xff]
    %v193 = vld [vmem:[#allocation5 + $0x18] sm:$0xff]
    %v194 = vld [vmem:[#allocation5 + $0x20] sm:$0xff]
    %v195 = vld [vmem:[#allocation5 + $0x28] sm:$0xff]
    %v196 = vld [vmem:[#allocation5 + $0x30] sm:$0xff]
    %v197 = vld [vmem:[#allocation5 + $0x38] sm:$0xff]
    %v198 = vld [vmem:[#allocation5 + $0x40] sm:$0xff]
    %v199 = vld [vmem:[#allocation5 + $0x48] sm:$0xff]
    %v200 = vld [vmem:[#allocation5 + $0x50] sm:$0xff]
    %v201 = vld [vmem:[#allocation5 + $0x58] sm:$0xff]
    %v202 = vld [vmem:[#allocation5 + $0x60] sm:$0xff]
    %v203 = vld [vmem:[#allocation5 + $0x68] sm:$0xff]
    %v204 = vld [vmem:[#allocation5 + $0x70] sm:$0xff]
    %v205 = vld [vmem:[#allocation5 + $0x78] sm:$0xff]
    %v206 = vld [vmem:[%s9] sm:$0x1]
    %v207 = vld [vmem:[%s10] sm:$0x1]
    %v208 = vld [vmem:[#allocation7] sm:$0xff]
    %v209 = vld [vmem:[#allocation7 + $0x8] sm:$0xff]
    %v210 = vld [vmem:[#allocation7 + $0x10] sm:$0xff]
    %v211 = vld [vmem:[#allocation7 + $0x18] sm:$0xff]
    %v212 = vld [vmem:[#allocation7 + $0x20] sm:$0xff]
    %v213 = vld [vmem:[#allocation7 + $0x28] sm:$0xff]
    %v214 = vld [vmem:[#allocation7 + $0x30] sm:$0xff]
    %v215 = vld [vmem:[#allocation7 + $0x38] sm:$0xff]
    %v216 = vld [vmem:[#allocation7 + $0x40] sm:$0xff]
    %v217 = vld [vmem:[#allocation7 + $0x48] sm:$0xff]
    %v218 = vld [vmem:[#allocation7 + $0x50] sm:$0xff]
    %v219 = vld [vmem:[#allocation7 + $0x58] sm:$0xff]
    %v220 = vld [vmem:[#allocation7 + $0x60] sm:$0xff]
    %v221 = vld [vmem:[#allocation7 + $0x68] sm:$0xff]
    %v222 = vld [vmem:[#allocation7 + $0x70] sm:$0xff]
    %v223 = vld [vmem:[#allocation7 + $0x78] sm:$0xff]
    %v224 = vld [vmem:[#allocation8] sm:$0xff]
    %v225 = vld [vmem:[#allocation8 + $0x8] sm:$0xff]
    %v226 = vld [vmem:[#allocation8 + $0x10] sm:$0xff]
    %v227 = vld [vmem:[#allocation8 + $0x18] sm:$0xff]
    %v228 = vld [vmem:[#allocation8 + $0x20] sm:$0xff]
    %v229 = vld [vmem:[#allocation8 + $0x28] sm:$0xff]
    %v230 = vld [vmem:[#allocation8 + $0x30] sm:$0xff]
    %v231 = vld [vmem:[#allocation8 + $0x38] sm:$0xff]
    %v232 = vld [vmem:[#allocation8 + $0x40] sm:$0xff]
    %v233 = vld [vmem:[#allocation8 + $0x48] sm:$0xff]
    %v234 = vld [vmem:[#allocation8 + $0x50] sm:$0xff]
    %v235 = vld [vmem:[#allocation8 + $0x58] sm:$0xff]
    %v236 = vld [vmem:[#allocation8 + $0x60] sm:$0xff]
    %v237 = vld [vmem:[#allocation8 + $0x68] sm:$0xff]
    %v238 = vld [vmem:[#allocation8 + $0x70] sm:$0xff]
    %v239 = vld [vmem:[#allocation8 + $0x78] sm:$0xff]
    %v240 = vld [vmem:[#allocation10] sm:$0xff]
    %v241 = vld [vmem:[#allocation10 + $0x8] sm:$0xff]
    %v242 = vld [vmem:[#allocation10 + $0x10] sm:$0xff]
    %v243 = vld [vmem:[#allocation10 + $0x18] sm:$0xff]
    %v244 = vld [vmem:[#allocation10 + $0x20] sm:$0xff]
    %v245 = vld [vmem:[#allocation10 + $0x28] sm:$0xff]
    %v246 = vld [vmem:[#allocation10 + $0x30] sm:$0xff]
    %v247 = vld [vmem:[#allocation10 + $0x38] sm:$0xff]
    %v248 = vld [vmem:[#allocation10 + $0x40] sm:$0xff]
    %v249 = vld [vmem:[#allocation10 + $0x48] sm:$0xff]
    %v250 = vld [vmem:[#allocation10 + $0x50] sm:$0xff]
    %v251 = vld [vmem:[#allocation10 + $0x58] sm:$0xff]
    %v252 = vld [vmem:[#allocation10 + $0x60] sm:$0xff]
    %v253 = vld [vmem:[#allocation10 + $0x68] sm:$0xff]
    %v254 = vld [vmem:[#allocation10 + $0x70] sm:$0xff]
    %v255 = vld [vmem:[#allocation10 + $0x78] sm:$0xff]
    %vm256 = vcmask 130048
    %v258 = vsel %vm256, %v152, 0
    %v261 = vsel %vm256, %v153, 0
    %v264 = vsel %vm256, %v154, 0
    %v267 = vsel %vm256, %v155, 0
    %269 = vmatpush.msra.mxu0 0.0
    %270 = vmatpush.msra.mxu0 0.0
    %271 = vmatpush.msra.mxu0 0.0
    %272 = vmatpush.msra.mxu0 0.0
    %273 = vmatpush.msra.mxu0 0.0
    %274 = vmatpush.msra.mxu0 0.0
    %275 = vmatpush.msra.mxu0 0.0
    %276 = vmatpush.msra.mxu0 0.0
    %277 = vmatpush.msra.mxu0 0.0
    %278 = vmatpush.msra.mxu0 0.0
    %279 = vmatpush.msra.mxu0 0.0
    %280 = vmatpush.msra.mxu0 0.0
    %281 = vmatpush.msra.mxu0 0.0
    %282 = vmatpush.msra.mxu0 0.0
    %283 = vmatpush.msra.mxu0 %v169
    %284 = vmatpush.msra.mxu0 %v168
    %285 = vmatmul.f32.gmra.mxu0 %v258
    %v286 = vpop.f32.mrf.mxu0
    %v287 = vadd.f32 0.0, %v286
    %288 = vmatmul.f32.gmra.mxu0 %v261
    %v289 = vpop.f32.mrf.mxu0
    %v290 = vadd.f32 0.0, %v289
    %291 = vmatmul.f32.gmra.mxu0 %v264
    %v292 = vpop.f32.mrf.mxu0
    %v293 = vadd.f32 0.0, %v292
    %294 = vmatmul.f32.gmra.mxu0 %v267
    %v295 = vpop.f32.mrf.mxu0
    %v296 = vadd.f32 0.0, %v295
    %297 = vdwg.mxu0
    %299 = vset.pattern.permute.xlu0 0
    %300 = vperm.xlu0 %299, %v164
    %v301 = vpop.permute.xlu0 %300
    %304 = vset.pattern.permute.xlu0 0
    %305 = vperm.xlu0 %304, %v165
    %v306 = vpop.permute.xlu0 %305
    %309 = vset.pattern.permute.xlu0 0
    %310 = vperm.xlu0 %309, %v166
    %v311 = vpop.permute.xlu0 %310
    %314 = vset.pattern.permute.xlu0 0
    %315 = vperm.xlu0 %314, %v167
    %v316 = vpop.permute.xlu0 %315
    %v319 = vperm.slane %v188, 0
    %v321 = vmul.f32 %v301, %v319
    %v322 = vmul.f32 %v306, %v319
    %v323 = vmul.f32 %v311, %v319
    %v324 = vmul.f32 %v316, %v319
    %325 = vmatpush.msra.mxu0 %v187
    %326 = vmatpush.msra.mxu0 %v186
    %327 = vmatpush.msra.mxu0 %v185
    %328 = vmatpush.msra.mxu0 %v184
    %329 = vmatpush.msra.mxu0 %v183
    %330 = vmatpush.msra.mxu0 %v182
    %331 = vmatpush.msra.mxu0 %v181
    %332 = vmatpush.msra.mxu0 %v180
    %333 = vmatpush.msra.mxu0 %v179
    %334 = vmatpush.msra.mxu0 %v178
    %335 = vmatpush.msra.mxu0 %v177
    %336 = vmatpush.msra.mxu0 %v176
    %337 = vmatpush.msra.mxu0 %v175
    %338 = vmatpush.msra.mxu0 %v174
    %339 = vmatpush.msra.mxu0 %v173
    %340 = vmatpush.msra.mxu0 %v172
    %341 = vmatmul.f32.gmra.mxu0 %v287
    %v342 = vpop.f32.mrf.mxu0
    %v343 = vadd.f32 %v321, %v342
    %344 = vmatmul.f32.gmra.mxu0 %v290
    %v345 = vpop.f32.mrf.mxu0
    %v346 = vadd.f32 %v322, %v345
    %347 = vmatmul.f32.gmra.mxu0 %v293
    %v348 = vpop.f32.mrf.mxu0
    %v349 = vadd.f32 %v323, %v348
    %350 = vmatmul.f32.gmra.mxu0 %v296
    %v351 = vpop.f32.mrf.mxu0
    %v352 = vadd.f32 %v324, %v351
    %353 = vdwg.mxu0
    %v355 = vperm.slane %v189, 0
    %v357 = vadd.f32 %v343, %v355
    %v358 = vadd.f32 %v346, %v355
    %v359 = vadd.f32 %v349, %v355
    %v360 = vadd.f32 %v352, %v355
    %v362 = vperm.slane %v207, 0
    %v364 = vmul.f32 %v357, %v362
    %v365 = vmul.f32 %v358, %v362
    %v366 = vmul.f32 %v359, %v362
    %v367 = vmul.f32 %v360, %v362
    %368 = vmatpush.msra.mxu0 %v223
    %369 = vmatpush.msra.mxu0 %v222
    %370 = vmatpush.msra.mxu0 %v221
    %371 = vmatpush.msra.mxu0 %v220
    %372 = vmatpush.msra.mxu0 %v219
    %373 = vmatpush.msra.mxu0 %v218
    %374 = vmatpush.msra.mxu0 %v217
    %375 = vmatpush.msra.mxu0 %v216
    %376 = vmatpush.msra.mxu0 %v215
    %377 = vmatpush.msra.mxu0 %v214
    %378 = vmatpush.msra.mxu0 %v213
    %379 = vmatpush.msra.mxu0 %v212
    %380 = vmatpush.msra.mxu0 %v211
    %381 = vmatpush.msra.mxu0 %v210
    %382 = vmatpush.msra.mxu0 %v209
    %383 = vmatpush.msra.mxu0 %v208
    %384 = vmatmul.f32.gmra.mxu0 %v364
    %v385 = vpop.f32.mrf.mxu0
    %v386 = vadd.f32 0.0, %v385
    %387 = vmatmul.f32.gmra.mxu0 %v365
    %v388 = vpop.f32.mrf.mxu0
    %v389 = vadd.f32 0.0, %v388
    %390 = vmatmul.f32.gmra.mxu0 %v366
    %v391 = vpop.f32.mrf.mxu0
    %v392 = vadd.f32 0.0, %v391
    %393 = vmatmul.f32.gmra.mxu0 %v367
    %v394 = vpop.f32.mrf.mxu0
    %v395 = vadd.f32 0.0, %v394
    %396 = vdwg.mxu0
    %vm397 = vcmp.gt.f32.partialorder %v386, 0.0
    %vm398 = vcmp.gt.f32.partialorder %v389, 0.0
    %vm399 = vcmp.gt.f32.partialorder %v392, 0.0
    %vm400 = vcmp.gt.f32.partialorder %v395, 0.0
    %v401 = vmul.f32 %v386, 0.2
    %v402 = vmul.f32 %v389, 0.2
    %v403 = vmul.f32 %v392, 0.2
    %v404 = vmul.f32 %v395, 0.2
    %v405 = vsel %vm397, %v386, %v401
    %v406 = vsel %vm398, %v389, %v402
    %v407 = vsel %vm399, %v392, %v403
    %v408 = vsel %vm400, %v395, %v404
    %vm409 = vcmp.gt.f32.partialorder %v160, 0.5
    %vm410 = vcmp.gt.f32.partialorder %v161, 0.5
    %vm411 = vcmp.gt.f32.partialorder %v162, 0.5
    %vm412 = vcmp.gt.f32.partialorder %v163, 0.5
    %414 = vset.pattern.permute.xlu0 0
    %415 = vperm.xlu0 %414, %v405
    %v416 = vpop.permute.xlu0 %415
    %419 = vset.pattern.permute.xlu0 0
    %420 = vperm.xlu0 %419, %v406
    %v421 = vpop.permute.xlu0 %420
    %424 = vset.pattern.permute.xlu0 0
    %425 = vperm.xlu0 %424, %v407
    %v426 = vpop.permute.xlu0 %425
    %429 = vset.pattern.permute.xlu0 0
    %430 = vperm.xlu0 %429, %v408
    %v431 = vpop.permute.xlu0 %430
    %v433 = vsel %vm409, %v416, -3.4028235e+38
    %v434 = vsel %vm410, %v421, -3.4028235e+38
    %v435 = vsel %vm411, %v426, -3.4028235e+38
    %v436 = vsel %vm412, %v431, -3.4028235e+38
    %v437 = vsel %vm256, %v433, -inf
    %v438 = vsel %vm256, %v434, -inf
    %v439 = vsel %vm256, %v435, -inf
    %v440 = vsel %vm256, %v436, -inf
    %v441 = vmax.f32 %v437, %v438
    %v442 = vmax.f32 %v439, %v440
    %v443 = vmax.f32 %v441, %v442
    %v444 = vrot.slane %v443, 4
    %v445 = vmax.f32 %v443, %v444
    %v446 = vrot.slane %v445, 2
    %v447 = vmax.f32 %v445, %v446
    %v448 = vrot.slane %v447, 1
    %v449 = vmax.f32 %v447, %v448
    %v450 = vsel %vm409, %v449, -3.4028235e+38
    %v451 = vsel %vm410, %v449, -3.4028235e+38
    %v452 = vsel %vm411, %v449, -3.4028235e+38
    %v453 = vsel %vm412, %v449, -3.4028235e+38
    %v454 = vsel %vm256, %v450, -inf
    %455 = vmax.xlane.f32.xlu0 %v454
    %v456 = vpop.xlane.xlu0 %455
    %v457 = vsel %vm256, %v451, -inf
    %458 = vmax.xlane.f32.xlu0 %v457
    %v459 = vpop.xlane.xlu0 %458
    %v460 = vsel %vm256, %v452, -inf
    %461 = vmax.xlane.f32.xlu0 %v460
    %v462 = vpop.xlane.xlu0 %461
    %v463 = vsel %vm256, %v453, -inf
    %464 = vmax.xlane.f32.xlu0 %v463
    %v465 = vpop.xlane.xlu0 %464
    %vm466 = vcmp.eq.s32.totalorder %v171, 0
    %v467 = vsel %vm466, %v456, 0.0
    %v468 = vsel %vm466, %v459, 0.0
    %v469 = vsel %vm466, %v462, 0.0
    %v470 = vsel %vm466, %v465, 0.0
    %471 = vset.pattern.permute.xlu0 1
    %472 = vperm.xlu0 %471, %v405
    %v473 = vpop.permute.xlu0 %472
    %475 = vset.pattern.permute.xlu0 1
    %476 = vperm.xlu0 %475, %v406
    %v477 = vpop.permute.xlu0 %476
    %479 = vset.pattern.permute.xlu0 1
    %480 = vperm.xlu0 %479, %v407
    %v481 = vpop.permute.xlu0 %480
    %483 = vset.pattern.permute.xlu0 1
    %484 = vperm.xlu0 %483, %v408
    %v485 = vpop.permute.xlu0 %484
    %v487 = vsel %vm409, %v473, -3.4028235e+38
    %v488 = vsel %vm410, %v477, -3.4028235e+38
    %v489 = vsel %vm411, %v481, -3.4028235e+38
    %v490 = vsel %vm412, %v485, -3.4028235e+38
    %v491 = vsel %vm256, %v487, -inf
    %v492 = vsel %vm256, %v488, -inf
    %v493 = vsel %vm256, %v489, -inf
    %v494 = vsel %vm256, %v490, -inf
    %v495 = vmax.f32 %v491, %v492
    %v496 = vmax.f32 %v493, %v494
    %v497 = vmax.f32 %v495, %v496
    %v498 = vrot.slane %v497, 4
    %v499 = vmax.f32 %v497, %v498
    %v500 = vrot.slane %v499, 2
    %v501 = vmax.f32 %v499, %v500
    %v502 = vrot.slane %v501, 1
    %v503 = vmax.f32 %v501, %v502
    %v504 = vsel %vm409, %v503, -3.4028235e+38
    %v505 = vsel %vm410, %v503, -3.4028235e+38
    %v506 = vsel %vm411, %v503, -3.4028235e+38
    %v507 = vsel %vm412, %v503, -3.4028235e+38
    %v508 = vsel %vm256, %v504, -inf
    %509 = vmax.xlane.f32.xlu0 %v508
    %v510 = vpop.xlane.xlu0 %509
    %v511 = vsel %vm256, %v505, -inf
    %512 = vmax.xlane.f32.xlu0 %v511
    %v513 = vpop.xlane.xlu0 %512
    %v514 = vsel %vm256, %v506, -inf
    %515 = vmax.xlane.f32.xlu0 %v514
    %v516 = vpop.xlane.xlu0 %515
    %v517 = vsel %vm256, %v507, -inf
    %518 = vmax.xlane.f32.xlu0 %v517
    %v519 = vpop.xlane.xlu0 %518
    %vm520 = vcmp.eq.s32.totalorder %v171, 1
    %v521 = vsel %vm520, %v510, %v467
    %v522 = vsel %vm520, %v513, %v468
    %v523 = vsel %vm520, %v516, %v469
    %v524 = vsel %vm520, %v519, %v470
    %525 = vset.pattern.permute.xlu0 2
    %526 = vperm.xlu0 %525, %v405
    %v527 = vpop.permute.xlu0 %526
    %529 = vset.pattern.permute.xlu0 2
    %530 = vperm.xlu0 %529, %v406
    %v531 = vpop.permute.xlu0 %530
    %533 = vset.pattern.permute.xlu0 2
    %534 = vperm.xlu0 %533, %v407
    %v535 = vpop.permute.xlu0 %534
    %537 = vset.pattern.permute.xlu0 2
    %538 = vperm.xlu0 %537, %v408
    %v539 = vpop.permute.xlu0 %538
    %v541 = vsel %vm409, %v527, -3.4028235e+38
    %v542 = vsel %vm410, %v531, -3.4028235e+38
    %v543 = vsel %vm411, %v535, -3.4028235e+38
    %v544 = vsel %vm412, %v539, -3.4028235e+38
    %v545 = vsel %vm256, %v541, -inf
    %v546 = vsel %vm256, %v542, -inf
    %v547 = vsel %vm256, %v543, -inf
    %v548 = vsel %vm256, %v544, -inf
    %v549 = vmax.f32 %v545, %v546
    %v550 = vmax.f32 %v547, %v548
    %v551 = vmax.f32 %v549, %v550
    %v552 = vrot.slane %v551, 4
    %v553 = vmax.f32 %v551, %v552
    %v554 = vrot.slane %v553, 2
    %v555 = vmax.f32 %v553, %v554
    %v556 = vrot.slane %v555, 1
    %v557 = vmax.f32 %v555, %v556
    %v558 = vsel %vm409, %v557, -3.4028235e+38
    %v559 = vsel %vm410, %v557, -3.4028235e+38
    %v560 = vsel %vm411, %v557, -3.4028235e+38
    %v561 = vsel %vm412, %v557, -3.4028235e+38
    %v562 = vsel %vm256, %v558, -inf
    %563 = vmax.xlane.f32.xlu0 %v562
    %v564 = vpop.xlane.xlu0 %563
    %v565 = vsel %vm256, %v559, -inf
    %566 = vmax.xlane.f32.xlu0 %v565
    %v567 = vpop.xlane.xlu0 %566
    %v568 = vsel %vm256, %v560, -inf
    %569 = vmax.xlane.f32.xlu0 %v568
    %v570 = vpop.xlane.xlu0 %569
    %v571 = vsel %vm256, %v561, -inf
    %572 = vmax.xlane.f32.xlu0 %v571
    %v573 = vpop.xlane.xlu0 %572
    %vm574 = vcmp.eq.s32.totalorder %v171, 2
    %v575 = vsel %vm574, %v564, %v521
    %v576 = vsel %vm574, %v567, %v522
    %v577 = vsel %vm574, %v570, %v523
    %v578 = vsel %vm574, %v573, %v524
    %579 = vset.pattern.permute.xlu0 3
    %580 = vperm.xlu0 %579, %v405
    %v581 = vpop.permute.xlu0 %580
    %583 = vset.pattern.permute.xlu0 3
    %584 = vperm.xlu0 %583, %v406
    %v585 = vpop.permute.xlu0 %584
    %587 = vset.pattern.permute.xlu0 3
    %588 = vperm.xlu0 %587, %v407
    %v589 = vpop.permute.xlu0 %588
    %591 = vset.pattern.permute.xlu0 3
    %592 = vperm.xlu0 %591, %v408
    %v593 = vpop.permute.xlu0 %592
    %v595 = vsel %vm409, %v581, -3.4028235e+38
    %v596 = vsel %vm410, %v585, -3.4028235e+38
    %v597 = vsel %vm411, %v589, -3.4028235e+38
    %v598 = vsel %vm412, %v593, -3.4028235e+38
    %v599 = vsel %vm256, %v595, -inf
    %v600 = vsel %vm256, %v596, -inf
    %v601 = vsel %vm256, %v597, -inf
    %v602 = vsel %vm256, %v598, -inf
    %v603 = vmax.f32 %v599, %v600
    %v604 = vmax.f32 %v601, %v602
    %v605 = vmax.f32 %v603, %v604
    %v606 = vrot.slane %v605, 4
    %v607 = vmax.f32 %v605, %v606
    %v608 = vrot.slane %v607, 2
    %v609 = vmax.f32 %v607, %v608
    %v610 = vrot.slane %v609, 1
    %v611 = vmax.f32 %v609, %v610
    %v612 = vsel %vm409, %v611, -3.4028235e+38
    %v613 = vsel %vm410, %v611, -3.4028235e+38
    %v614 = vsel %vm411, %v611, -3.4028235e+38
    %v615 = vsel %vm412, %v611, -3.4028235e+38
    %v616 = vsel %vm256, %v612, -inf
    %617 = vmax.xlane.f32.xlu0 %v616
    %v618 = vpop.xlane.xlu0 %617
    %v619 = vsel %vm256, %v613, -inf
    %620 = vmax.xlane.f32.xlu0 %v619
    %v621 = vpop.xlane.xlu0 %620
    %v622 = vsel %vm256, %v614, -inf
    %623 = vmax.xlane.f32.xlu0 %v622
    %v624 = vpop.xlane.xlu0 %623
    %v625 = vsel %vm256, %v615, -inf
    %626 = vmax.xlane.f32.xlu0 %v625
    %v627 = vpop.xlane.xlu0 %626
    %vm628 = vcmp.eq.s32.totalorder %v171, 3
    %v629 = vsel %vm628, %v618, %v575
    %v630 = vsel %vm628, %v621, %v576
    %v631 = vsel %vm628, %v624, %v577
    %v632 = vsel %vm628, %v627, %v578
    %633 = vset.pattern.permute.xlu0 4
    %634 = vperm.xlu0 %633, %v405
    %v635 = vpop.permute.xlu0 %634
    %637 = vset.pattern.permute.xlu0 4
    %638 = vperm.xlu0 %637, %v406
    %v639 = vpop.permute.xlu0 %638
    %641 = vset.pattern.permute.xlu0 4
    %642 = vperm.xlu0 %641, %v407
    %v643 = vpop.permute.xlu0 %642
    %645 = vset.pattern.permute.xlu0 4
    %646 = vperm.xlu0 %645, %v408
    %v647 = vpop.permute.xlu0 %646
    %v649 = vsel %vm409, %v635, -3.4028235e+38
    %v650 = vsel %vm410, %v639, -3.4028235e+38
    %v651 = vsel %vm411, %v643, -3.4028235e+38
    %v652 = vsel %vm412, %v647, -3.4028235e+38
    %v653 = vsel %vm256, %v649, -inf
    %v654 = vsel %vm256, %v650, -inf
    %v655 = vsel %vm256, %v651, -inf
    %v656 = vsel %vm256, %v652, -inf
    %v657 = vmax.f32 %v653, %v654
    %v658 = vmax.f32 %v655, %v656
    %v659 = vmax.f32 %v657, %v658
    %v660 = vrot.slane %v659, 4
    %v661 = vmax.f32 %v659, %v660
    %v662 = vrot.slane %v661, 2
    %v663 = vmax.f32 %v661, %v662
    %v664 = vrot.slane %v663, 1
    %v665 = vmax.f32 %v663, %v664
    %v666 = vsel %vm409, %v665, -3.4028235e+38
    %v667 = vsel %vm410, %v665, -3.4028235e+38
    %v668 = vsel %vm411, %v665, -3.4028235e+38
    %v669 = vsel %vm412, %v665, -3.4028235e+38
    %v670 = vsel %vm256, %v666, -inf
    %671 = vmax.xlane.f32.xlu0 %v670
    %v672 = vpop.xlane.xlu0 %671
    %v673 = vsel %vm256, %v667, -inf
    %674 = vmax.xlane.f32.xlu0 %v673
    %v675 = vpop.xlane.xlu0 %674
    %v676 = vsel %vm256, %v668, -inf
    %677 = vmax.xlane.f32.xlu0 %v676
    %v678 = vpop.xlane.xlu0 %677
    %v679 = vsel %vm256, %v669, -inf
    %680 = vmax.xlane.f32.xlu0 %v679
    %v681 = vpop.xlane.xlu0 %680
    %vm682 = vcmp.eq.s32.totalorder %v171, 4
    %v683 = vsel %vm682, %v672, %v629
    %v684 = vsel %vm682, %v675, %v630
    %v685 = vsel %vm682, %v678, %v631
    %v686 = vsel %vm682, %v681, %v632
    %v687 = vsub.f32 %v405, %v683
    %v688 = vsub.f32 %v406, %v684
    %v689 = vsub.f32 %v407, %v685
    %v690 = vsub.f32 %v408, %v686
    %v691 = vmul.f32 %v687, 1.442695
    %v692 = vpow.pop %v691
    %v693 = vmul.f32 %v688, 1.442695
    %v694 = vpow.pop %v693
    %v695 = vmul.f32 %v689, 1.442695
    %v696 = vpow.pop %v695
    %v697 = vmul.f32 %v690, 1.442695
    %v698 = vpow.pop %v697
    %699 = vxpose.xlu0.b32.start [1/16] %v160, 128
    %700 = vxpose.xlu0.b32.cont [2/16] %v161, 128
    %701 = vxpose.xlu0.b32.cont [3/16] %v162, 128
    %702 = vxpose.xlu0.b32.cont [4/16] %v163, 128
    %703 = vxpose.xlu0.b32.cont [5/16] 0.0, 128
    %704 = vxpose.xlu0.b32.cont [6/16] 0.0, 128
    %705 = vxpose.xlu0.b32.cont [7/16] 0.0, 128
    %706 = vxpose.xlu0.b32.cont [8/16] 0.0, 128
    %707 = vxpose.xlu0.b32.cont [9/16] 0.0, 128
    %708 = vxpose.xlu0.b32.cont [10/16] 0.0, 128
    %709 = vxpose.xlu0.b32.cont [11/16] 0.0, 128
    %710 = vxpose.xlu0.b32.cont [12/16] 0.0, 128
    %711 = vxpose.xlu0.b32.cont [13/16] 0.0, 128
    %712 = vxpose.xlu0.b32.cont [14/16] 0.0, 128
    %713 = vxpose.xlu0.b32.cont [15/16] 0.0, 128
    %714 = vxpose.xlu0.b32.end [16/16] 0.0, 128
    %v715 = vpop.trf.xlu0
    %v716 = vpop.trf.xlu0
    %v717 = vpop.trf.xlu0
    %v718 = vpop.trf.xlu0
    %v719 = vpop.trf.xlu0
    %v720 = vpop.trf.xlu0
    %v721 = vpop.trf.xlu0
    %v722 = vpop.trf.xlu0
    %v723 = vpop.trf.xlu0
    %v724 = vpop.trf.xlu0
    %v725 = vpop.trf.xlu0
    %v726 = vpop.trf.xlu0
    %v727 = vpop.trf.xlu0
    %v728 = vpop.trf.xlu0
    %v729 = vpop.trf.xlu0
    %v730 = vpop.trf.xlu0
    %vm731 = vcmask 261120
    %v733 = vsel %vm731, %v715, 0
    %v736 = vsel %vm731, %v716, 0
    %738 = vmatpush.msra.mxu0 0.0
    %739 = vmatpush.msra.mxu0 0.0
    %740 = vmatpush.msra.mxu0 0.0
    %741 = vmatpush.msra.mxu0 0.0
    %742 = vmatpush.msra.mxu0 0.0
    %743 = vmatpush.msra.mxu0 0.0
    %744 = vmatpush.msra.mxu0 0.0
    %745 = vmatpush.msra.mxu0 0.0
    %746 = vmatpush.msra.mxu0 0.0
    %747 = vmatpush.msra.mxu0 0.0
    %748 = vmatpush.msra.mxu0 0.0
    %749 = vmatpush.msra.mxu0 0.0
    %750 = vmatpush.msra.mxu0 %v698
    %751 = vmatpush.msra.mxu0 %v696
    %752 = vmatpush.msra.mxu0 %v694
    %753 = vmatpush.msra.mxu0 %v692
    %754 = vmatmul.f32.gmra.mxu0 %v733
    %v755 = vpop.f32.mrf.mxu0
    %v756 = vadd.f32 0.0, %v755
    %757 = vmatmul.f32.gmra.mxu0 %v736
    %v758 = vpop.f32.mrf.mxu0
    %v759 = vadd.f32 0.0, %v758
    %760 = vdwg.mxu0
    %v762 = vsel %vm256, %v160, 0
    %v765 = vsel %vm256, %v161, 0
    %v768 = vsel %vm256, %v162, 0
    %v771 = vsel %vm256, %v163, 0
    %773 = vmatpush.msra.mxu0 0.0
    %774 = vmatpush.msra.mxu0 0.0
    %775 = vmatpush.msra.mxu0 0.0
    %776 = vmatpush.msra.mxu0 0.0
    %777 = vmatpush.msra.mxu0 0.0
    %778 = vmatpush.msra.mxu0 0.0
    %779 = vmatpush.msra.mxu0 0.0
    %780 = vmatpush.msra.mxu0 0.0
    %781 = vmatpush.msra.mxu0 0.0
    %782 = vmatpush.msra.mxu0 0.0
    %783 = vmatpush.msra.mxu0 0.0
    %784 = vmatpush.msra.mxu0 0.0
    %785 = vmatpush.msra.mxu0 0.0
    %786 = vmatpush.msra.mxu0 0.0
    %787 = vmatpush.msra.mxu0 %v759
    %788 = vmatpush.msra.mxu0 %v756
    %789 = vmatmul.f32.gmra.mxu0 %v762
    %v790 = vpop.f32.mrf.mxu0
    %v791 = vadd.f32 1e-16, %v790
    %792 = vmatmul.f32.gmra.mxu0 %v765
    %v793 = vpop.f32.mrf.mxu0
    %v794 = vadd.f32 1e-16, %v793
    %795 = vmatmul.f32.gmra.mxu0 %v768
    %v796 = vpop.f32.mrf.mxu0
    %v797 = vadd.f32 1e-16, %v796
    %798 = vmatmul.f32.gmra.mxu0 %v771
    %v799 = vpop.f32.mrf.mxu0
    %v800 = vadd.f32 1e-16, %v799
    %801 = vdwg.mxu0
    %v802 = vrcp.pop %v791
    %v803 = vmul.f32 %v791, %v802
    %v804 = vsub.f32 1.0, %v803
    %v805 = vmul.f32 %v802, %v804
    %v806 = vadd.f32 %v802, %v805
    %vm807 = vweird.f32 %v791
    %vm808 = vweird.f32 %v802
    %vm809 = vmor %vm807, %vm808
    %v810 = vsel %vm809, %v802, %v806
    %v811 = vand.u32 2147483647, %v791
    %vm812 = vcmp.eq.f32.partialorder %v811, 8.507059e+37
    %v813 = vand.u32 %v791, 2147483648
    %v814 = vor.u32 1.1754944e-38, %v813
    %v815 = vsel %vm812, %v814, %v810
    %v816 = vmul.f32 %v692, %v815
    %v817 = vrcp.pop %v794
    %v818 = vmul.f32 %v794, %v817
    %v819 = vsub.f32 1.0, %v818
    %v820 = vmul.f32 %v817, %v819
    %v821 = vadd.f32 %v817, %v820
    %vm822 = vweird.f32 %v794
    %vm823 = vweird.f32 %v817
    %vm824 = vmor %vm822, %vm823
    %v825 = vsel %vm824, %v817, %v821
    %v826 = vand.u32 2147483647, %v794
    %vm827 = vcmp.eq.f32.partialorder %v826, 8.507059e+37
    %v828 = vand.u32 %v794, 2147483648
    %v829 = vor.u32 1.1754944e-38, %v828
    %v830 = vsel %vm827, %v829, %v825
    %v831 = vmul.f32 %v694, %v830
    %v832 = vrcp.pop %v797
    %v833 = vmul.f32 %v797, %v832
    %v834 = vsub.f32 1.0, %v833
    %v835 = vmul.f32 %v832, %v834
    %v836 = vadd.f32 %v832, %v835
    %vm837 = vweird.f32 %v797
    %vm838 = vweird.f32 %v832
    %vm839 = vmor %vm837, %vm838
    %v840 = vsel %vm839, %v832, %v836
    %v841 = vand.u32 2147483647, %v797
    %vm842 = vcmp.eq.f32.partialorder %v841, 8.507059e+37
    %v843 = vand.u32 %v797, 2147483648
    %v844 = vor.u32 1.1754944e-38, %v843
    %v845 = vsel %vm842, %v844, %v840
    %v846 = vmul.f32 %v696, %v845
    %v847 = vrcp.pop %v800
    %v848 = vmul.f32 %v800, %v847
    %v849 = vsub.f32 1.0, %v848
    %v850 = vmul.f32 %v847, %v849
    %v851 = vadd.f32 %v847, %v850
    %vm852 = vweird.f32 %v800
    %vm853 = vweird.f32 %v847
    %vm854 = vmor %vm852, %vm853
    %v855 = vsel %vm854, %v847, %v851
    %v856 = vand.u32 2147483647, %v800
    %vm857 = vcmp.eq.f32.partialorder %v856, 8.507059e+37
    %v858 = vand.u32 %v800, 2147483648
    %v859 = vor.u32 1.1754944e-38, %v858
    %v860 = vsel %vm857, %v859, %v855
    %v861 = vmul.f32 %v698, %v860
    %862 = vmatpush.msra.mxu0 %v239
    %863 = vmatpush.msra.mxu0 %v238
    %864 = vmatpush.msra.mxu0 %v237
    %865 = vmatpush.msra.mxu0 %v236
    %866 = vmatpush.msra.mxu0 %v235
    %867 = vmatpush.msra.mxu0 %v234
    %868 = vmatpush.msra.mxu0 %v233
    %869 = vmatpush.msra.mxu0 %v232
    %870 = vmatpush.msra.mxu0 %v231
    %871 = vmatpush.msra.mxu0 %v230
    %872 = vmatpush.msra.mxu0 %v229
    %873 = vmatpush.msra.mxu0 %v228
    %874 = vmatpush.msra.mxu0 %v227
    %875 = vmatpush.msra.mxu0 %v226
    %876 = vmatpush.msra.mxu0 %v225
    %877 = vmatpush.msra.mxu0 %v224
    %878 = vmatmul.f32.gmra.mxu0 %v816
    %v879 = vpop.f32.mrf.mxu0
    %v880 = vadd.f32 0.0, %v879
    %881 = vmatmul.f32.gmra.mxu0 %v831
    %v882 = vpop.f32.mrf.mxu0
    %v883 = vadd.f32 0.0, %v882
    %884 = vmatmul.f32.gmra.mxu0 %v846
    %v885 = vpop.f32.mrf.mxu0
    %v886 = vadd.f32 0.0, %v885
    %887 = vmatmul.f32.gmra.mxu0 %v861
    %v888 = vpop.f32.mrf.mxu0
    %v889 = vadd.f32 0.0, %v888
    %890 = vdwg.mxu0
    %v891 = vmul.f32 %v357, %v880
    %v892 = vmul.f32 %v358, %v883
    %v893 = vmul.f32 %v359, %v886
    %v894 = vmul.f32 %v360, %v889
    %895 = vmatpush.msra.mxu0 0.0
    %896 = vmatpush.msra.mxu0 0.0
    %897 = vmatpush.msra.mxu0 0.0
    %898 = vmatpush.msra.mxu0 0.0
    %899 = vmatpush.msra.mxu0 0.0
    %900 = vmatpush.msra.mxu0 0.0
    %901 = vmatpush.msra.mxu0 0.0
    %902 = vmatpush.msra.mxu0 0.0
    %903 = vmatpush.msra.mxu0 0.0
    %904 = vmatpush.msra.mxu0 0.0
    %905 = vmatpush.msra.mxu0 0.0
    %906 = vmatpush.msra.mxu0 0.0
    %907 = vmatpush.msra.mxu0 %v894
    %908 = vmatpush.msra.mxu0 %v893
    %909 = vmatpush.msra.mxu0 %v892
    %910 = vmatpush.msra.mxu0 %v891
    %911 = vmatmul.f32.gmra.mxu0 %v733
    %v912 = vpop.f32.mrf.mxu0
    %v913 = vadd.f32 0.0, %v912
    %914 = vmatmul.f32.gmra.mxu0 %v736
    %v915 = vpop.f32.mrf.mxu0
    %v916 = vadd.f32 0.0, %v915
    %917 = vdwg.mxu0
    %918 = vmatpush.msra.mxu0 %v255
    %919 = vmatpush.msra.mxu0 %v254
    %920 = vmatpush.msra.mxu0 %v253
    %921 = vmatpush.msra.mxu0 %v252
    %922 = vmatpush.msra.mxu0 %v251
    %923 = vmatpush.msra.mxu0 %v250
    %924 = vmatpush.msra.mxu0 %v249
    %925 = vmatpush.msra.mxu0 %v248
    %926 = vmatpush.msra.mxu0 %v247
    %927 = vmatpush.msra.mxu0 %v246
    %928 = vmatpush.msra.mxu0 %v245
    %929 = vmatpush.msra.mxu0 %v244
    %930 = vmatpush.msra.mxu0 %v243
    %931 = vmatpush.msra.mxu0 %v242
    %932 = vmatpush.msra.mxu0 %v241
    %933 = vmatpush.msra.mxu0 %v240
    %934 = vmatmul.f32.gmra.mxu0 %v913
    %v935 = vpop.f32.mrf.mxu0
    %v936 = vadd.f32 0.0, %v935
    %937 = vmatmul.f32.gmra.mxu0 %v916
    %v938 = vpop.f32.mrf.mxu0
    %v939 = vadd.f32 0.0, %v938
    %940 = vdwg.mxu0
    %v941 = vmul.f32 %v936, 0.2
    %v942 = vmul.f32 %v939, 0.2
    %943 = vmatpush.msra.mxu0 %v205
    %944 = vmatpush.msra.mxu0 %v204
    %945 = vmatpush.msra.mxu0 %v203
    %946 = vmatpush.msra.mxu0 %v202
    %947 = vmatpush.msra.mxu0 %v201
    %948 = vmatpush.msra.mxu0 %v200
    %949 = vmatpush.msra.mxu0 %v199
    %950 = vmatpush.msra.mxu0 %v198
    %951 = vmatpush.msra.mxu0 %v197
    %952 = vmatpush.msra.mxu0 %v196
    %953 = vmatpush.msra.mxu0 %v195
    %954 = vmatpush.msra.mxu0 %v194
    %955 = vmatpush.msra.mxu0 %v193
    %956 = vmatpush.msra.mxu0 %v192
    %957 = vmatpush.msra.mxu0 %v191
    %958 = vmatpush.msra.mxu0 %v190
    %959 = vmatmul.f32.gmra.mxu0 %v168
    %v960 = vpop.f32.mrf.mxu0
    %v961 = vadd.f32 0.0, %v960
    %962 = vmatmul.f32.gmra.mxu0 %v169
    %v963 = vpop.f32.mrf.mxu0
    %v964 = vadd.f32 0.0, %v963
    %965 = vdwg.mxu0
    %v966 = vadd.f32 %v941, %v961
    %v967 = vadd.f32 %v942, %v964
    %v969 = vperm.slane %v206, 0
    %v971 = vadd.f32 %v966, %v969
    %v972 = vadd.f32 %v967, %v969
    %v973 = vmax.f32 %v971, 0.0
    %v974 = vmax.f32 %v972, 0.0
    %s975 = scalar_lea.vmem [#allocation2], 128
    %v976 = vld [vmem:[%s975] sm:$0xff]
    %v977 = vld [vmem:[%s975 + $0x8] sm:$0xff]
    %v978 = vld [vmem:[%s975 + $0x10] sm:$0xff]
    %v979 = vld [vmem:[%s975 + $0x18] sm:$0xff]
    %v980 = vld [vmem:[%s975 + $0x20] sm:$0xff]
    %v981 = vld [vmem:[%s975 + $0x28] sm:$0xff]
    %v982 = vld [vmem:[%s975 + $0x30] sm:$0xff]
    %v983 = vld [vmem:[%s975 + $0x38] sm:$0xff]
    %v984 = vld [vmem:[%s975 + $0x40] sm:$0xff]
    %v985 = vld [vmem:[%s975 + $0x48] sm:$0xff]
    %v986 = vld [vmem:[%s975 + $0x50] sm:$0xff]
    %v987 = vld [vmem:[%s975 + $0x58] sm:$0xff]
    %v988 = vld [vmem:[%s975 + $0x60] sm:$0xff]
    %v989 = vld [vmem:[%s975 + $0x68] sm:$0xff]
    %v990 = vld [vmem:[%s975 + $0x70] sm:$0xff]
    %v991 = vld [vmem:[%s975 + $0x78] sm:$0xff]
    %s992 = scalar_lea.vmem %s6, 1
    %v993 = vld [vmem:[%s992] sm:$0x1]
    %s994 = scalar_lea.vmem %s7, 1
    %v995 = vld [vmem:[%s994] sm:$0x1]
    %s996 = scalar_lea.vmem [#allocation5], 128
    %v997 = vld [vmem:[%s996] sm:$0xff]
    %v998 = vld [vmem:[%s996 + $0x8] sm:$0xff]
    %v999 = vld [vmem:[%s996 + $0x10] sm:$0xff]
    %v1000 = vld [vmem:[%s996 + $0x18] sm:$0xff]
    %v1001 = vld [vmem:[%s996 + $0x20] sm:$0xff]
    %v1002 = vld [vmem:[%s996 + $0x28] sm:$0xff]
    %v1003 = vld [vmem:[%s996 + $0x30] sm:$0xff]
    %v1004 = vld [vmem:[%s996 + $0x38] sm:$0xff]
    %v1005 = vld [vmem:[%s996 + $0x40] sm:$0xff]
    %v1006 = vld [vmem:[%s996 + $0x48] sm:$0xff]
    %v1007 = vld [vmem:[%s996 + $0x50] sm:$0xff]
    %v1008 = vld [vmem:[%s996 + $0x58] sm:$0xff]
    %v1009 = vld [vmem:[%s996 + $0x60] sm:$0xff]
    %v1010 = vld [vmem:[%s996 + $0x68] sm:$0xff]
    %v1011 = vld [vmem:[%s996 + $0x70] sm:$0xff]
    %v1012 = vld [vmem:[%s996 + $0x78] sm:$0xff]
    %s1013 = scalar_lea.vmem %s9, 1
    %v1014 = vld [vmem:[%s1013] sm:$0x1]
    %s1015 = scalar_lea.vmem %s10, 1
    %v1016 = vld [vmem:[%s1015] sm:$0x1]
    %s1017 = scalar_lea.vmem [#allocation7], 128
    %v1018 = vld [vmem:[%s1017] sm:$0xff]
    %v1019 = vld [vmem:[%s1017 + $0x8] sm:$0xff]
    %v1020 = vld [vmem:[%s1017 + $0x10] sm:$0xff]
    %v1021 = vld [vmem:[%s1017 + $0x18] sm:$0xff]
    %v1022 = vld [vmem:[%s1017 + $0x20] sm:$0xff]
    %v1023 = vld [vmem:[%s1017 + $0x28] sm:$0xff]
    %v1024 = vld [vmem:[%s1017 + $0x30] sm:$0xff]
    %v1025 = vld [vmem:[%s1017 + $0x38] sm:$0xff]
    %v1026 = vld [vmem:[%s1017 + $0x40] sm:$0xff]
    %v1027 = vld [vmem:[%s1017 + $0x48] sm:$0xff]
    %v1028 = vld [vmem:[%s1017 + $0x50] sm:$0xff]
    %v1029 = vld [vmem:[%s1017 + $0x58] sm:$0xff]
    %v1030 = vld [vmem:[%s1017 + $0x60] sm:$0xff]
    %v1031 = vld [vmem:[%s1017 + $0x68] sm:$0xff]
    %v1032 = vld [vmem:[%s1017 + $0x70] sm:$0xff]
    %v1033 = vld [vmem:[%s1017 + $0x78] sm:$0xff]
    %s1034 = scalar_lea.vmem [#allocation8], 128
    %v1035 = vld [vmem:[%s1034] sm:$0xff]
    %v1036 = vld [vmem:[%s1034 + $0x8] sm:$0xff]
    %v1037 = vld [vmem:[%s1034 + $0x10] sm:$0xff]
    %v1038 = vld [vmem:[%s1034 + $0x18] sm:$0xff]
    %v1039 = vld [vmem:[%s1034 + $0x20] sm:$0xff]
    %v1040 = vld [vmem:[%s1034 + $0x28] sm:$0xff]
    %v1041 = vld [vmem:[%s1034 + $0x30] sm:$0xff]
    %v1042 = vld [vmem:[%s1034 + $0x38] sm:$0xff]
    %v1043 = vld [vmem:[%s1034 + $0x40] sm:$0xff]
    %v1044 = vld [vmem:[%s1034 + $0x48] sm:$0xff]
    %v1045 = vld [vmem:[%s1034 + $0x50] sm:$0xff]
    %v1046 = vld [vmem:[%s1034 + $0x58] sm:$0xff]
    %v1047 = vld [vmem:[%s1034 + $0x60] sm:$0xff]
    %v1048 = vld [vmem:[%s1034 + $0x68] sm:$0xff]
    %v1049 = vld [vmem:[%s1034 + $0x70] sm:$0xff]
    %v1050 = vld [vmem:[%s1034 + $0x78] sm:$0xff]
    %s1051 = scalar_lea.vmem [#allocation10], 128
    %v1052 = vld [vmem:[%s1051] sm:$0xff]
    %v1053 = vld [vmem:[%s1051 + $0x8] sm:$0xff]
    %v1054 = vld [vmem:[%s1051 + $0x10] sm:$0xff]
    %v1055 = vld [vmem:[%s1051 + $0x18] sm:$0xff]
    %v1056 = vld [vmem:[%s1051 + $0x20] sm:$0xff]
    %v1057 = vld [vmem:[%s1051 + $0x28] sm:$0xff]
    %v1058 = vld [vmem:[%s1051 + $0x30] sm:$0xff]
    %v1059 = vld [vmem:[%s1051 + $0x38] sm:$0xff]
    %v1060 = vld [vmem:[%s1051 + $0x40] sm:$0xff]
    %v1061 = vld [vmem:[%s1051 + $0x48] sm:$0xff]
    %v1062 = vld [vmem:[%s1051 + $0x50] sm:$0xff]
    %v1063 = vld [vmem:[%s1051 + $0x58] sm:$0xff]
    %v1064 = vld [vmem:[%s1051 + $0x60] sm:$0xff]
    %v1065 = vld [vmem:[%s1051 + $0x68] sm:$0xff]
    %v1066 = vld [vmem:[%s1051 + $0x70] sm:$0xff]
    %v1067 = vld [vmem:[%s1051 + $0x78] sm:$0xff]
    %1068 = vmatpush.msra.mxu0 0.0
    %1069 = vmatpush.msra.mxu0 0.0
    %1070 = vmatpush.msra.mxu0 0.0
    %1071 = vmatpush.msra.mxu0 0.0
    %1072 = vmatpush.msra.mxu0 0.0
    %1073 = vmatpush.msra.mxu0 0.0
    %1074 = vmatpush.msra.mxu0 0.0
    %1075 = vmatpush.msra.mxu0 0.0
    %1076 = vmatpush.msra.mxu0 0.0
    %1077 = vmatpush.msra.mxu0 0.0
    %1078 = vmatpush.msra.mxu0 0.0
    %1079 = vmatpush.msra.mxu0 0.0
    %1080 = vmatpush.msra.mxu0 0.0
    %1081 = vmatpush.msra.mxu0 0.0
    %1082 = vmatpush.msra.mxu0 %v974
    %1083 = vmatpush.msra.mxu0 %v973
    %1084 = vmatmul.f32.gmra.mxu0 %v258
    %v1085 = vpop.f32.mrf.mxu0
    %v1086 = vadd.f32 0.0, %v1085
    %1087 = vmatmul.f32.gmra.mxu0 %v261
    %v1088 = vpop.f32.mrf.mxu0
    %v1089 = vadd.f32 0.0, %v1088
    %1090 = vmatmul.f32.gmra.mxu0 %v264
    %v1091 = vpop.f32.mrf.mxu0
    %v1092 = vadd.f32 0.0, %v1091
    %1093 = vmatmul.f32.gmra.mxu0 %v267
    %v1094 = vpop.f32.mrf.mxu0
    %v1095 = vadd.f32 0.0, %v1094
    %1096 = vdwg.mxu0
    %v1098 = vperm.slane %v993, 0
    %v1100 = vmul.f32 %v301, %v1098
    %v1101 = vmul.f32 %v306, %v1098
    %v1102 = vmul.f32 %v311, %v1098
    %v1103 = vmul.f32 %v316, %v1098
    %1104 = vmatpush.msra.mxu0 %v991
    %1105 = vmatpush.msra.mxu0 %v990
    %1106 = vmatpush.msra.mxu0 %v989
    %1107 = vmatpush.msra.mxu0 %v988
    %1108 = vmatpush.msra.mxu0 %v987
    %1109 = vmatpush.msra.mxu0 %v986
    %1110 = vmatpush.msra.mxu0 %v985
    %1111 = vmatpush.msra.mxu0 %v984
    %1112 = vmatpush.msra.mxu0 %v983
    %1113 = vmatpush.msra.mxu0 %v982
    %1114 = vmatpush.msra.mxu0 %v981
    %1115 = vmatpush.msra.mxu0 %v980
    %1116 = vmatpush.msra.mxu0 %v979
    %1117 = vmatpush.msra.mxu0 %v978
    %1118 = vmatpush.msra.mxu0 %v977
    %1119 = vmatpush.msra.mxu0 %v976
    %1120 = vmatmul.f32.gmra.mxu0 %v1086
    %v1121 = vpop.f32.mrf.mxu0
    %v1122 = vadd.f32 %v1100, %v1121
    %1123 = vmatmul.f32.gmra.mxu0 %v1089
    %v1124 = vpop.f32.mrf.mxu0
    %v1125 = vadd.f32 %v1101, %v1124
    %1126 = vmatmul.f32.gmra.mxu0 %v1092
    %v1127 = vpop.f32.mrf.mxu0
    %v1128 = vadd.f32 %v1102, %v1127
    %1129 = vmatmul.f32.gmra.mxu0 %v1095
    %v1130 = vpop.f32.mrf.mxu0
    %v1131 = vadd.f32 %v1103, %v1130
    %1132 = vdwg.mxu0
    %v1134 = vperm.slane %v995, 0
    %v1136 = vadd.f32 %v1122, %v1134
    %v1137 = vadd.f32 %v1125, %v1134
    %v1138 = vadd.f32 %v1128, %v1134
    %v1139 = vadd.f32 %v1131, %v1134
    %v1141 = vperm.slane %v1016, 0
    %v1143 = vmul.f32 %v1136, %v1141
    %v1144 = vmul.f32 %v1137, %v1141
    %v1145 = vmul.f32 %v1138, %v1141
    %v1146 = vmul.f32 %v1139, %v1141
    %1147 = vmatpush.msra.mxu0 %v1033
    %1148 = vmatpush.msra.mxu0 %v1032
    %1149 = vmatpush.msra.mxu0 %v1031
    %1150 = vmatpush.msra.mxu0 %v1030
    %1151 = vmatpush.msra.mxu0 %v1029
    %1152 = vmatpush.msra.mxu0 %v1028
    %1153 = vmatpush.msra.mxu0 %v1027
    %1154 = vmatpush.msra.mxu0 %v1026
    %1155 = vmatpush.msra.mxu0 %v1025
    %1156 = vmatpush.msra.mxu0 %v1024
    %1157 = vmatpush.msra.mxu0 %v1023
    %1158 = vmatpush.msra.mxu0 %v1022
    %1159 = vmatpush.msra.mxu0 %v1021
    %1160 = vmatpush.msra.mxu0 %v1020
    %1161 = vmatpush.msra.mxu0 %v1019
    %1162 = vmatpush.msra.mxu0 %v1018
    %1163 = vmatmul.f32.gmra.mxu0 %v1143
    %v1164 = vpop.f32.mrf.mxu0
    %v1165 = vadd.f32 0.0, %v1164
    %1166 = vmatmul.f32.gmra.mxu0 %v1144
    %v1167 = vpop.f32.mrf.mxu0
    %v1168 = vadd.f32 0.0, %v1167
    %1169 = vmatmul.f32.gmra.mxu0 %v1145
    %v1170 = vpop.f32.mrf.mxu0
    %v1171 = vadd.f32 0.0, %v1170
    %1172 = vmatmul.f32.gmra.mxu0 %v1146
    %v1173 = vpop.f32.mrf.mxu0
    %v1174 = vadd.f32 0.0, %v1173
    %1175 = vdwg.mxu0
    %vm1176 = vcmp.gt.f32.partialorder %v1165, 0.0
    %vm1177 = vcmp.gt.f32.partialorder %v1168, 0.0
    %vm1178 = vcmp.gt.f32.partialorder %v1171, 0.0
    %vm1179 = vcmp.gt.f32.partialorder %v1174, 0.0
    %v1180 = vmul.f32 %v1165, 0.2
    %v1181 = vmul.f32 %v1168, 0.2
    %v1182 = vmul.f32 %v1171, 0.2
    %v1183 = vmul.f32 %v1174, 0.2
    %v1184 = vsel %vm1176, %v1165, %v1180
    %v1185 = vsel %vm1177, %v1168, %v1181
    %v1186 = vsel %vm1178, %v1171, %v1182
    %v1187 = vsel %vm1179, %v1174, %v1183
    %1189 = vset.pattern.permute.xlu0 0
    %1190 = vperm.xlu0 %1189, %v1184
    %v1191 = vpop.permute.xlu0 %1190
    %1194 = vset.pattern.permute.xlu0 0
    %1195 = vperm.xlu0 %1194, %v1185
    %v1196 = vpop.permute.xlu0 %1195
    %1199 = vset.pattern.permute.xlu0 0
    %1200 = vperm.xlu0 %1199, %v1186
    %v1201 = vpop.permute.xlu0 %1200
    %1204 = vset.pattern.permute.xlu0 0
    %1205 = vperm.xlu0 %1204, %v1187
    %v1206 = vpop.permute.xlu0 %1205
    %v1208 = vsel %vm409, %v1191, -3.4028235e+38
    %v1209 = vsel %vm410, %v1196, -3.4028235e+38
    %v1210 = vsel %vm411, %v1201, -3.4028235e+38
    %v1211 = vsel %vm412, %v1206, -3.4028235e+38
    %v1212 = vsel %vm256, %v1208, -inf
    %v1213 = vsel %vm256, %v1209, -inf
    %v1214 = vsel %vm256, %v1210, -inf
    %v1215 = vsel %vm256, %v1211, -inf
    %v1216 = vmax.f32 %v1212, %v1213
    %v1217 = vmax.f32 %v1214, %v1215
    %v1218 = vmax.f32 %v1216, %v1217
    %v1219 = vrot.slane %v1218, 4
    %v1220 = vmax.f32 %v1218, %v1219
    %v1221 = vrot.slane %v1220, 2
    %v1222 = vmax.f32 %v1220, %v1221
    %v1223 = vrot.slane %v1222, 1
    %v1224 = vmax.f32 %v1222, %v1223
    %v1225 = vsel %vm409, %v1224, -3.4028235e+38
    %v1226 = vsel %vm410, %v1224, -3.4028235e+38
    %v1227 = vsel %vm411, %v1224, -3.4028235e+38
    %v1228 = vsel %vm412, %v1224, -3.4028235e+38
    %v1229 = vsel %vm256, %v1225, -inf
    %1230 = vmax.xlane.f32.xlu0 %v1229
    %v1231 = vpop.xlane.xlu0 %1230
    %v1232 = vsel %vm256, %v1226, -inf
    %1233 = vmax.xlane.f32.xlu0 %v1232
    %v1234 = vpop.xlane.xlu0 %1233
    %v1235 = vsel %vm256, %v1227, -inf
    %1236 = vmax.xlane.f32.xlu0 %v1235
    %v1237 = vpop.xlane.xlu0 %1236
    %v1238 = vsel %vm256, %v1228, -inf
    %1239 = vmax.xlane.f32.xlu0 %v1238
    %v1240 = vpop.xlane.xlu0 %1239
    %v1241 = vsel %vm466, %v1231, 0.0
    %v1242 = vsel %vm466, %v1234, 0.0
    %v1243 = vsel %vm466, %v1237, 0.0
    %v1244 = vsel %vm466, %v1240, 0.0
    %1245 = vset.pattern.permute.xlu0 1
    %1246 = vperm.xlu0 %1245, %v1184
    %v1247 = vpop.permute.xlu0 %1246
    %1249 = vset.pattern.permute.xlu0 1
    %1250 = vperm.xlu0 %1249, %v1185
    %v1251 = vpop.permute.xlu0 %1250
    %1253 = vset.pattern.permute.xlu0 1
    %1254 = vperm.xlu0 %1253, %v1186
    %v1255 = vpop.permute.xlu0 %1254
    %1257 = vset.pattern.permute.xlu0 1
    %1258 = vperm.xlu0 %1257, %v1187
    %v1259 = vpop.permute.xlu0 %1258
    %v1261 = vsel %vm409, %v1247, -3.4028235e+38
    %v1262 = vsel %vm410, %v1251, -3.4028235e+38
    %v1263 = vsel %vm411, %v1255, -3.4028235e+38
    %v1264 = vsel %vm412, %v1259, -3.4028235e+38
    %v1265 = vsel %vm256, %v1261, -inf
    %v1266 = vsel %vm256, %v1262, -inf
    %v1267 = vsel %vm256, %v1263, -inf
    %v1268 = vsel %vm256, %v1264, -inf
    %v1269 = vmax.f32 %v1265, %v1266
    %v1270 = vmax.f32 %v1267, %v1268
    %v1271 = vmax.f32 %v1269, %v1270
    %v1272 = vrot.slane %v1271, 4
    %v1273 = vmax.f32 %v1271, %v1272
    %v1274 = vrot.slane %v1273, 2
    %v1275 = vmax.f32 %v1273, %v1274
    %v1276 = vrot.slane %v1275, 1
    %v1277 = vmax.f32 %v1275, %v1276
    %v1278 = vsel %vm409, %v1277, -3.4028235e+38
    %v1279 = vsel %vm410, %v1277, -3.4028235e+38
    %v1280 = vsel %vm411, %v1277, -3.4028235e+38
    %v1281 = vsel %vm412, %v1277, -3.4028235e+38
    %v1282 = vsel %vm256, %v1278, -inf
    %1283 = vmax.xlane.f32.xlu0 %v1282
    %v1284 = vpop.xlane.xlu0 %1283
    %v1285 = vsel %vm256, %v1279, -inf
    %1286 = vmax.xlane.f32.xlu0 %v1285
    %v1287 = vpop.xlane.xlu0 %1286
    %v1288 = vsel %vm256, %v1280, -inf
    %1289 = vmax.xlane.f32.xlu0 %v1288
    %v1290 = vpop.xlane.xlu0 %1289
    %v1291 = vsel %vm256, %v1281, -inf
    %1292 = vmax.xlane.f32.xlu0 %v1291
    %v1293 = vpop.xlane.xlu0 %1292
    %v1294 = vsel %vm520, %v1284, %v1241
    %v1295 = vsel %vm520, %v1287, %v1242
    %v1296 = vsel %vm520, %v1290, %v1243
    %v1297 = vsel %vm520, %v1293, %v1244
    %1298 = vset.pattern.permute.xlu0 2
    %1299 = vperm.xlu0 %1298, %v1184
    %v1300 = vpop.permute.xlu0 %1299
    %1302 = vset.pattern.permute.xlu0 2
    %1303 = vperm.xlu0 %1302, %v1185
    %v1304 = vpop.permute.xlu0 %1303
    %1306 = vset.pattern.permute.xlu0 2
    %1307 = vperm.xlu0 %1306, %v1186
    %v1308 = vpop.permute.xlu0 %1307
    %1310 = vset.pattern.permute.xlu0 2
    %1311 = vperm.xlu0 %1310, %v1187
    %v1312 = vpop.permute.xlu0 %1311
    %v1314 = vsel %vm409, %v1300, -3.4028235e+38
    %v1315 = vsel %vm410, %v1304, -3.4028235e+38
    %v1316 = vsel %vm411, %v1308, -3.4028235e+38
    %v1317 = vsel %vm412, %v1312, -3.4028235e+38
    %v1318 = vsel %vm256, %v1314, -inf
    %v1319 = vsel %vm256, %v1315, -inf
    %v1320 = vsel %vm256, %v1316, -inf
    %v1321 = vsel %vm256, %v1317, -inf
    %v1322 = vmax.f32 %v1318, %v1319
    %v1323 = vmax.f32 %v1320, %v1321
    %v1324 = vmax.f32 %v1322, %v1323
    %v1325 = vrot.slane %v1324, 4
    %v1326 = vmax.f32 %v1324, %v1325
    %v1327 = vrot.slane %v1326, 2
    %v1328 = vmax.f32 %v1326, %v1327
    %v1329 = vrot.slane %v1328, 1
    %v1330 = vmax.f32 %v1328, %v1329
    %v1331 = vsel %vm409, %v1330, -3.4028235e+38
    %v1332 = vsel %vm410, %v1330, -3.4028235e+38
    %v1333 = vsel %vm411, %v1330, -3.4028235e+38
    %v1334 = vsel %vm412, %v1330, -3.4028235e+38
    %v1335 = vsel %vm256, %v1331, -inf
    %1336 = vmax.xlane.f32.xlu0 %v1335
    %v1337 = vpop.xlane.xlu0 %1336
    %v1338 = vsel %vm256, %v1332, -inf
    %1339 = vmax.xlane.f32.xlu0 %v1338
    %v1340 = vpop.xlane.xlu0 %1339
    %v1341 = vsel %vm256, %v1333, -inf
    %1342 = vmax.xlane.f32.xlu0 %v1341
    %v1343 = vpop.xlane.xlu0 %1342
    %v1344 = vsel %vm256, %v1334, -inf
    %1345 = vmax.xlane.f32.xlu0 %v1344
    %v1346 = vpop.xlane.xlu0 %1345
    %v1347 = vsel %vm574, %v1337, %v1294
    %v1348 = vsel %vm574, %v1340, %v1295
    %v1349 = vsel %vm574, %v1343, %v1296
    %v1350 = vsel %vm574, %v1346, %v1297
    %1351 = vset.pattern.permute.xlu0 3
    %1352 = vperm.xlu0 %1351, %v1184
    %v1353 = vpop.permute.xlu0 %1352
    %1355 = vset.pattern.permute.xlu0 3
    %1356 = vperm.xlu0 %1355, %v1185
    %v1357 = vpop.permute.xlu0 %1356
    %1359 = vset.pattern.permute.xlu0 3
    %1360 = vperm.xlu0 %1359, %v1186
    %v1361 = vpop.permute.xlu0 %1360
    %1363 = vset.pattern.permute.xlu0 3
    %1364 = vperm.xlu0 %1363, %v1187
    %v1365 = vpop.permute.xlu0 %1364
    %v1367 = vsel %vm409, %v1353, -3.4028235e+38
    %v1368 = vsel %vm410, %v1357, -3.4028235e+38
    %v1369 = vsel %vm411, %v1361, -3.4028235e+38
    %v1370 = vsel %vm412, %v1365, -3.4028235e+38
    %v1371 = vsel %vm256, %v1367, -inf
    %v1372 = vsel %vm256, %v1368, -inf
    %v1373 = vsel %vm256, %v1369, -inf
    %v1374 = vsel %vm256, %v1370, -inf
    %v1375 = vmax.f32 %v1371, %v1372
    %v1376 = vmax.f32 %v1373, %v1374
    %v1377 = vmax.f32 %v1375, %v1376
    %v1378 = vrot.slane %v1377, 4
    %v1379 = vmax.f32 %v1377, %v1378
    %v1380 = vrot.slane %v1379, 2
    %v1381 = vmax.f32 %v1379, %v1380
    %v1382 = vrot.slane %v1381, 1
    %v1383 = vmax.f32 %v1381, %v1382
    %v1384 = vsel %vm409, %v1383, -3.4028235e+38
    %v1385 = vsel %vm410, %v1383, -3.4028235e+38
    %v1386 = vsel %vm411, %v1383, -3.4028235e+38
    %v1387 = vsel %vm412, %v1383, -3.4028235e+38
    %v1388 = vsel %vm256, %v1384, -inf
    %1389 = vmax.xlane.f32.xlu0 %v1388
    %v1390 = vpop.xlane.xlu0 %1389
    %v1391 = vsel %vm256, %v1385, -inf
    %1392 = vmax.xlane.f32.xlu0 %v1391
    %v1393 = vpop.xlane.xlu0 %1392
    %v1394 = vsel %vm256, %v1386, -inf
    %1395 = vmax.xlane.f32.xlu0 %v1394
    %v1396 = vpop.xlane.xlu0 %1395
    %v1397 = vsel %vm256, %v1387, -inf
    %1398 = vmax.xlane.f32.xlu0 %v1397
    %v1399 = vpop.xlane.xlu0 %1398
    %v1400 = vsel %vm628, %v1390, %v1347
    %v1401 = vsel %vm628, %v1393, %v1348
    %v1402 = vsel %vm628, %v1396, %v1349
    %v1403 = vsel %vm628, %v1399, %v1350
    %1404 = vset.pattern.permute.xlu0 4
    %1405 = vperm.xlu0 %1404, %v1184
    %v1406 = vpop.permute.xlu0 %1405
    %1408 = vset.pattern.permute.xlu0 4
    %1409 = vperm.xlu0 %1408, %v1185
    %v1410 = vpop.permute.xlu0 %1409
    %1412 = vset.pattern.permute.xlu0 4
    %1413 = vperm.xlu0 %1412, %v1186
    %v1414 = vpop.permute.xlu0 %1413
    %1416 = vset.pattern.permute.xlu0 4
    %1417 = vperm.xlu0 %1416, %v1187
    %v1418 = vpop.permute.xlu0 %1417
    %v1420 = vsel %vm409, %v1406, -3.4028235e+38
    %v1421 = vsel %vm410, %v1410, -3.4028235e+38
    %v1422 = vsel %vm411, %v1414, -3.4028235e+38
    %v1423 = vsel %vm412, %v1418, -3.4028235e+38
    %v1424 = vsel %vm256, %v1420, -inf
    %v1425 = vsel %vm256, %v1421, -inf
    %v1426 = vsel %vm256, %v1422, -inf
    %v1427 = vsel %vm256, %v1423, -inf
    %v1428 = vmax.f32 %v1424, %v1425
    %v1429 = vmax.f32 %v1426, %v1427
    %v1430 = vmax.f32 %v1428, %v1429
    %v1431 = vrot.slane %v1430, 4
    %v1432 = vmax.f32 %v1430, %v1431
    %v1433 = vrot.slane %v1432, 2
    %v1434 = vmax.f32 %v1432, %v1433
    %v1435 = vrot.slane %v1434, 1
    %v1436 = vmax.f32 %v1434, %v1435
    %v1437 = vsel %vm409, %v1436, -3.4028235e+38
    %v1438 = vsel %vm410, %v1436, -3.4028235e+38
    %v1439 = vsel %vm411, %v1436, -3.4028235e+38
    %v1440 = vsel %vm412, %v1436, -3.4028235e+38
    %v1441 = vsel %vm256, %v1437, -inf
    %1442 = vmax.xlane.f32.xlu0 %v1441
    %v1443 = vpop.xlane.xlu0 %1442
    %v1444 = vsel %vm256, %v1438, -inf
    %1445 = vmax.xlane.f32.xlu0 %v1444
    %v1446 = vpop.xlane.xlu0 %1445
    %v1447 = vsel %vm256, %v1439, -inf
    %1448 = vmax.xlane.f32.xlu0 %v1447
    %v1449 = vpop.xlane.xlu0 %1448
    %v1450 = vsel %vm256, %v1440, -inf
    %1451 = vmax.xlane.f32.xlu0 %v1450
    %v1452 = vpop.xlane.xlu0 %1451
    %v1453 = vsel %vm682, %v1443, %v1400
    %v1454 = vsel %vm682, %v1446, %v1401
    %v1455 = vsel %vm682, %v1449, %v1402
    %v1456 = vsel %vm682, %v1452, %v1403
    %v1457 = vsub.f32 %v1184, %v1453
    %v1458 = vsub.f32 %v1185, %v1454
    %v1459 = vsub.f32 %v1186, %v1455
    %v1460 = vsub.f32 %v1187, %v1456
    %v1461 = vmul.f32 %v1457, 1.442695
    %v1462 = vpow.pop %v1461
    %v1463 = vmul.f32 %v1458, 1.442695
    %v1464 = vpow.pop %v1463
    %v1465 = vmul.f32 %v1459, 1.442695
    %v1466 = vpow.pop %v1465
    %v1467 = vmul.f32 %v1460, 1.442695
    %v1468 = vpow.pop %v1467
    %1469 = vmatpush.msra.mxu0 0.0
    %1470 = vmatpush.msra.mxu0 0.0
    %1471 = vmatpush.msra.mxu0 0.0
    %1472 = vmatpush.msra.mxu0 0.0
    %1473 = vmatpush.msra.mxu0 0.0
    %1474 = vmatpush.msra.mxu0 0.0
    %1475 = vmatpush.msra.mxu0 0.0
    %1476 = vmatpush.msra.mxu0 0.0
    %1477 = vmatpush.msra.mxu0 0.0
    %1478 = vmatpush.msra.mxu0 0.0
    %1479 = vmatpush.msra.mxu0 0.0
    %1480 = vmatpush.msra.mxu0 0.0
    %1481 = vmatpush.msra.mxu0 %v1468
    %1482 = vmatpush.msra.mxu0 %v1466
    %1483 = vmatpush.msra.mxu0 %v1464
    %1484 = vmatpush.msra.mxu0 %v1462
    %1485 = vmatmul.f32.gmra.mxu0 %v733
    %v1486 = vpop.f32.mrf.mxu0
    %v1487 = vadd.f32 0.0, %v1486
    %1488 = vmatmul.f32.gmra.mxu0 %v736
    %v1489 = vpop.f32.mrf.mxu0
    %v1490 = vadd.f32 0.0, %v1489
    %1491 = vdwg.mxu0
    %1492 = vmatpush.msra.mxu0 0.0
    %1493 = vmatpush.msra.mxu0 0.0
    %1494 = vmatpush.msra.mxu0 0.0
    %1495 = vmatpush.msra.mxu0 0.0
    %1496 = vmatpush.msra.mxu0 0.0
    %1497 = vmatpush.msra.mxu0 0.0
    %1498 = vmatpush.msra.mxu0 0.0
    %1499 = vmatpush.msra.mxu0 0.0
    %1500 = vmatpush.msra.mxu0 0.0
    %1501 = vmatpush.msra.mxu0 0.0
    %1502 = vmatpush.msra.mxu0 0.0
    %1503 = vmatpush.msra.mxu0 0.0
    %1504 = vmatpush.msra.mxu0 0.0
    %1505 = vmatpush.msra.mxu0 0.0
    %1506 = vmatpush.msra.mxu0 %v1490
    %1507 = vmatpush.msra.mxu0 %v1487
    %1508 = vmatmul.f32.gmra.mxu0 %v762
    %v1509 = vpop.f32.mrf.mxu0
    %v1510 = vadd.f32 1e-16, %v1509
    %1511 = vmatmul.f32.gmra.mxu0 %v765
    %v1512 = vpop.f32.mrf.mxu0
    %v1513 = vadd.f32 1e-16, %v1512
    %1514 = vmatmul.f32.gmra.mxu0 %v768
    %v1515 = vpop.f32.mrf.mxu0
    %v1516 = vadd.f32 1e-16, %v1515
    %1517 = vmatmul.f32.gmra.mxu0 %v771
    %v1518 = vpop.f32.mrf.mxu0
    %v1519 = vadd.f32 1e-16, %v1518
    %1520 = vdwg.mxu0
    %v1521 = vrcp.pop %v1510
    %v1522 = vmul.f32 %v1510, %v1521
    %v1523 = vsub.f32 1.0, %v1522
    %v1524 = vmul.f32 %v1521, %v1523
    %v1525 = vadd.f32 %v1521, %v1524
    %vm1526 = vweird.f32 %v1510
    %vm1527 = vweird.f32 %v1521
    %vm1528 = vmor %vm1526, %vm1527
    %v1529 = vsel %vm1528, %v1521, %v1525
    %v1530 = vand.u32 2147483647, %v1510
    %vm1531 = vcmp.eq.f32.partialorder %v1530, 8.507059e+37
    %v1532 = vand.u32 %v1510, 2147483648
    %v1533 = vor.u32 1.1754944e-38, %v1532
    %v1534 = vsel %vm1531, %v1533, %v1529
    %v1535 = vmul.f32 %v1462, %v1534
    %v1536 = vrcp.pop %v1513
    %v1537 = vmul.f32 %v1513, %v1536
    %v1538 = vsub.f32 1.0, %v1537
    %v1539 = vmul.f32 %v1536, %v1538
    %v1540 = vadd.f32 %v1536, %v1539
    %vm1541 = vweird.f32 %v1513
    %vm1542 = vweird.f32 %v1536
    %vm1543 = vmor %vm1541, %vm1542
    %v1544 = vsel %vm1543, %v1536, %v1540
    %v1545 = vand.u32 2147483647, %v1513
    %vm1546 = vcmp.eq.f32.partialorder %v1545, 8.507059e+37
    %v1547 = vand.u32 %v1513, 2147483648
    %v1548 = vor.u32 1.1754944e-38, %v1547
    %v1549 = vsel %vm1546, %v1548, %v1544
    %v1550 = vmul.f32 %v1464, %v1549
    %v1551 = vrcp.pop %v1516
    %v1552 = vmul.f32 %v1516, %v1551
    %v1553 = vsub.f32 1.0, %v1552
    %v1554 = vmul.f32 %v1551, %v1553
    %v1555 = vadd.f32 %v1551, %v1554
    %vm1556 = vweird.f32 %v1516
    %vm1557 = vweird.f32 %v1551
    %vm1558 = vmor %vm1556, %vm1557
    %v1559 = vsel %vm1558, %v1551, %v1555
    %v1560 = vand.u32 2147483647, %v1516
    %vm1561 = vcmp.eq.f32.partialorder %v1560, 8.507059e+37
    %v1562 = vand.u32 %v1516, 2147483648
    %v1563 = vor.u32 1.1754944e-38, %v1562
    %v1564 = vsel %vm1561, %v1563, %v1559
    %v1565 = vmul.f32 %v1466, %v1564
    %v1566 = vrcp.pop %v1519
    %v1567 = vmul.f32 %v1519, %v1566
    %v1568 = vsub.f32 1.0, %v1567
    %v1569 = vmul.f32 %v1566, %v1568
    %v1570 = vadd.f32 %v1566, %v1569
    %vm1571 = vweird.f32 %v1519
    %vm1572 = vweird.f32 %v1566
    %vm1573 = vmor %vm1571, %vm1572
    %v1574 = vsel %vm1573, %v1566, %v1570
    %v1575 = vand.u32 2147483647, %v1519
    %vm1576 = vcmp.eq.f32.partialorder %v1575, 8.507059e+37
    %v1577 = vand.u32 %v1519, 2147483648
    %v1578 = vor.u32 1.1754944e-38, %v1577
    %v1579 = vsel %vm1576, %v1578, %v1574
    %v1580 = vmul.f32 %v1468, %v1579
    %1581 = vmatpush.msra.mxu0 %v1050
    %1582 = vmatpush.msra.mxu0 %v1049
    %1583 = vmatpush.msra.mxu0 %v1048
    %1584 = vmatpush.msra.mxu0 %v1047
    %1585 = vmatpush.msra.mxu0 %v1046
    %1586 = vmatpush.msra.mxu0 %v1045
    %1587 = vmatpush.msra.mxu0 %v1044
    %1588 = vmatpush.msra.mxu0 %v1043
    %1589 = vmatpush.msra.mxu0 %v1042
    %1590 = vmatpush.msra.mxu0 %v1041
    %1591 = vmatpush.msra.mxu0 %v1040
    %1592 = vmatpush.msra.mxu0 %v1039
    %1593 = vmatpush.msra.mxu0 %v1038
    %1594 = vmatpush.msra.mxu0 %v1037
    %1595 = vmatpush.msra.mxu0 %v1036
    %1596 = vmatpush.msra.mxu0 %v1035
    %1597 = vmatmul.f32.gmra.mxu0 %v1535
    %v1598 = vpop.f32.mrf.mxu0
    %v1599 = vadd.f32 0.0, %v1598
    %1600 = vmatmul.f32.gmra.mxu0 %v1550
    %v1601 = vpop.f32.mrf.mxu0
    %v1602 = vadd.f32 0.0, %v1601
    %1603 = vmatmul.f32.gmra.mxu0 %v1565
    %v1604 = vpop.f32.mrf.mxu0
    %v1605 = vadd.f32 0.0, %v1604
    %1606 = vmatmul.f32.gmra.mxu0 %v1580
    %v1607 = vpop.f32.mrf.mxu0
    %v1608 = vadd.f32 0.0, %v1607
    %1609 = vdwg.mxu0
    %v1610 = vmul.f32 %v1136, %v1599
    %v1611 = vmul.f32 %v1137, %v1602
    %v1612 = vmul.f32 %v1138, %v1605
    %v1613 = vmul.f32 %v1139, %v1608
    %1614 = vmatpush.msra.mxu0 0.0
    %1615 = vmatpush.msra.mxu0 0.0
    %1616 = vmatpush.msra.mxu0 0.0
    %1617 = vmatpush.msra.mxu0 0.0
    %1618 = vmatpush.msra.mxu0 0.0
    %1619 = vmatpush.msra.mxu0 0.0
    %1620 = vmatpush.msra.mxu0 0.0
    %1621 = vmatpush.msra.mxu0 0.0
    %1622 = vmatpush.msra.mxu0 0.0
    %1623 = vmatpush.msra.mxu0 0.0
    %1624 = vmatpush.msra.mxu0 0.0
    %1625 = vmatpush.msra.mxu0 0.0
    %1626 = vmatpush.msra.mxu0 %v1613
    %1627 = vmatpush.msra.mxu0 %v1612
    %1628 = vmatpush.msra.mxu0 %v1611
    %1629 = vmatpush.msra.mxu0 %v1610
    %1630 = vmatmul.f32.gmra.mxu0 %v733
    %v1631 = vpop.f32.mrf.mxu0
    %v1632 = vadd.f32 0.0, %v1631
    %1633 = vmatmul.f32.gmra.mxu0 %v736
    %v1634 = vpop.f32.mrf.mxu0
    %v1635 = vadd.f32 0.0, %v1634
    %1636 = vdwg.mxu0
    %1637 = vmatpush.msra.mxu0 %v1067
    %1638 = vmatpush.msra.mxu0 %v1066
    %1639 = vmatpush.msra.mxu0 %v1065
    %1640 = vmatpush.msra.mxu0 %v1064
    %1641 = vmatpush.msra.mxu0 %v1063
    %1642 = vmatpush.msra.mxu0 %v1062
    %1643 = vmatpush.msra.mxu0 %v1061
    %1644 = vmatpush.msra.mxu0 %v1060
    %1645 = vmatpush.msra.mxu0 %v1059
    %1646 = vmatpush.msra.mxu0 %v1058
    %1647 = vmatpush.msra.mxu0 %v1057
    %1648 = vmatpush.msra.mxu0 %v1056
    %1649 = vmatpush.msra.mxu0 %v1055
    %1650 = vmatpush.msra.mxu0 %v1054
    %1651 = vmatpush.msra.mxu0 %v1053
    %1652 = vmatpush.msra.mxu0 %v1052
    %1653 = vmatmul.f32.gmra.mxu0 %v1632
    %v1654 = vpop.f32.mrf.mxu0
    %v1655 = vadd.f32 0.0, %v1654
    %1656 = vmatmul.f32.gmra.mxu0 %v1635
    %v1657 = vpop.f32.mrf.mxu0
    %v1658 = vadd.f32 0.0, %v1657
    %1659 = vdwg.mxu0
    %v1660 = vmul.f32 %v1655, 0.2
    %v1661 = vmul.f32 %v1658, 0.2
    %1662 = vmatpush.msra.mxu0 %v1012
    %1663 = vmatpush.msra.mxu0 %v1011
    %1664 = vmatpush.msra.mxu0 %v1010
    %1665 = vmatpush.msra.mxu0 %v1009
    %1666 = vmatpush.msra.mxu0 %v1008
    %1667 = vmatpush.msra.mxu0 %v1007
    %1668 = vmatpush.msra.mxu0 %v1006
    %1669 = vmatpush.msra.mxu0 %v1005
    %1670 = vmatpush.msra.mxu0 %v1004
    %1671 = vmatpush.msra.mxu0 %v1003
    %1672 = vmatpush.msra.mxu0 %v1002
    %1673 = vmatpush.msra.mxu0 %v1001
    %1674 = vmatpush.msra.mxu0 %v1000
    %1675 = vmatpush.msra.mxu0 %v999
    %1676 = vmatpush.msra.mxu0 %v998
    %1677 = vmatpush.msra.mxu0 %v997
    %1678 = vmatmul.f32.gmra.mxu0 %v973
    %v1679 = vpop.f32.mrf.mxu0
    %v1680 = vadd.f32 0.0, %v1679
    %1681 = vmatmul.f32.gmra.mxu0 %v974
    %v1682 = vpop.f32.mrf.mxu0
    %v1683 = vadd.f32 0.0, %v1682
    %1684 = vdwg.mxu0
    %v1685 = vadd.f32 %v1660, %v1680
    %v1686 = vadd.f32 %v1661, %v1683
    %v1688 = vperm.slane %v1014, 0
    %v1690 = vadd.f32 %v1685, %v1688
    %v1691 = vadd.f32 %v1686, %v1688
    %v1692 = vmax.f32 %v1690, 0.0
    %v1693 = vmax.f32 %v1691, 0.0
    %s1694 = scalar_lea.vmem [#allocation2], 256
    %v1695 = vld [vmem:[%s1694] sm:$0xff]
    %v1696 = vld [vmem:[%s1694 + $0x8] sm:$0xff]
    %v1697 = vld [vmem:[%s1694 + $0x10] sm:$0xff]
    %v1698 = vld [vmem:[%s1694 + $0x18] sm:$0xff]
    %v1699 = vld [vmem:[%s1694 + $0x20] sm:$0xff]
    %v1700 = vld [vmem:[%s1694 + $0x28] sm:$0xff]
    %v1701 = vld [vmem:[%s1694 + $0x30] sm:$0xff]
    %v1702 = vld [vmem:[%s1694 + $0x38] sm:$0xff]
    %v1703 = vld [vmem:[%s1694 + $0x40] sm:$0xff]
    %v1704 = vld [vmem:[%s1694 + $0x48] sm:$0xff]
    %v1705 = vld [vmem:[%s1694 + $0x50] sm:$0xff]
    %v1706 = vld [vmem:[%s1694 + $0x58] sm:$0xff]
    %v1707 = vld [vmem:[%s1694 + $0x60] sm:$0xff]
    %v1708 = vld [vmem:[%s1694 + $0x68] sm:$0xff]
    %v1709 = vld [vmem:[%s1694 + $0x70] sm:$0xff]
    %v1710 = vld [vmem:[%s1694 + $0x78] sm:$0xff]
    %s1711 = scalar_lea.vmem %s6, 2
    %v1712 = vld [vmem:[%s1711] sm:$0x1]
    %s1713 = scalar_lea.vmem %s7, 2
    %v1714 = vld [vmem:[%s1713] sm:$0x1]
    %s1715 = scalar_lea.vmem [#allocation5], 256
    %v1716 = vld [vmem:[%s1715] sm:$0xff]
    %v1717 = vld [vmem:[%s1715 + $0x8] sm:$0xff]
    %v1718 = vld [vmem:[%s1715 + $0x10] sm:$0xff]
    %v1719 = vld [vmem:[%s1715 + $0x18] sm:$0xff]
    %v1720 = vld [vmem:[%s1715 + $0x20] sm:$0xff]
    %v1721 = vld [vmem:[%s1715 + $0x28] sm:$0xff]
    %v1722 = vld [vmem:[%s1715 + $0x30] sm:$0xff]
    %v1723 = vld [vmem:[%s1715 + $0x38] sm:$0xff]
    %v1724 = vld [vmem:[%s1715 + $0x40] sm:$0xff]
    %v1725 = vld [vmem:[%s1715 + $0x48] sm:$0xff]
    %v1726 = vld [vmem:[%s1715 + $0x50] sm:$0xff]
    %v1727 = vld [vmem:[%s1715 + $0x58] sm:$0xff]
    %v1728 = vld [vmem:[%s1715 + $0x60] sm:$0xff]
    %v1729 = vld [vmem:[%s1715 + $0x68] sm:$0xff]
    %v1730 = vld [vmem:[%s1715 + $0x70] sm:$0xff]
    %v1731 = vld [vmem:[%s1715 + $0x78] sm:$0xff]
    %s1732 = scalar_lea.vmem %s9, 2
    %v1733 = vld [vmem:[%s1732] sm:$0x1]
    %s1734 = scalar_lea.vmem %s10, 2
    %v1735 = vld [vmem:[%s1734] sm:$0x1]
    %s1736 = scalar_lea.vmem [#allocation7], 256
    %v1737 = vld [vmem:[%s1736] sm:$0xff]
    %v1738 = vld [vmem:[%s1736 + $0x8] sm:$0xff]
    %v1739 = vld [vmem:[%s1736 + $0x10] sm:$0xff]
    %v1740 = vld [vmem:[%s1736 + $0x18] sm:$0xff]
    %v1741 = vld [vmem:[%s1736 + $0x20] sm:$0xff]
    %v1742 = vld [vmem:[%s1736 + $0x28] sm:$0xff]
    %v1743 = vld [vmem:[%s1736 + $0x30] sm:$0xff]
    %v1744 = vld [vmem:[%s1736 + $0x38] sm:$0xff]
    %v1745 = vld [vmem:[%s1736 + $0x40] sm:$0xff]
    %v1746 = vld [vmem:[%s1736 + $0x48] sm:$0xff]
    %v1747 = vld [vmem:[%s1736 + $0x50] sm:$0xff]
    %v1748 = vld [vmem:[%s1736 + $0x58] sm:$0xff]
    %v1749 = vld [vmem:[%s1736 + $0x60] sm:$0xff]
    %v1750 = vld [vmem:[%s1736 + $0x68] sm:$0xff]
    %v1751 = vld [vmem:[%s1736 + $0x70] sm:$0xff]
    %v1752 = vld [vmem:[%s1736 + $0x78] sm:$0xff]
    %s1753 = scalar_lea.vmem [#allocation8], 256
    %v1754 = vld [vmem:[%s1753] sm:$0xff]
    %v1755 = vld [vmem:[%s1753 + $0x8] sm:$0xff]
    %v1756 = vld [vmem:[%s1753 + $0x10] sm:$0xff]
    %v1757 = vld [vmem:[%s1753 + $0x18] sm:$0xff]
    %v1758 = vld [vmem:[%s1753 + $0x20] sm:$0xff]
    %v1759 = vld [vmem:[%s1753 + $0x28] sm:$0xff]
    %v1760 = vld [vmem:[%s1753 + $0x30] sm:$0xff]
    %v1761 = vld [vmem:[%s1753 + $0x38] sm:$0xff]
    %v1762 = vld [vmem:[%s1753 + $0x40] sm:$0xff]
    %v1763 = vld [vmem:[%s1753 + $0x48] sm:$0xff]
    %v1764 = vld [vmem:[%s1753 + $0x50] sm:$0xff]
    %v1765 = vld [vmem:[%s1753 + $0x58] sm:$0xff]
    %v1766 = vld [vmem:[%s1753 + $0x60] sm:$0xff]
    %v1767 = vld [vmem:[%s1753 + $0x68] sm:$0xff]
    %v1768 = vld [vmem:[%s1753 + $0x70] sm:$0xff]
    %v1769 = vld [vmem:[%s1753 + $0x78] sm:$0xff]
    %s1770 = scalar_lea.vmem [#allocation10], 256
    %v1771 = vld [vmem:[%s1770] sm:$0xff]
    %v1772 = vld [vmem:[%s1770 + $0x8] sm:$0xff]
    %v1773 = vld [vmem:[%s1770 + $0x10] sm:$0xff]
    %v1774 = vld [vmem:[%s1770 + $0x18] sm:$0xff]
    %v1775 = vld [vmem:[%s1770 + $0x20] sm:$0xff]
    %v1776 = vld [vmem:[%s1770 + $0x28] sm:$0xff]
    %v1777 = vld [vmem:[%s1770 + $0x30] sm:$0xff]
    %v1778 = vld [vmem:[%s1770 + $0x38] sm:$0xff]
    %v1779 = vld [vmem:[%s1770 + $0x40] sm:$0xff]
    %v1780 = vld [vmem:[%s1770 + $0x48] sm:$0xff]
    %v1781 = vld [vmem:[%s1770 + $0x50] sm:$0xff]
    %v1782 = vld [vmem:[%s1770 + $0x58] sm:$0xff]
    %v1783 = vld [vmem:[%s1770 + $0x60] sm:$0xff]
    %v1784 = vld [vmem:[%s1770 + $0x68] sm:$0xff]
    %v1785 = vld [vmem:[%s1770 + $0x70] sm:$0xff]
    %v1786 = vld [vmem:[%s1770 + $0x78] sm:$0xff]
    %1787 = vmatpush.msra.mxu0 0.0
    %1788 = vmatpush.msra.mxu0 0.0
    %1789 = vmatpush.msra.mxu0 0.0
    %1790 = vmatpush.msra.mxu0 0.0
    %1791 = vmatpush.msra.mxu0 0.0
    %1792 = vmatpush.msra.mxu0 0.0
    %1793 = vmatpush.msra.mxu0 0.0
    %1794 = vmatpush.msra.mxu0 0.0
    %1795 = vmatpush.msra.mxu0 0.0
    %1796 = vmatpush.msra.mxu0 0.0
    %1797 = vmatpush.msra.mxu0 0.0
    %1798 = vmatpush.msra.mxu0 0.0
    %1799 = vmatpush.msra.mxu0 0.0
    %1800 = vmatpush.msra.mxu0 0.0
    %1801 = vmatpush.msra.mxu0 %v1693
    %1802 = vmatpush.msra.mxu0 %v1692
    %1803 = vmatmul.f32.gmra.mxu0 %v258
    %v1804 = vpop.f32.mrf.mxu0
    %v1805 = vadd.f32 0.0, %v1804
    %1806 = vmatmul.f32.gmra.mxu0 %v261
    %v1807 = vpop.f32.mrf.mxu0
    %v1808 = vadd.f32 0.0, %v1807
    %1809 = vmatmul.f32.gmra.mxu0 %v264
    %v1810 = vpop.f32.mrf.mxu0
    %v1811 = vadd.f32 0.0, %v1810
    %1812 = vmatmul.f32.gmra.mxu0 %v267
    %v1813 = vpop.f32.mrf.mxu0
    %v1814 = vadd.f32 0.0, %v1813
    %1815 = vdwg.mxu0
    %v1817 = vperm.slane %v1712, 0
    %v1819 = vmul.f32 %v301, %v1817
    %v1820 = vmul.f32 %v306, %v1817
    %v1821 = vmul.f32 %v311, %v1817
    %v1822 = vmul.f32 %v316, %v1817
    %1823 = vmatpush.msra.mxu0 %v1710
    %1824 = vmatpush.msra.mxu0 %v1709
    %1825 = vmatpush.msra.mxu0 %v1708
    %1826 = vmatpush.msra.mxu0 %v1707
    %1827 = vmatpush.msra.mxu0 %v1706
    %1828 = vmatpush.msra.mxu0 %v1705
    %1829 = vmatpush.msra.mxu0 %v1704
    %1830 = vmatpush.msra.mxu0 %v1703
    %1831 = vmatpush.msra.mxu0 %v1702
    %1832 = vmatpush.msra.mxu0 %v1701
    %1833 = vmatpush.msra.mxu0 %v1700
    %1834 = vmatpush.msra.mxu0 %v1699
    %1835 = vmatpush.msra.mxu0 %v1698
    %1836 = vmatpush.msra.mxu0 %v1697
    %1837 = vmatpush.msra.mxu0 %v1696
    %1838 = vmatpush.msra.mxu0 %v1695
    %1839 = vmatmul.f32.gmra.mxu0 %v1805
    %v1840 = vpop.f32.mrf.mxu0
    %v1841 = vadd.f32 %v1819, %v1840
    %1842 = vmatmul.f32.gmra.mxu0 %v1808
    %v1843 = vpop.f32.mrf.mxu0
    %v1844 = vadd.f32 %v1820, %v1843
    %1845 = vmatmul.f32.gmra.mxu0 %v1811
    %v1846 = vpop.f32.mrf.mxu0
    %v1847 = vadd.f32 %v1821, %v1846
    %1848 = vmatmul.f32.gmra.mxu0 %v1814
    %v1849 = vpop.f32.mrf.mxu0
    %v1850 = vadd.f32 %v1822, %v1849
    %1851 = vdwg.mxu0
    %v1853 = vperm.slane %v1714, 0
    %v1855 = vadd.f32 %v1841, %v1853
    %v1856 = vadd.f32 %v1844, %v1853
    %v1857 = vadd.f32 %v1847, %v1853
    %v1858 = vadd.f32 %v1850, %v1853
    %v1860 = vperm.slane %v1735, 0
    %v1862 = vmul.f32 %v1855, %v1860
    %v1863 = vmul.f32 %v1856, %v1860
    %v1864 = vmul.f32 %v1857, %v1860
    %v1865 = vmul.f32 %v1858, %v1860
    %1866 = vmatpush.msra.mxu0 %v1752
    %1867 = vmatpush.msra.mxu0 %v1751
    %1868 = vmatpush.msra.mxu0 %v1750
    %1869 = vmatpush.msra.mxu0 %v1749
    %1870 = vmatpush.msra.mxu0 %v1748
    %1871 = vmatpush.msra.mxu0 %v1747
    %1872 = vmatpush.msra.mxu0 %v1746
    %1873 = vmatpush.msra.mxu0 %v1745
    %1874 = vmatpush.msra.mxu0 %v1744
    %1875 = vmatpush.msra.mxu0 %v1743
    %1876 = vmatpush.msra.mxu0 %v1742
    %1877 = vmatpush.msra.mxu0 %v1741
    %1878 = vmatpush.msra.mxu0 %v1740
    %1879 = vmatpush.msra.mxu0 %v1739
    %1880 = vmatpush.msra.mxu0 %v1738
    %1881 = vmatpush.msra.mxu0 %v1737
    %1882 = vmatmul.f32.gmra.mxu0 %v1862
    %v1883 = vpop.f32.mrf.mxu0
    %v1884 = vadd.f32 0.0, %v1883
    %1885 = vmatmul.f32.gmra.mxu0 %v1863
    %v1886 = vpop.f32.mrf.mxu0
    %v1887 = vadd.f32 0.0, %v1886
    %1888 = vmatmul.f32.gmra.mxu0 %v1864
    %v1889 = vpop.f32.mrf.mxu0
    %v1890 = vadd.f32 0.0, %v1889
    %1891 = vmatmul.f32.gmra.mxu0 %v1865
    %v1892 = vpop.f32.mrf.mxu0
    %v1893 = vadd.f32 0.0, %v1892
    %1894 = vdwg.mxu0
    %vm1895 = vcmp.gt.f32.partialorder %v1884, 0.0
    %vm1896 = vcmp.gt.f32.partialorder %v1887, 0.0
    %vm1897 = vcmp.gt.f32.partialorder %v1890, 0.0
    %vm1898 = vcmp.gt.f32.partialorder %v1893, 0.0
    %v1899 = vmul.f32 %v1884, 0.2
    %v1900 = vmul.f32 %v1887, 0.2
    %v1901 = vmul.f32 %v1890, 0.2
    %v1902 = vmul.f32 %v1893, 0.2
    %v1903 = vsel %vm1895, %v1884, %v1899
    %v1904 = vsel %vm1896, %v1887, %v1900
    %v1905 = vsel %vm1897, %v1890, %v1901
    %v1906 = vsel %vm1898, %v1893, %v1902
    %1908 = vset.pattern.permute.xlu0 0
    %1909 = vperm.xlu0 %1908, %v1903
    %v1910 = vpop.permute.xlu0 %1909
    %1913 = vset.pattern.permute.xlu0 0
    %1914 = vperm.xlu0 %1913, %v1904
    %v1915 = vpop.permute.xlu0 %1914
    %1918 = vset.pattern.permute.xlu0 0
    %1919 = vperm.xlu0 %1918, %v1905
    %v1920 = vpop.permute.xlu0 %1919
    %1923 = vset.pattern.permute.xlu0 0
    %1924 = vperm.xlu0 %1923, %v1906
    %v1925 = vpop.permute.xlu0 %1924
    %v1927 = vsel %vm409, %v1910, -3.4028235e+38
    %v1928 = vsel %vm410, %v1915, -3.4028235e+38
    %v1929 = vsel %vm411, %v1920, -3.4028235e+38
    %v1930 = vsel %vm412, %v1925, -3.4028235e+38
    %v1931 = vsel %vm256, %v1927, -inf
    %v1932 = vsel %vm256, %v1928, -inf
    %v1933 = vsel %vm256, %v1929, -inf
    %v1934 = vsel %vm256, %v1930, -inf
    %v1935 = vmax.f32 %v1931, %v1932
    %v1936 = vmax.f32 %v1933, %v1934
    %v1937 = vmax.f32 %v1935, %v1936
    %v1938 = vrot.slane %v1937, 4
    %v1939 = vmax.f32 %v1937, %v1938
    %v1940 = vrot.slane %v1939, 2
    %v1941 = vmax.f32 %v1939, %v1940
    %v1942 = vrot.slane %v1941, 1
    %v1943 = vmax.f32 %v1941, %v1942
    %v1944 = vsel %vm409, %v1943, -3.4028235e+38
    %v1945 = vsel %vm410, %v1943, -3.4028235e+38
    %v1946 = vsel %vm411, %v1943, -3.4028235e+38
    %v1947 = vsel %vm412, %v1943, -3.4028235e+38
    %v1948 = vsel %vm256, %v1944, -inf
    %1949 = vmax.xlane.f32.xlu0 %v1948
    %v1950 = vpop.xlane.xlu0 %1949
    %v1951 = vsel %vm256, %v1945, -inf
    %1952 = vmax.xlane.f32.xlu0 %v1951
    %v1953 = vpop.xlane.xlu0 %1952
    %v1954 = vsel %vm256, %v1946, -inf
    %1955 = vmax.xlane.f32.xlu0 %v1954
    %v1956 = vpop.xlane.xlu0 %1955
    %v1957 = vsel %vm256, %v1947, -inf
    %1958 = vmax.xlane.f32.xlu0 %v1957
    %v1959 = vpop.xlane.xlu0 %1958
    %v1960 = vsel %vm466, %v1950, 0.0
    %v1961 = vsel %vm466, %v1953, 0.0
    %v1962 = vsel %vm466, %v1956, 0.0
    %v1963 = vsel %vm466, %v1959, 0.0
    %1964 = vset.pattern.permute.xlu0 1
    %1965 = vperm.xlu0 %1964, %v1903
    %v1966 = vpop.permute.xlu0 %1965
    %1968 = vset.pattern.permute.xlu0 1
    %1969 = vperm.xlu0 %1968, %v1904
    %v1970 = vpop.permute.xlu0 %1969
    %1972 = vset.pattern.permute.xlu0 1
    %1973 = vperm.xlu0 %1972, %v1905
    %v1974 = vpop.permute.xlu0 %1973
    %1976 = vset.pattern.permute.xlu0 1
    %1977 = vperm.xlu0 %1976, %v1906
    %v1978 = vpop.permute.xlu0 %1977
    %v1980 = vsel %vm409, %v1966, -3.4028235e+38
    %v1981 = vsel %vm410, %v1970, -3.4028235e+38
    %v1982 = vsel %vm411, %v1974, -3.4028235e+38
    %v1983 = vsel %vm412, %v1978, -3.4028235e+38
    %v1984 = vsel %vm256, %v1980, -inf
    %v1985 = vsel %vm256, %v1981, -inf
    %v1986 = vsel %vm256, %v1982, -inf
    %v1987 = vsel %vm256, %v1983, -inf
    %v1988 = vmax.f32 %v1984, %v1985
    %v1989 = vmax.f32 %v1986, %v1987
    %v1990 = vmax.f32 %v1988, %v1989
    %v1991 = vrot.slane %v1990, 4
    %v1992 = vmax.f32 %v1990, %v1991
    %v1993 = vrot.slane %v1992, 2
    %v1994 = vmax.f32 %v1992, %v1993
    %v1995 = vrot.slane %v1994, 1
    %v1996 = vmax.f32 %v1994, %v1995
    %v1997 = vsel %vm409, %v1996, -3.4028235e+38
    %v1998 = vsel %vm410, %v1996, -3.4028235e+38
    %v1999 = vsel %vm411, %v1996, -3.4028235e+38
    %v2000 = vsel %vm412, %v1996, -3.4028235e+38
    %v2001 = vsel %vm256, %v1997, -inf
    %2002 = vmax.xlane.f32.xlu0 %v2001
    %v2003 = vpop.xlane.xlu0 %2002
    %v2004 = vsel %vm256, %v1998, -inf
    %2005 = vmax.xlane.f32.xlu0 %v2004
    %v2006 = vpop.xlane.xlu0 %2005
    %v2007 = vsel %vm256, %v1999, -inf
    %2008 = vmax.xlane.f32.xlu0 %v2007
    %v2009 = vpop.xlane.xlu0 %2008
    %v2010 = vsel %vm256, %v2000, -inf
    %2011 = vmax.xlane.f32.xlu0 %v2010
    %v2012 = vpop.xlane.xlu0 %2011
    %v2013 = vsel %vm520, %v2003, %v1960
    %v2014 = vsel %vm520, %v2006, %v1961
    %v2015 = vsel %vm520, %v2009, %v1962
    %v2016 = vsel %vm520, %v2012, %v1963
    %2017 = vset.pattern.permute.xlu0 2
    %2018 = vperm.xlu0 %2017, %v1903
    %v2019 = vpop.permute.xlu0 %2018
    %2021 = vset.pattern.permute.xlu0 2
    %2022 = vperm.xlu0 %2021, %v1904
    %v2023 = vpop.permute.xlu0 %2022
    %2025 = vset.pattern.permute.xlu0 2
    %2026 = vperm.xlu0 %2025, %v1905
    %v2027 = vpop.permute.xlu0 %2026
    %2029 = vset.pattern.permute.xlu0 2
    %2030 = vperm.xlu0 %2029, %v1906
    %v2031 = vpop.permute.xlu0 %2030
    %v2033 = vsel %vm409, %v2019, -3.4028235e+38
    %v2034 = vsel %vm410, %v2023, -3.4028235e+38
    %v2035 = vsel %vm411, %v2027, -3.4028235e+38
    %v2036 = vsel %vm412, %v2031, -3.4028235e+38
    %v2037 = vsel %vm256, %v2033, -inf
    %v2038 = vsel %vm256, %v2034, -inf
    %v2039 = vsel %vm256, %v2035, -inf
    %v2040 = vsel %vm256, %v2036, -inf
    %v2041 = vmax.f32 %v2037, %v2038
    %v2042 = vmax.f32 %v2039, %v2040
    %v2043 = vmax.f32 %v2041, %v2042
    %v2044 = vrot.slane %v2043, 4
    %v2045 = vmax.f32 %v2043, %v2044
    %v2046 = vrot.slane %v2045, 2
    %v2047 = vmax.f32 %v2045, %v2046
    %v2048 = vrot.slane %v2047, 1
    %v2049 = vmax.f32 %v2047, %v2048
    %v2050 = vsel %vm409, %v2049, -3.4028235e+38
    %v2051 = vsel %vm410, %v2049, -3.4028235e+38
    %v2052 = vsel %vm411, %v2049, -3.4028235e+38
    %v2053 = vsel %vm412, %v2049, -3.4028235e+38
    %v2054 = vsel %vm256, %v2050, -inf
    %2055 = vmax.xlane.f32.xlu0 %v2054
    %v2056 = vpop.xlane.xlu0 %2055
    %v2057 = vsel %vm256, %v2051, -inf
    %2058 = vmax.xlane.f32.xlu0 %v2057
    %v2059 = vpop.xlane.xlu0 %2058
    %v2060 = vsel %vm256, %v2052, -inf
    %2061 = vmax.xlane.f32.xlu0 %v2060
    %v2062 = vpop.xlane.xlu0 %2061
    %v2063 = vsel %vm256, %v2053, -inf
    %2064 = vmax.xlane.f32.xlu0 %v2063
    %v2065 = vpop.xlane.xlu0 %2064
    %v2066 = vsel %vm574, %v2056, %v2013
    %v2067 = vsel %vm574, %v2059, %v2014
    %v2068 = vsel %vm574, %v2062, %v2015
    %v2069 = vsel %vm574, %v2065, %v2016
    %2070 = vset.pattern.permute.xlu0 3
    %2071 = vperm.xlu0 %2070, %v1903
    %v2072 = vpop.permute.xlu0 %2071
    %2074 = vset.pattern.permute.xlu0 3
    %2075 = vperm.xlu0 %2074, %v1904
    %v2076 = vpop.permute.xlu0 %2075
    %2078 = vset.pattern.permute.xlu0 3
    %2079 = vperm.xlu0 %2078, %v1905
    %v2080 = vpop.permute.xlu0 %2079
    %2082 = vset.pattern.permute.xlu0 3
    %2083 = vperm.xlu0 %2082, %v1906
    %v2084 = vpop.permute.xlu0 %2083
    %v2086 = vsel %vm409, %v2072, -3.4028235e+38
    %v2087 = vsel %vm410, %v2076, -3.4028235e+38
    %v2088 = vsel %vm411, %v2080, -3.4028235e+38
    %v2089 = vsel %vm412, %v2084, -3.4028235e+38
    %v2090 = vsel %vm256, %v2086, -inf
    %v2091 = vsel %vm256, %v2087, -inf
    %v2092 = vsel %vm256, %v2088, -inf
    %v2093 = vsel %vm256, %v2089, -inf
    %v2094 = vmax.f32 %v2090, %v2091
    %v2095 = vmax.f32 %v2092, %v2093
    %v2096 = vmax.f32 %v2094, %v2095
    %v2097 = vrot.slane %v2096, 4
    %v2098 = vmax.f32 %v2096, %v2097
    %v2099 = vrot.slane %v2098, 2
    %v2100 = vmax.f32 %v2098, %v2099
    %v2101 = vrot.slane %v2100, 1
    %v2102 = vmax.f32 %v2100, %v2101
    %v2103 = vsel %vm409, %v2102, -3.4028235e+38
    %v2104 = vsel %vm410, %v2102, -3.4028235e+38
    %v2105 = vsel %vm411, %v2102, -3.4028235e+38
    %v2106 = vsel %vm412, %v2102, -3.4028235e+38
    %v2107 = vsel %vm256, %v2103, -inf
    %2108 = vmax.xlane.f32.xlu0 %v2107
    %v2109 = vpop.xlane.xlu0 %2108
    %v2110 = vsel %vm256, %v2104, -inf
    %2111 = vmax.xlane.f32.xlu0 %v2110
    %v2112 = vpop.xlane.xlu0 %2111
    %v2113 = vsel %vm256, %v2105, -inf
    %2114 = vmax.xlane.f32.xlu0 %v2113
    %v2115 = vpop.xlane.xlu0 %2114
    %v2116 = vsel %vm256, %v2106, -inf
    %2117 = vmax.xlane.f32.xlu0 %v2116
    %v2118 = vpop.xlane.xlu0 %2117
    %v2119 = vsel %vm628, %v2109, %v2066
    %v2120 = vsel %vm628, %v2112, %v2067
    %v2121 = vsel %vm628, %v2115, %v2068
    %v2122 = vsel %vm628, %v2118, %v2069
    %2123 = vset.pattern.permute.xlu0 4
    %2124 = vperm.xlu0 %2123, %v1903
    %v2125 = vpop.permute.xlu0 %2124
    %2127 = vset.pattern.permute.xlu0 4
    %2128 = vperm.xlu0 %2127, %v1904
    %v2129 = vpop.permute.xlu0 %2128
    %2131 = vset.pattern.permute.xlu0 4
    %2132 = vperm.xlu0 %2131, %v1905
    %v2133 = vpop.permute.xlu0 %2132
    %2135 = vset.pattern.permute.xlu0 4
    %2136 = vperm.xlu0 %2135, %v1906
    %v2137 = vpop.permute.xlu0 %2136
    %v2139 = vsel %vm409, %v2125, -3.4028235e+38
    %v2140 = vsel %vm410, %v2129, -3.4028235e+38
    %v2141 = vsel %vm411, %v2133, -3.4028235e+38
    %v2142 = vsel %vm412, %v2137, -3.4028235e+38
    %v2143 = vsel %vm256, %v2139, -inf
    %v2144 = vsel %vm256, %v2140, -inf
    %v2145 = vsel %vm256, %v2141, -inf
    %v2146 = vsel %vm256, %v2142, -inf
    %v2147 = vmax.f32 %v2143, %v2144
    %v2148 = vmax.f32 %v2145, %v2146
    %v2149 = vmax.f32 %v2147, %v2148
    %v2150 = vrot.slane %v2149, 4
    %v2151 = vmax.f32 %v2149, %v2150
    %v2152 = vrot.slane %v2151, 2
    %v2153 = vmax.f32 %v2151, %v2152
    %v2154 = vrot.slane %v2153, 1
    %v2155 = vmax.f32 %v2153, %v2154
    %v2156 = vsel %vm409, %v2155, -3.4028235e+38
    %v2157 = vsel %vm410, %v2155, -3.4028235e+38
    %v2158 = vsel %vm411, %v2155, -3.4028235e+38
    %v2159 = vsel %vm412, %v2155, -3.4028235e+38
    %v2160 = vsel %vm256, %v2156, -inf
    %2161 = vmax.xlane.f32.xlu0 %v2160
    %v2162 = vpop.xlane.xlu0 %2161
    %v2163 = vsel %vm256, %v2157, -inf
    %2164 = vmax.xlane.f32.xlu0 %v2163
    %v2165 = vpop.xlane.xlu0 %2164
    %v2166 = vsel %vm256, %v2158, -inf
    %2167 = vmax.xlane.f32.xlu0 %v2166
    %v2168 = vpop.xlane.xlu0 %2167
    %v2169 = vsel %vm256, %v2159, -inf
    %2170 = vmax.xlane.f32.xlu0 %v2169
    %v2171 = vpop.xlane.xlu0 %2170
    %v2172 = vsel %vm682, %v2162, %v2119
    %v2173 = vsel %vm682, %v2165, %v2120
    %v2174 = vsel %vm682, %v2168, %v2121
    %v2175 = vsel %vm682, %v2171, %v2122
    %v2176 = vsub.f32 %v1903, %v2172
    %v2177 = vsub.f32 %v1904, %v2173
    %v2178 = vsub.f32 %v1905, %v2174
    %v2179 = vsub.f32 %v1906, %v2175
    %v2180 = vmul.f32 %v2176, 1.442695
    %v2181 = vpow.pop %v2180
    %v2182 = vmul.f32 %v2177, 1.442695
    %v2183 = vpow.pop %v2182
    %v2184 = vmul.f32 %v2178, 1.442695
    %v2185 = vpow.pop %v2184
    %v2186 = vmul.f32 %v2179, 1.442695
    %v2187 = vpow.pop %v2186
    %2188 = vmatpush.msra.mxu0 0.0
    %2189 = vmatpush.msra.mxu0 0.0
    %2190 = vmatpush.msra.mxu0 0.0
    %2191 = vmatpush.msra.mxu0 0.0
    %2192 = vmatpush.msra.mxu0 0.0
    %2193 = vmatpush.msra.mxu0 0.0
    %2194 = vmatpush.msra.mxu0 0.0
    %2195 = vmatpush.msra.mxu0 0.0
    %2196 = vmatpush.msra.mxu0 0.0
    %2197 = vmatpush.msra.mxu0 0.0
    %2198 = vmatpush.msra.mxu0 0.0
    %2199 = vmatpush.msra.mxu0 0.0
    %2200 = vmatpush.msra.mxu0 %v2187
    %2201 = vmatpush.msra.mxu0 %v2185
    %2202 = vmatpush.msra.mxu0 %v2183
    %2203 = vmatpush.msra.mxu0 %v2181
    %2204 = vmatmul.f32.gmra.mxu0 %v733
    %v2205 = vpop.f32.mrf.mxu0
    %v2206 = vadd.f32 0.0, %v2205
    %2207 = vmatmul.f32.gmra.mxu0 %v736
    %v2208 = vpop.f32.mrf.mxu0
    %v2209 = vadd.f32 0.0, %v2208
    %2210 = vdwg.mxu0
    %2211 = vmatpush.msra.mxu0 0.0
    %2212 = vmatpush.msra.mxu0 0.0
    %2213 = vmatpush.msra.mxu0 0.0
    %2214 = vmatpush.msra.mxu0 0.0
    %2215 = vmatpush.msra.mxu0 0.0
    %2216 = vmatpush.msra.mxu0 0.0
    %2217 = vmatpush.msra.mxu0 0.0
    %2218 = vmatpush.msra.mxu0 0.0
    %2219 = vmatpush.msra.mxu0 0.0
    %2220 = vmatpush.msra.mxu0 0.0
    %2221 = vmatpush.msra.mxu0 0.0
    %2222 = vmatpush.msra.mxu0 0.0
    %2223 = vmatpush.msra.mxu0 0.0
    %2224 = vmatpush.msra.mxu0 0.0
    %2225 = vmatpush.msra.mxu0 %v2209
    %2226 = vmatpush.msra.mxu0 %v2206
    %2227 = vmatmul.f32.gmra.mxu0 %v762
    %v2228 = vpop.f32.mrf.mxu0
    %v2229 = vadd.f32 1e-16, %v2228
    %2230 = vmatmul.f32.gmra.mxu0 %v765
    %v2231 = vpop.f32.mrf.mxu0
    %v2232 = vadd.f32 1e-16, %v2231
    %2233 = vmatmul.f32.gmra.mxu0 %v768
    %v2234 = vpop.f32.mrf.mxu0
    %v2235 = vadd.f32 1e-16, %v2234
    %2236 = vmatmul.f32.gmra.mxu0 %v771
    %v2237 = vpop.f32.mrf.mxu0
    %v2238 = vadd.f32 1e-16, %v2237
    %2239 = vdwg.mxu0
    %v2240 = vrcp.pop %v2229
    %v2241 = vmul.f32 %v2229, %v2240
    %v2242 = vsub.f32 1.0, %v2241
    %v2243 = vmul.f32 %v2240, %v2242
    %v2244 = vadd.f32 %v2240, %v2243
    %vm2245 = vweird.f32 %v2229
    %vm2246 = vweird.f32 %v2240
    %vm2247 = vmor %vm2245, %vm2246
    %v2248 = vsel %vm2247, %v2240, %v2244
    %v2249 = vand.u32 2147483647, %v2229
    %vm2250 = vcmp.eq.f32.partialorder %v2249, 8.507059e+37
    %v2251 = vand.u32 %v2229, 2147483648
    %v2252 = vor.u32 1.1754944e-38, %v2251
    %v2253 = vsel %vm2250, %v2252, %v2248
    %v2254 = vmul.f32 %v2181, %v2253
    %v2255 = vrcp.pop %v2232
    %v2256 = vmul.f32 %v2232, %v2255
    %v2257 = vsub.f32 1.0, %v2256
    %v2258 = vmul.f32 %v2255, %v2257
    %v2259 = vadd.f32 %v2255, %v2258
    %vm2260 = vweird.f32 %v2232
    %vm2261 = vweird.f32 %v2255
    %vm2262 = vmor %vm2260, %vm2261
    %v2263 = vsel %vm2262, %v2255, %v2259
    %v2264 = vand.u32 2147483647, %v2232
    %vm2265 = vcmp.eq.f32.partialorder %v2264, 8.507059e+37
    %v2266 = vand.u32 %v2232, 2147483648
    %v2267 = vor.u32 1.1754944e-38, %v2266
    %v2268 = vsel %vm2265, %v2267, %v2263
    %v2269 = vmul.f32 %v2183, %v2268
    %v2270 = vrcp.pop %v2235
    %v2271 = vmul.f32 %v2235, %v2270
    %v2272 = vsub.f32 1.0, %v2271
    %v2273 = vmul.f32 %v2270, %v2272
    %v2274 = vadd.f32 %v2270, %v2273
    %vm2275 = vweird.f32 %v2235
    %vm2276 = vweird.f32 %v2270
    %vm2277 = vmor %vm2275, %vm2276
    %v2278 = vsel %vm2277, %v2270, %v2274
    %v2279 = vand.u32 2147483647, %v2235
    %vm2280 = vcmp.eq.f32.partialorder %v2279, 8.507059e+37
    %v2281 = vand.u32 %v2235, 2147483648
    %v2282 = vor.u32 1.1754944e-38, %v2281
    %v2283 = vsel %vm2280, %v2282, %v2278
    %v2284 = vmul.f32 %v2185, %v2283
    %v2285 = vrcp.pop %v2238
    %v2286 = vmul.f32 %v2238, %v2285
    %v2287 = vsub.f32 1.0, %v2286
    %v2288 = vmul.f32 %v2285, %v2287
    %v2289 = vadd.f32 %v2285, %v2288
    %vm2290 = vweird.f32 %v2238
    %vm2291 = vweird.f32 %v2285
    %vm2292 = vmor %vm2290, %vm2291
    %v2293 = vsel %vm2292, %v2285, %v2289
    %v2294 = vand.u32 2147483647, %v2238
    %vm2295 = vcmp.eq.f32.partialorder %v2294, 8.507059e+37
    %v2296 = vand.u32 %v2238, 2147483648
    %v2297 = vor.u32 1.1754944e-38, %v2296
    %v2298 = vsel %vm2295, %v2297, %v2293
    %v2299 = vmul.f32 %v2187, %v2298
    %2300 = vmatpush.msra.mxu0 %v1769
    %2301 = vmatpush.msra.mxu0 %v1768
    %2302 = vmatpush.msra.mxu0 %v1767
    %2303 = vmatpush.msra.mxu0 %v1766
    %2304 = vmatpush.msra.mxu0 %v1765
    %2305 = vmatpush.msra.mxu0 %v1764
    %2306 = vmatpush.msra.mxu0 %v1763
    %2307 = vmatpush.msra.mxu0 %v1762
    %2308 = vmatpush.msra.mxu0 %v1761
    %2309 = vmatpush.msra.mxu0 %v1760
    %2310 = vmatpush.msra.mxu0 %v1759
    %2311 = vmatpush.msra.mxu0 %v1758
    %2312 = vmatpush.msra.mxu0 %v1757
    %2313 = vmatpush.msra.mxu0 %v1756
    %2314 = vmatpush.msra.mxu0 %v1755
    %2315 = vmatpush.msra.mxu0 %v1754
    %2316 = vmatmul.f32.gmra.mxu0 %v2254
    %v2317 = vpop.f32.mrf.mxu0
    %v2318 = vadd.f32 0.0, %v2317
    %2319 = vmatmul.f32.gmra.mxu0 %v2269
    %v2320 = vpop.f32.mrf.mxu0
    %v2321 = vadd.f32 0.0, %v2320
    %2322 = vmatmul.f32.gmra.mxu0 %v2284
    %v2323 = vpop.f32.mrf.mxu0
    %v2324 = vadd.f32 0.0, %v2323
    %2325 = vmatmul.f32.gmra.mxu0 %v2299
    %v2326 = vpop.f32.mrf.mxu0
    %v2327 = vadd.f32 0.0, %v2326
    %2328 = vdwg.mxu0
    %v2329 = vmul.f32 %v1855, %v2318
    %v2330 = vmul.f32 %v1856, %v2321
    %v2331 = vmul.f32 %v1857, %v2324
    %v2332 = vmul.f32 %v1858, %v2327
    %2333 = vmatpush.msra.mxu0 0.0
    %2334 = vmatpush.msra.mxu0 0.0
    %2335 = vmatpush.msra.mxu0 0.0
    %2336 = vmatpush.msra.mxu0 0.0
    %2337 = vmatpush.msra.mxu0 0.0
    %2338 = vmatpush.msra.mxu0 0.0
    %2339 = vmatpush.msra.mxu0 0.0
    %2340 = vmatpush.msra.mxu0 0.0
    %2341 = vmatpush.msra.mxu0 0.0
    %2342 = vmatpush.msra.mxu0 0.0
    %2343 = vmatpush.msra.mxu0 0.0
    %2344 = vmatpush.msra.mxu0 0.0
    %2345 = vmatpush.msra.mxu0 %v2332
    %2346 = vmatpush.msra.mxu0 %v2331
    %2347 = vmatpush.msra.mxu0 %v2330
    %2348 = vmatpush.msra.mxu0 %v2329
    %2349 = vmatmul.f32.gmra.mxu0 %v733
    %v2350 = vpop.f32.mrf.mxu0
    %v2351 = vadd.f32 0.0, %v2350
    %2352 = vmatmul.f32.gmra.mxu0 %v736
    %v2353 = vpop.f32.mrf.mxu0
    %v2354 = vadd.f32 0.0, %v2353
    %2355 = vdwg.mxu0
    %2356 = vmatpush.msra.mxu0 %v1786
    %2357 = vmatpush.msra.mxu0 %v1785
    %2358 = vmatpush.msra.mxu0 %v1784
    %2359 = vmatpush.msra.mxu0 %v1783
    %2360 = vmatpush.msra.mxu0 %v1782
    %2361 = vmatpush.msra.mxu0 %v1781
    %2362 = vmatpush.msra.mxu0 %v1780
    %2363 = vmatpush.msra.mxu0 %v1779
    %2364 = vmatpush.msra.mxu0 %v1778
    %2365 = vmatpush.msra.mxu0 %v1777
    %2366 = vmatpush.msra.mxu0 %v1776
    %2367 = vmatpush.msra.mxu0 %v1775
    %2368 = vmatpush.msra.mxu0 %v1774
    %2369 = vmatpush.msra.mxu0 %v1773
    %2370 = vmatpush.msra.mxu0 %v1772
    %2371 = vmatpush.msra.mxu0 %v1771
    %2372 = vmatmul.f32.gmra.mxu0 %v2351
    %v2373 = vpop.f32.mrf.mxu0
    %v2374 = vadd.f32 0.0, %v2373
    %2375 = vmatmul.f32.gmra.mxu0 %v2354
    %v2376 = vpop.f32.mrf.mxu0
    %v2377 = vadd.f32 0.0, %v2376
    %2378 = vdwg.mxu0
    %v2379 = vmul.f32 %v2374, 0.2
    %v2380 = vmul.f32 %v2377, 0.2
    %2381 = vmatpush.msra.mxu0 %v1731
    %2382 = vmatpush.msra.mxu0 %v1730
    %2383 = vmatpush.msra.mxu0 %v1729
    %2384 = vmatpush.msra.mxu0 %v1728
    %2385 = vmatpush.msra.mxu0 %v1727
    %2386 = vmatpush.msra.mxu0 %v1726
    %2387 = vmatpush.msra.mxu0 %v1725
    %2388 = vmatpush.msra.mxu0 %v1724
    %2389 = vmatpush.msra.mxu0 %v1723
    %2390 = vmatpush.msra.mxu0 %v1722
    %2391 = vmatpush.msra.mxu0 %v1721
    %2392 = vmatpush.msra.mxu0 %v1720
    %2393 = vmatpush.msra.mxu0 %v1719
    %2394 = vmatpush.msra.mxu0 %v1718
    %2395 = vmatpush.msra.mxu0 %v1717
    %2396 = vmatpush.msra.mxu0 %v1716
    %2397 = vmatmul.f32.gmra.mxu0 %v1692
    %v2398 = vpop.f32.mrf.mxu0
    %v2399 = vadd.f32 0.0, %v2398
    %2400 = vmatmul.f32.gmra.mxu0 %v1693
    %v2401 = vpop.f32.mrf.mxu0
    %v2402 = vadd.f32 0.0, %v2401
    %2403 = vdwg.mxu0
    %v2404 = vadd.f32 %v2379, %v2399
    %v2405 = vadd.f32 %v2380, %v2402
    %v2407 = vperm.slane %v1733, 0
    %v2409 = vadd.f32 %v2404, %v2407
    %v2410 = vadd.f32 %v2405, %v2407
    %v2411 = vmax.f32 %v2409, 0.0
    %v2412 = vmax.f32 %v2410, 0.0
    %v2413 = vld [vmem:[%s4] sm:$0xff]
    %v2414 = vld [vmem:[%s4 + $0x8] sm:$0xff]
    %v2415 = vlaneseq
    %v2416 = vshrl.u32 %v2415, 7
    %vm2417 = vcmp.gt.f32.partialorder %v2413, 0.5
    %vm2418 = vcmp.gt.f32.partialorder %v2414, 0.5
    %v2419 = vsel %vm2417, 1, 0
    %v2420 = vsel %vm2418, 1, 0
    %2421 = vset.pattern.permute.xlu0 0
    %2422 = vperm.xlu0 %2421, %v2419
    %v2423 = vpop.permute.xlu0 %2422
    %2424 = vset.pattern.permute.xlu0 0
    %2425 = vperm.xlu0 %2424, %v2420
    %v2426 = vpop.permute.xlu0 %2425
    %vm2427 = vcmp.eq.s32.totalorder %v2423, 1
    %vm2428 = vcmp.eq.s32.totalorder %v2426, 1
    %v2429 = vsel %vm2427, %v2411, -3.4028235e+38
    %v2430 = vsel %vm2428, %v2412, -3.4028235e+38
    %v2431 = vmax.f32 %v2429, %v2430
    %v2432 = vrot.slane %v2431, 4
    %v2433 = vmax.f32 %v2431, %v2432
    %v2434 = vrot.slane %v2433, 2
    %v2435 = vmax.f32 %v2433, %v2434
    %v2436 = vrot.slane %v2435, 1
    %v2437 = vmax.f32 %v2435, %v2436
    %vm2438 = vcmp.eq.s32.totalorder %v2416, 0
    %v2439 = vsel %vm2438, %v2437, 0.0
    %2440 = vset.pattern.permute.xlu0 1
    %2441 = vperm.xlu0 %2440, %v2419
    %v2442 = vpop.permute.xlu0 %2441
    %2443 = vset.pattern.permute.xlu0 1
    %2444 = vperm.xlu0 %2443, %v2420
    %v2445 = vpop.permute.xlu0 %2444
    %vm2446 = vcmp.eq.s32.totalorder %v2442, 1
    %vm2447 = vcmp.eq.s32.totalorder %v2445, 1
    %v2448 = vsel %vm2446, %v2411, -3.4028235e+38
    %v2449 = vsel %vm2447, %v2412, -3.4028235e+38
    %v2450 = vmax.f32 %v2448, %v2449
    %v2451 = vrot.slane %v2450, 4
    %v2452 = vmax.f32 %v2450, %v2451
    %v2453 = vrot.slane %v2452, 2
    %v2454 = vmax.f32 %v2452, %v2453
    %v2455 = vrot.slane %v2454, 1
    %v2456 = vmax.f32 %v2454, %v2455
    %vm2457 = vcmp.eq.s32.totalorder %v2416, 1
    %v2458 = vsel %vm2457, %v2456, %v2439
    %v2459 = vld [vmem:[#allocation11] sm:$0xff]
    %v2460 = vld [vmem:[#allocation11 + $0x8] sm:$0xff]
    %v2461 = vld [vmem:[#allocation11 + $0x10] sm:$0xff]
    %v2462 = vld [vmem:[#allocation11 + $0x18] sm:$0xff]
    %v2463 = vld [vmem:[#allocation11 + $0x20] sm:$0xff]
    %v2464 = vld [vmem:[#allocation11 + $0x28] sm:$0xff]
    %v2465 = vld [vmem:[#allocation11 + $0x30] sm:$0xff]
    %v2466 = vld [vmem:[#allocation11 + $0x38] sm:$0xff]
    %v2467 = vld [vmem:[#allocation11 + $0x40] sm:$0xff]
    %v2468 = vld [vmem:[#allocation11 + $0x48] sm:$0xff]
    %v2469 = vld [vmem:[#allocation11 + $0x50] sm:$0xff]
    %v2470 = vld [vmem:[#allocation11 + $0x58] sm:$0xff]
    %v2471 = vld [vmem:[#allocation11 + $0x60] sm:$0xff]
    %v2472 = vld [vmem:[#allocation11 + $0x68] sm:$0xff]
    %v2473 = vld [vmem:[#allocation11 + $0x70] sm:$0xff]
    %v2474 = vld [vmem:[#allocation11 + $0x78] sm:$0xff]
    %v2475 = vld [vmem:[%s15] sm:$0x1]
    %v2477 = vperm.slane %v2475, 0
    %2479 = vmatpush.msra.mxu0 %v2474
    %2480 = vmatpush.msra.mxu0 %v2473
    %2481 = vmatpush.msra.mxu0 %v2472
    %2482 = vmatpush.msra.mxu0 %v2471
    %2483 = vmatpush.msra.mxu0 %v2470
    %2484 = vmatpush.msra.mxu0 %v2469
    %2485 = vmatpush.msra.mxu0 %v2468
    %2486 = vmatpush.msra.mxu0 %v2467
    %2487 = vmatpush.msra.mxu0 %v2466
    %2488 = vmatpush.msra.mxu0 %v2465
    %2489 = vmatpush.msra.mxu0 %v2464
    %2490 = vmatpush.msra.mxu0 %v2463
    %2491 = vmatpush.msra.mxu0 %v2462
    %2492 = vmatpush.msra.mxu0 %v2461
    %2493 = vmatpush.msra.mxu0 %v2460
    %2494 = vmatpush.msra.mxu0 %v2459
    %2495 = vmatmul.f32.gmra.mxu0 %v2458
    %v2496 = vpop.f32.mrf.mxu0
    %v2497 = vadd.f32 %v2477, %v2496
    %2498 = vdwg.mxu0
    %2499 = vst [vmem:[#allocation13] sm:$0x3] %v2497
    // Predicated region
    $region90: #{tpu_custom_call.1} parent=1 // pred_check
      _
    $region91: #{tpu_custom_call.1} parent=1 // pred_check_branch
      %2501 = sbr.rel (0) target = $region93
    $region92: #{tpu_custom_call.1} parent=1 // pred_region
      %2503 = vsyncadd [#allocation4], 0
      %s2505 = sshll.u32 [#allocation13], 4
      %s2506 = int_to_ptr.vmem [resolvable:$true] %s2505
      %s2507 = sshll.u32 %s16, 4
      %s2508 = int_to_ptr.hbm [resolvable:$true] %s2507
      %2510 = dma.vmem_to_hbm [thread:$0]  %s2506, 32, %s2508, [#allocation4]
    $region93: #{tpu_custom_call.1} parent=1 // pred_fallthru
      _
    // Predicated region
    $region94: #{tpu_custom_call.1} parent=1 // pred_check
      _
    $region95: #{tpu_custom_call.1} parent=1 // pred_check_branch
      %2512 = sbr.rel (0) target = $region97
    $region96: #{tpu_custom_call.1} parent=1 // pred_region
      %2514 = dma.done [#allocation4], 32
    $region97: #{tpu_custom_call.1} parent=1 // pred_fallthru
      _
    %2515 = vsyncpa [#allocation3], 1
    %2516 = vsyncpa [#allocation6], 1
    %2517 = vsyncpa [#allocation9], 1
    %2518 = vsyncpa [#allocation12], 1
    %2519 = vsyncpa [#allocation4], 1

</llo_original>
